<compile_context>
chip_gen: v6e
topology: v6e:2x2x1
jax: 0.10.0
libtpu: 0.0.40
codegen_flags: <defaults>
</compile_context>

<pallas_src>
import math

import numpy as np
import jax
import jax.numpy as jnp
from jax import lax
from jax.experimental import pallas as pl
from jax.experimental.pallas import tpu as pltpu

HIDDEN = 32          # hidden_size (small, forward-compatible with the module)
NUM_HEADS = 4
HEAD_DIM = HIDDEN // NUM_HEADS
LN_EPS = 1e-5


# --------------------------------------------------------------------------- #
# Fused kernel: wavefront 2-layer LSTM -> MHA (last query) -> res+LN -> MLP.
# --------------------------------------------------------------------------- #
def _lstm_attn_fc_kernel(
        x_ref, wx0w_ref, bw_ref, wf_ref,
        wq_ref, wk_ref, wv_ref, bq_ref, bk_ref, bv_ref, wo_ref, bo_ref,
        lnw_ref, lnb_ref,
        w1_ref, b1f_ref, w2_ref, b2f_ref, w3_ref, b3f_ref,
        hsum_ref,
        out_ref,
        gx_ref, y_ref):
    T, B, D = x_ref.shape
    H = HIDDEN
    H2, G8 = 2 * H, 8 * H

    # ---- hoisted layer-0 input projection (+ both layers' biases), T-major --
    x = x_ref[...]                                                   # (T, B, D)
    gx = (jnp.dot(x.reshape(T * B, D), wx0w_ref[...],
                  preferred_element_type=jnp.float32) + bw_ref[...])
    gx_ref[...] = gx.reshape(T, B, G8)      # stage in VMEM; per-step read = vld

    wf = wf_ref[...]                        # (2H, 8H) fused recurrent weights
    bias_w = bw_ref[...]                    # (1, 8H)
    # TODO(synk): keep wf resident in MXU weight registers across the unrolled
    # steps via pltpu.matmul_push_rhs / matmul_acc_lhs / matmul_pop (and v7x
    # MRB in-place accumulate of gx[t]); jnp.dot re-pushes the loop-invariant
    # RHS each step.

    lane_idx = lax.broadcasted_iota(jnp.int32, (B, H2), 1)           # mask helper
    h_all = jnp.zeros((B, H2), jnp.float32)                          # [h0 | h1]
    c_all = jnp.zeros((B, H2), jnp.float32)                          # [c0 | c1]

    def act(gates, c_prev):
        # gate layout (interleaved): [i0|i1|f0|f1|g0|g1|o0|o1], each block H wide
        sig = 0.5 * jnp.tanh(0.5 * gates) + 0.5      # one EUP pass (sigmoid)
        g_t = jnp.tanh(gates[:, 4 * H:6 * H])        # one EUP pass (cell input)
        i_a = sig[:, 0:2 * H]
        f_a = sig[:, 2 * H:4 * H]
        o_a = sig[:, 6 * H:8 * H]
        c_new = f_a * c_prev + i_a * g_t
        h_new = o_a * jnp.tanh(c_new)                # one EUP pass (cell output)
        return h_new, c_new

    # ---- wavefront recurrence: step s = layer-0 step s + layer-1 step s-1 ---
    for s in range(T + 1):                           # static unroll (T small)
        if s == 0:
            gates = gx_ref[0]                        # h==0 -> recurrent term 0
        else:
            add = gx_ref[s] if s < T else bias_w     # layer-0 half unused at s==T
            gates = jnp.dot(h_all, wf, preferred_element_type=jnp.float32) + add
        h_new, c_new = act(gates, c_all)
        if s == 0:
            # layer 1 has not started yet -> keep its half of the state at zero
            h_all = jnp.where(lane_idx < H, h_new, 0.0)
            c_all = jnp.where(lane_idx < H, c_new, 0.0)
        else:
            h_all = h_new
            c_all = c_new
            y_ref[s - 1] = h_all[:, H:]              # layer-1 output h1[s-1]
    # TODO(synk): inter-layer LSTM dropout omitted (identity at inference).

    # ---- Multi-head self-attention, ONLY for the last query position --------
    y_last = h_all[:, H:]                            # (B, H) = h1[T-1]
    y = y_ref[...]                                   # (T, B, H), T-major
    yf = y.reshape(T * B, H)                         # leading-dim merge (no relayout)
    k = (jnp.dot(yf, wk_ref[...], preferred_element_type=jnp.float32)
         + bk_ref[...]).reshape(T, B, H)
    v = (jnp.dot(yf, wv_ref[...], preferred_element_type=jnp.float32)
         + bv_ref[...]).reshape(T, B, H)
    q = (jnp.dot(y_last, wq_ref[...], preferred_element_type=jnp.float32)
         + bq_ref[...]) * (1.0 / math.sqrt(HEAD_DIM))                 # (B, H)

    # per-head scores replicated over each head's lanes via one lane-dense
    # (T*B,H)@(H,H) block-of-ones matmul -> no reshapes / lane-sparse vregs
    prod = q[None, :, :] * k                                          # (T, B, H)
    s_rep = jnp.dot(prod.reshape(T * B, H), hsum_ref[...],
                    preferred_element_type=jnp.float32).reshape(T, B, H)
    s_rep = s_rep - jnp.max(s_rep, axis=0, keepdims=True)
    e = jnp.exp(s_rep)
    denom = jnp.sum(e, axis=0, keepdims=True)
    p = e * pl.reciprocal(denom, approx=True)        # softmax over T (per lane)
    ctx = jnp.sum(p * v, axis=0)                                      # (B, H)
    attn = (jnp.dot(ctx, wo_ref[...], preferred_element_type=jnp.float32)
            + bo_ref[...])                                            # (B, H)

    # ---- residual + LayerNorm (last position only) + MLP head --------------
    resid = attn + y_last
    mean = jnp.mean(resid, axis=-1, keepdims=True)
    var = jnp.mean((resid - mean) ** 2, axis=-1, keepdims=True)
    normed = ((resid - mean) * lax.rsqrt(var + LN_EPS)) * lnw_ref[...] + lnb_ref[...]

    h1 = jnp.maximum(
        jnp.dot(normed, w1_ref[...], preferred_element_type=jnp.float32)
        + b1f_ref[...], 0.0)
    h2 = jnp.maximum(
        jnp.dot(h1, w2_ref[...], preferred_element_type=jnp.float32)
        + b2f_ref[...], 0.0)
    out = (jnp.dot(h2, w3_ref[...], preferred_element_type=jnp.float32)
           + b3f_ref[...])
    out_ref[...] = out.astype(out_ref.dtype)


# --------------------------------------------------------------------------- #
# One-time host-side packing into the fused wavefront layout (off hot path).
# --------------------------------------------------------------------------- #
def pack_params(p):
    H = HIDDEN
    D = p['wx0'].shape[0]
    G8 = 8 * H
    wx0_wide = jnp.zeros((D, G8), jnp.float32)
    bias_wide = jnp.zeros((1, G8), jnp.float32)
    w_fused = jnp.zeros((2 * H, G8), jnp.float32)
    # gate columns interleaved: gate g (i,f,g,o), layer l -> cols (2g+l)*H:(2g+l+1)*H
    for g in range(4):
        src = slice(g * H, (g + 1) * H)
        d0 = slice((2 * g) * H, (2 * g + 1) * H)       # layer-0 slot
        d1 = slice((2 * g + 1) * H, (2 * g + 2) * H)   # layer-1 slot
        wx0_wide = wx0_wide.at[:, d0].set(p['wx0'][:, src])
        bias_wide = bias_wide.at[:, d0].set(p['lb0'][:, src])
        bias_wide = bias_wide.at[:, d1].set(p['lb1'][:, src])
        w_fused = w_fused.at[:H, d0].set(p['wh0'][:, src])   # h0 -> layer-0 gates
        w_fused = w_fused.at[:H, d1].set(p['wx1'][:, src])   # h0 -> layer-1 input
        w_fused = w_fused.at[H:, d1].set(p['wh1'][:, src])   # h1 -> layer-1 gates
    # block-of-ones (H,H): per-head sum replicated across that head's lanes
    hsum = jnp.asarray(np.kron(np.eye(NUM_HEADS, dtype=np.float32),
                               np.ones((HEAD_DIM, HEAD_DIM), np.float32)))
    packed = dict(p)
    packed.update(wx0w=wx0_wide, bw=bias_wide, wf=w_fused, hsum=hsum)
    return packed


def lstm_model_forward(x, pp):
    """x: (B, T, input_size) batch-first, like PyTorch. Single fused kernel.
    `pp` must be produced once by pack_params()."""
    B, T, D = x.shape
    H = HIDDEN
    out_size = pp['w3'].shape[1]
    x_t = jnp.swapaxes(x, 0, 1)          # T-major layout (pure layout plumbing)
    args = (x_t, pp['wx0w'], pp['bw'], pp['wf'],
            pp['wq'], pp['wk'], pp['wv'], pp['bq'], pp['bk'], pp['bv'],
            pp['wo'], pp['bo'], pp['ln_w'], pp['ln_b'],
            pp['w1'], pp['b1f'], pp['w2'], pp['b2f'], pp['w3'], pp['b3f'],
            pp['hsum'])
    flops = 2 * (T * B * D * 8 * H + (T + 1) * B * 2 * H * 8 * H
                 + 2 * T * B * H * H + 2 * B * H * H + T * B * H * H
                 + B * (H * (H // 2) + (H // 2) * (H // 4) + (H // 4) * out_size))
    bytes_accessed = 4 * (x.size + B * out_size
                          + sum(int(np.prod(a.shape)) for a in args[1:]))
    # TODO(synk): for batch >= ~16, add a 'parallel' grid axis over B (v7x 2-TC);
    # at B=2 the serial recurrence is latency-bound and splitting only duplicates it.
    return pl.pallas_call(
        _lstm_attn_fc_kernel,
        out_shape=jax.ShapeDtypeStruct((B, out_size), jnp.float32),
        in_specs=[pl.BlockSpec(memory_space=pltpu.MemorySpace.VMEM)] * len(args),
        out_specs=pl.BlockSpec(memory_space=pltpu.MemorySpace.VMEM),
        scratch_shapes=[pltpu.VMEM((T, B, 8 * H), jnp.float32),  # hoisted gx (+biases)
                        pltpu.VMEM((T, B, H), jnp.float32)],     # layer-1 outputs
        cost_estimate=pl.CostEstimate(flops=flops,
                                      transcendentals=3 * (T + 1) * B * 8 * H,
                                      bytes_accessed=bytes_accessed),
    )(*args)


# --------------------------------------------------------------------------- #
# Deterministic parameter init (shapes follow the nn.Module __init__).
# --------------------------------------------------------------------------- #
def init_params(key, input_size, hidden_size, output_size):
    H = hidden_size
    keys = jax.random.split(key, 24)

    def u(k, shape, bound):
        return jax.random.uniform(k, shape, jnp.float32, -bound, bound)

    kb = 1.0 / math.sqrt(H)
    p = {}
    # LSTM layer 0 (weights stored transposed: (Din, 4H), (H, 4H)); gate order i,f,g,o
    p['wx0'] = u(keys[0], (input_size, 4 * H), kb)
    p['wh0'] = u(keys[1], (H, 4 * H), kb)
    p['lb0'] = u(keys[2], (1, 4 * H), kb) + u(keys[3], (1, 4 * H), kb)
    # LSTM layer 1
    p['wx1'] = u(keys[4], (H, 4 * H), kb)
    p['wh1'] = u(keys[5], (H, 4 * H), kb)
    p['lb1'] = u(keys[6], (1, 4 * H), kb) + u(keys[7], (1, 4 * H), kb)
    # MultiheadAttention: in_proj (3H, H) split into q/k/v, out_proj (H, H)
    in_proj = u(keys[8], (3 * H, H), math.sqrt(1.0 / H))
    p['wq'] = in_proj[0 * H:1 * H].T
    p['wk'] = in_proj[1 * H:2 * H].T
    p['wv'] = in_proj[2 * H:3 * H].T
    p['bq'] = u(keys[9], (1, H), kb)
    p['bk'] = u(keys[10], (1, H), kb)
    p['bv'] = u(keys[11], (1, H), kb)
    p['wo'] = u(keys[12], (H, H), kb)
    p['bo'] = u(keys[13], (1, H), kb)
    # LayerNorm (PyTorch default init)
    p['ln_w'] = jnp.ones((1, H), jnp.float32)
    p['ln_b'] = jnp.zeros((1, H), jnp.float32)
    # fc_layers: H -> H/2 -> H/4 -> output_size
    p['w1'] = u(keys[14], (H, H // 2), kb)
    p['b1f'] = u(keys[15], (1, H // 2), kb)
    p['w2'] = u(keys[16], (H // 2, H // 4), 1.0 / math.sqrt(H // 2))
    p['b2f'] = u(keys[17], (1, H // 4), 1.0 / math.sqrt(H // 2))
    p['w3'] = u(keys[18], (H // 4, output_size), 1.0 / math.sqrt(H // 4))
    p['b3f'] = u(keys[19], (1, output_size), 1.0 / math.sqrt(H // 4))
    return p


# --------------------------------------------------------------------------- #
# Pure-JAX reference (full attention over all positions, then take last row).
# --------------------------------------------------------------------------- #
def reference_forward(x, p):
    B, T, _ = x.shape
    H = HIDDEN

    def lstm_layer_ref(inp, wx, wh, b):
        h = jnp.zeros((B, H), jnp.float32)
        c = jnp.zeros((B, H), jnp.float32)
        ys = []
        for t in range(inp.shape[1]):
            g = inp[:, t] @ wx + h @ wh + b[0]
            i = jax.nn.sigmoid(g[:, :H])
            f = jax.nn.sigmoid(g[:, H:2 * H])
            gg = jnp.tanh(g[:, 2 * H:3 * H])
            o = jax.nn.sigmoid(g[:, 3 * H:])
            c = f * c + i * gg
            h = o * jnp.tanh(c)
            ys.append(h)
        return jnp.stack(ys, axis=1)

    y = lstm_layer_ref(x, p['wx0'], p['wh0'], p['lb0'])
    y = lstm_layer_ref(y, p['wx1'], p['wh1'], p['lb1'])
    q = y @ p['wq'] + p['bq']
    k = y @ p['wk'] + p['bk']
    v = y @ p['wv'] + p['bv']
    outs = []
    for h in range(NUM_HEADS):
        sl = slice(h * HEAD_DIM, (h + 1) * HEAD_DIM)
        s = jnp.einsum('bqd,bkd->bqk', q[:, :, sl], k[:, :, sl]) / math.sqrt(HEAD_DIM)
        pw = jax.nn.softmax(s, axis=-1)
        outs.append(jnp.einsum('bqk,bkd->bqd', pw, v[:, :, sl]))
    attn = jnp.concatenate(outs, -1) @ p['wo'] + p['bo']
    resid = attn + y
    mean = resid.mean(-1, keepdims=True)
    var = ((resid - mean) ** 2).mean(-1, keepdims=True)
    normed = (resid - mean) / jnp.sqrt(var + LN_EPS) * p['ln_w'] + p['ln_b']
    last = normed[:, -1, :]
    h1 = jax.nn.relu(last @ p['w1'] + p['b1f'])
    h2 = jax.nn.relu(h1 @ p['w2'] + p['b2f'])
    return h2 @ p['w3'] + p['b3f']


if __name__ == "__main__":
    B, T, D, OUT = 2, 8, 16, 1
    key = jax.random.PRNGKey(0)
    kx, kp = jax.random.split(key)
    x = jax.random.normal(kx, (B, T, D), jnp.float32)
    params = init_params(kp, D, HIDDEN, OUT)
    packed = pack_params(params)          # one-time weight packing

    out = jax.block_until_ready(lstm_model_forward(x, packed))
    assert out.shape == (B, OUT), out.shape

    ref = reference_forward(x, params)
    if not jnp.allclose(out, ref, atol=5e-3, rtol=5e-3):
        raise AssertionError(f"mismatch: pallas={out}, ref={ref}")
    print("KERNEL_OK")
</pallas_src>

<mosaic_0001>
module attributes {stable_mosaic.version = 11 : i64} {
  func.func @_lstm_attn_fc_kernel(%arg0: memref<8x2x16xf32, #tpu.memory_space<vmem>>, %arg1: memref<16x256xf32, #tpu.memory_space<vmem>>, %arg2: memref<1x256xf32, #tpu.memory_space<vmem>>, %arg3: memref<64x256xf32, #tpu.memory_space<vmem>>, %arg4: memref<32x32xf32, #tpu.memory_space<vmem>>, %arg5: memref<32x32xf32, #tpu.memory_space<vmem>>, %arg6: memref<32x32xf32, #tpu.memory_space<vmem>>, %arg7: memref<1x32xf32, #tpu.memory_space<vmem>>, %arg8: memref<1x32xf32, #tpu.memory_space<vmem>>, %arg9: memref<1x32xf32, #tpu.memory_space<vmem>>, %arg10: memref<32x32xf32, #tpu.memory_space<vmem>>, %arg11: memref<1x32xf32, #tpu.memory_space<vmem>>, %arg12: memref<1x32xf32, #tpu.memory_space<vmem>>, %arg13: memref<1x32xf32, #tpu.memory_space<vmem>>, %arg14: memref<32x16xf32, #tpu.memory_space<vmem>>, %arg15: memref<1x16xf32, #tpu.memory_space<vmem>>, %arg16: memref<16x8xf32, #tpu.memory_space<vmem>>, %arg17: memref<1x8xf32, #tpu.memory_space<vmem>>, %arg18: memref<8x1xf32, #tpu.memory_space<vmem>>, %arg19: memref<1x1xf32, #tpu.memory_space<vmem>>, %arg20: memref<32x32xf32, #tpu.memory_space<vmem>>, %arg21: memref<2x1xf32, #tpu.memory_space<vmem>>, %arg22: memref<8x2x256xf32, #tpu.memory_space<vmem>>, %arg23: memref<8x2x32xf32, #tpu.memory_space<vmem>>) attributes {dimension_semantics = [], scalar_prefetch = 0 : i64, scratch_operands = 2 : i64, tpu.core_type = #tpu.core_type<tc>} {
    %c0 = arith.constant 0 : index
    %c0_0 = arith.constant 0 : index
    %c0_1 = arith.constant 0 : index
    %0 = vector.load %arg0[%c0, %c0_0, %c0_1] : memref<8x2x16xf32, #tpu.memory_space<vmem>>, vector<8x2x16xf32>
    %1 = vector.shape_cast %0 : vector<8x2x16xf32> to vector<16x16xf32>
    %c0_2 = arith.constant 0 : index
    %c0_3 = arith.constant 0 : index
    %2 = vector.load %arg1[%c0_2, %c0_3] : memref<16x256xf32, #tpu.memory_space<vmem>>, vector<16x256xf32>
    %cst = arith.constant dense<0.000000e+00> : vector<16x256xf32>
    %3 = tpu.matmul %1, %2, %cst {dimension_numbers = #tpu.dot_dimension_numbers<[1], [0], [0], [1], [0, 0, 1, 1], [], []>} : vector<16x16xf32>, vector<16x256xf32>, vector<16x256xf32> -> vector<16x256xf32>
    %c0_4 = arith.constant 0 : index
    %c0_5 = arith.constant 0 : index
    %4 = vector.load %arg2[%c0_4, %c0_5] : memref<1x256xf32, #tpu.memory_space<vmem>>, vector<1x256xf32>
    %5 = vector.broadcast %4 : vector<1x256xf32> to vector<16x256xf32>
    %6 = arith.addf %3, %5 : vector<16x256xf32>
    %7 = vector.shape_cast %6 : vector<16x256xf32> to vector<8x2x256xf32>
    %c0_6 = arith.constant 0 : index
    %c0_7 = arith.constant 0 : index
    %c0_8 = arith.constant 0 : index
    %8 = vector.load %arg22[%c0_6, %c0_7, %c0_8] : memref<8x2x256xf32, #tpu.memory_space<vmem>>, vector<8x2x256xf32>
    tpu.vector_store %arg22[%c0_6, %c0_7, %c0_8], %7 {strides = array<i32>} : memref<8x2x256xf32, #tpu.memory_space<vmem>>, vector<8x2x256xf32>,
    %c0_9 = arith.constant 0 : index
    %c0_10 = arith.constant 0 : index
    %9 = vector.load %arg3[%c0_9, %c0_10] : memref<64x256xf32, #tpu.memory_space<vmem>>, vector<64x256xf32>
    %c0_11 = arith.constant 0 : index
    %c0_12 = arith.constant 0 : index
    %10 = vector.load %arg2[%c0_11, %c0_12] : memref<1x256xf32, #tpu.memory_space<vmem>>, vector<1x256xf32>
    %11 = tpu.iota {dimensions = array<i32: 1>} : vector<2x64xi32>
    %cst_13 = arith.constant 0.000000e+00 : f32
    %12 = vector.broadcast %cst_13 : f32 to vector<2x64xf32>
    %c0_14 = arith.constant 0 : index
    %c0_15 = arith.constant 0 : index
    %c0_16 = arith.constant 0 : index
    %13 = vector.load %arg22[%c0_14, %c0_15, %c0_16] : memref<8x2x256xf32, #tpu.memory_space<vmem>>, vector<1x2x256xf32>
    %14 = vector.shape_cast %13 : vector<1x2x256xf32> to vector<2x256xf32>
    %cst_17 = arith.constant 5.000000e-01 : f32
    %15 = vector.broadcast %cst_17 : f32 to vector<2x256xf32>
    %16 = arith.mulf %15, %14 : vector<2x256xf32>
    %17 = math.tanh %16 : vector<2x256xf32>
    %cst_18 = arith.constant 5.000000e-01 : f32
    %18 = vector.broadcast %cst_18 : f32 to vector<2x256xf32>
    %19 = arith.mulf %18, %17 : vector<2x256xf32>
    %cst_19 = arith.constant 5.000000e-01 : f32
    %20 = vector.broadcast %cst_19 : f32 to vector<2x256xf32>
    %21 = arith.addf %19, %20 : vector<2x256xf32>
    %22 = vector.extract_strided_slice %14 {offsets = [0, 128], sizes = [2, 64], strides = [1, 1]} : vector<2x256xf32> to vector<2x64xf32>
    %23 = math.tanh %22 : vector<2x64xf32>
    %24 = vector.extract_strided_slice %21 {offsets = [0, 0], sizes = [2, 64], strides = [1, 1]} : vector<2x256xf32> to vector<2x64xf32>
    %25 = vector.extract_strided_slice %21 {offsets = [0, 64], sizes = [2, 64], strides = [1, 1]} : vector<2x256xf32> to vector<2x64xf32>
    %26 = vector.extract_strided_slice %21 {offsets = [0, 192], sizes = [2, 64], strides = [1, 1]} : vector<2x256xf32> to vector<2x64xf32>
    %27 = arith.mulf %25, %12 : vector<2x64xf32>
    %28 = arith.mulf %24, %23 : vector<2x64xf32>
    %29 = arith.addf %27, %28 : vector<2x64xf32>
    %30 = math.tanh %29 : vector<2x64xf32>
    %31 = arith.mulf %26, %30 : vector<2x64xf32>
    %c32_i32 = arith.constant 32 : i32
    %32 = vector.broadcast %c32_i32 : i32 to vector<2x64xi32>
    %33 = arith.cmpi slt, %11, %32 : vector<2x64xi32>
    %cst_20 = arith.constant 0.000000e+00 : f32
    %34 = vector.broadcast %cst_20 : f32 to vector<2x64xf32>
    %35 = arith.select %33, %31, %34 : vector<2x64xi1>, vector<2x64xf32>
    %c32_i32_21 = arith.constant 32 : i32
    %36 = vector.broadcast %c32_i32_21 : i32 to vector<2x64xi32>
    %37 = arith.cmpi slt, %11, %36 : vector<2x64xi32>
    %cst_22 = arith.constant 0.000000e+00 : f32
    %38 = vector.broadcast %cst_22 : f32 to vector<2x64xf32>
    %39 = arith.select %37, %29, %38 : vector<2x64xi1>, vector<2x64xf32>
    %c1 = arith.constant 1 : index
    %c0_23 = arith.constant 0 : index
    %c0_24 = arith.constant 0 : index
    %40 = vector.load %arg22[%c1, %c0_23, %c0_24] : memref<8x2x256xf32, #tpu.memory_space<vmem>>, vector<1x2x256xf32>
    %41 = vector.shape_cast %40 : vector<1x2x256xf32> to vector<2x256xf32>
    %cst_25 = arith.constant dense<0.000000e+00> : vector<2x256xf32>
    %42 = tpu.matmul %35, %9, %cst_25 {dimension_numbers = #tpu.dot_dimension_numbers<[1], [0], [0], [1], [0, 0, 1, 1], [], []>} : vector<2x64xf32>, vector<64x256xf32>, vector<2x256xf32> -> vector<2x256xf32>
    %43 = arith.addf %42, %41 : vector<2x256xf32>
    %cst_26 = arith.constant 5.000000e-01 : f32
    %44 = vector.broadcast %cst_26 : f32 to vector<2x256xf32>
    %45 = arith.mulf %44, %43 : vector<2x256xf32>
    %46 = math.tanh %45 : vector<2x256xf32>
    %cst_27 = arith.constant 5.000000e-01 : f32
    %47 = vector.broadcast %cst_27 : f32 to vector<2x256xf32>
    %48 = arith.mulf %47, %46 : vector<2x256xf32>
    %cst_28 = arith.constant 5.000000e-01 : f32
    %49 = vector.broadcast %cst_28 : f32 to vector<2x256xf32>
    %50 = arith.addf %48, %49 : vector<2x256xf32>
    %51 = vector.extract_strided_slice %43 {offsets = [0, 128], sizes = [2, 64], strides = [1, 1]} : vector<2x256xf32> to vector<2x64xf32>
    %52 = math.tanh %51 : vector<2x64xf32>
    %53 = vector.extract_strided_slice %50 {offsets = [0, 0], sizes = [2, 64], strides = [1, 1]} : vector<2x256xf32> to vector<2x64xf32>
    %54 = vector.extract_strided_slice %50 {offsets = [0, 64], sizes = [2, 64], strides = [1, 1]} : vector<2x256xf32> to vector<2x64xf32>
    %55 = vector.extract_strided_slice %50 {offsets = [0, 192], sizes = [2, 64], strides = [1, 1]} : vector<2x256xf32> to vector<2x64xf32>
    %56 = arith.mulf %54, %39 : vector<2x64xf32>
    %57 = arith.mulf %53, %52 : vector<2x64xf32>
    %58 = arith.addf %56, %57 : vector<2x64xf32>
    %59 = math.tanh %58 : vector<2x64xf32>
    %60 = arith.mulf %55, %59 : vector<2x64xf32>
    %61 = vector.extract_strided_slice %60 {offsets = [0, 32], sizes = [2, 32], strides = [1, 1]} : vector<2x64xf32> to vector<2x32xf32>
    %c0_29 = arith.constant 0 : index
    %c0_30 = arith.constant 0 : index
    %c0_31 = arith.constant 0 : index
    %62 = vector.load %arg23[%c0_29, %c0_30, %c0_31] : memref<8x2x32xf32, #tpu.memory_space<vmem>>, vector<1x2x32xf32>
    %63 = vector.shape_cast %62 : vector<1x2x32xf32> to vector<2x32xf32>
    %64 = vector.shape_cast %61 : vector<2x32xf32> to vector<1x2x32xf32>
    tpu.vector_store %arg23[%c0_29, %c0_30, %c0_31], %64 {strides = array<i32>} : memref<8x2x32xf32, #tpu.memory_space<vmem>>, vector<1x2x32xf32>,
    %c2 = arith.constant 2 : index
    %c0_32 = arith.constant 0 : index
    %c0_33 = arith.constant 0 : index
    %65 = vector.load %arg22[%c2, %c0_32, %c0_33] : memref<8x2x256xf32, #tpu.memory_space<vmem>>, vector<1x2x256xf32>
    %66 = vector.shape_cast %65 : vector<1x2x256xf32> to vector<2x256xf32>
    %cst_34 = arith.constant dense<0.000000e+00> : vector<2x256xf32>
    %67 = tpu.matmul %60, %9, %cst_34 {dimension_numbers = #tpu.dot_dimension_numbers<[1], [0], [0], [1], [0, 0, 1, 1], [], []>} : vector<2x64xf32>, vector<64x256xf32>, vector<2x256xf32> -> vector<2x256xf32>
    %68 = arith.addf %67, %66 : vector<2x256xf32>
    %cst_35 = arith.constant 5.000000e-01 : f32
    %69 = vector.broadcast %cst_35 : f32 to vector<2x256xf32>
    %70 = arith.mulf %69, %68 : vector<2x256xf32>
    %71 = math.tanh %70 : vector<2x256xf32>
    %cst_36 = arith.constant 5.000000e-01 : f32
    %72 = vector.broadcast %cst_36 : f32 to vector<2x256xf32>
    %73 = arith.mulf %72, %71 : vector<2x256xf32>
    %cst_37 = arith.constant 5.000000e-01 : f32
    %74 = vector.broadcast %cst_37 : f32 to vector<2x256xf32>
    %75 = arith.addf %73, %74 : vector<2x256xf32>
    %76 = vector.extract_strided_slice %68 {offsets = [0, 128], sizes = [2, 64], strides = [1, 1]} : vector<2x256xf32> to vector<2x64xf32>
    %77 = math.tanh %76 : vector<2x64xf32>
    %78 = vector.extract_strided_slice %75 {offsets = [0, 0], sizes = [2, 64], strides = [1, 1]} : vector<2x256xf32> to vector<2x64xf32>
    %79 = vector.extract_strided_slice %75 {offsets = [0, 64], sizes = [2, 64], strides = [1, 1]} : vector<2x256xf32> to vector<2x64xf32>
    %80 = vector.extract_strided_slice %75 {offsets = [0, 192], sizes = [2, 64], strides = [1, 1]} : vector<2x256xf32> to vector<2x64xf32>
    %81 = arith.mulf %79, %58 : vector<2x64xf32>
    %82 = arith.mulf %78, %77 : vector<2x64xf32>
    %83 = arith.addf %81, %82 : vector<2x64xf32>
    %84 = math.tanh %83 : vector<2x64xf32>
    %85 = arith.mulf %80, %84 : vector<2x64xf32>
    %86 = vector.extract_strided_slice %85 {offsets = [0, 32], sizes = [2, 32], strides = [1, 1]} : vector<2x64xf32> to vector<2x32xf32>
    %c1_38 = arith.constant 1 : index
    %c0_39 = arith.constant 0 : index
    %c0_40 = arith.constant 0 : index
    %87 = vector.load %arg23[%c1_38, %c0_39, %c0_40] : memref<8x2x32xf32, #tpu.memory_space<vmem>>, vector<1x2x32xf32>
    %88 = vector.shape_cast %87 : vector<1x2x32xf32> to vector<2x32xf32>
    %89 = vector.shape_cast %86 : vector<2x32xf32> to vector<1x2x32xf32>
    tpu.vector_store %arg23[%c1_38, %c0_39, %c0_40], %89 {strides = array<i32>} : memref<8x2x32xf32, #tpu.memory_space<vmem>>, vector<1x2x32xf32>,
    %c3 = arith.constant 3 : index
    %c0_41 = arith.constant 0 : index
    %c0_42 = arith.constant 0 : index
    %90 = vector.load %arg22[%c3, %c0_41, %c0_42] : memref<8x2x256xf32, #tpu.memory_space<vmem>>, vector<1x2x256xf32>
    %91 = vector.shape_cast %90 : vector<1x2x256xf32> to vector<2x256xf32>
    %cst_43 = arith.constant dense<0.000000e+00> : vector<2x256xf32>
    %92 = tpu.matmul %85, %9, %cst_43 {dimension_numbers = #tpu.dot_dimension_numbers<[1], [0], [0], [1], [0, 0, 1, 1], [], []>} : vector<2x64xf32>, vector<64x256xf32>, vector<2x256xf32> -> vector<2x256xf32>
    %93 = arith.addf %92, %91 : vector<2x256xf32>
    %cst_44 = arith.constant 5.000000e-01 : f32
    %94 = vector.broadcast %cst_44 : f32 to vector<2x256xf32>
    %95 = arith.mulf %94, %93 : vector<2x256xf32>
    %96 = math.tanh %95 : vector<2x256xf32>
    %cst_45 = arith.constant 5.000000e-01 : f32
    %97 = vector.broadcast %cst_45 : f32 to vector<2x256xf32>
    %98 = arith.mulf %97, %96 : vector<2x256xf32>
    %cst_46 = arith.constant 5.000000e-01 : f32
    %99 = vector.broadcast %cst_46 : f32 to vector<2x256xf32>
    %100 = arith.addf %98, %99 : vector<2x256xf32>
    %101 = vector.extract_strided_slice %93 {offsets = [0, 128], sizes = [2, 64], strides = [1, 1]} : vector<2x256xf32> to vector<2x64xf32>
    %102 = math.tanh %101 : vector<2x64xf32>
    %103 = vector.extract_strided_slice %100 {offsets = [0, 0], sizes = [2, 64], strides = [1, 1]} : vector<2x256xf32> to vector<2x64xf32>
    %104 = vector.extract_strided_slice %100 {offsets = [0, 64], sizes = [2, 64], strides = [1, 1]} : vector<2x256xf32> to vector<2x64xf32>
    %105 = vector.extract_strided_slice %100 {offsets = [0, 192], sizes = [2, 64], strides = [1, 1]} : vector<2x256xf32> to vector<2x64xf32>
    %106 = arith.mulf %104, %83 : vector<2x64xf32>
    %107 = arith.mulf %103, %102 : vector<2x64xf32>
    %108 = arith.addf %106, %107 : vector<2x64xf32>
    %109 = math.tanh %108 : vector<2x64xf32>
    %110 = arith.mulf %105, %109 : vector<2x64xf32>
    %111 = vector.extract_strided_slice %110 {offsets = [0, 32], sizes = [2, 32], strides = [1, 1]} : vector<2x64xf32> to vector<2x32xf32>
    %c2_47 = arith.constant 2 : index
    %c0_48 = arith.constant 0 : index
    %c0_49 = arith.constant 0 : index
    %112 = vector.load %arg23[%c2_47, %c0_48, %c0_49] : memref<8x2x32xf32, #tpu.memory_space<vmem>>, vector<1x2x32xf32>
    %113 = vector.shape_cast %112 : vector<1x2x32xf32> to vector<2x32xf32>
    %114 = vector.shape_cast %111 : vector<2x32xf32> to vector<1x2x32xf32>
    tpu.vector_store %arg23[%c2_47, %c0_48, %c0_49], %114 {strides = array<i32>} : memref<8x2x32xf32, #tpu.memory_space<vmem>>, vector<1x2x32xf32>,
    %c4 = arith.constant 4 : index
    %c0_50 = arith.constant 0 : index
    %c0_51 = arith.constant 0 : index
    %115 = vector.load %arg22[%c4, %c0_50, %c0_51] : memref<8x2x256xf32, #tpu.memory_space<vmem>>, vector<1x2x256xf32>
    %116 = vector.shape_cast %115 : vector<1x2x256xf32> to vector<2x256xf32>
    %cst_52 = arith.constant dense<0.000000e+00> : vector<2x256xf32>
    %117 = tpu.matmul %110, %9, %cst_52 {dimension_numbers = #tpu.dot_dimension_numbers<[1], [0], [0], [1], [0, 0, 1, 1], [], []>} : vector<2x64xf32>, vector<64x256xf32>, vector<2x256xf32> -> vector<2x256xf32>
    %118 = arith.addf %117, %116 : vector<2x256xf32>
    %cst_53 = arith.constant 5.000000e-01 : f32
    %119 = vector.broadcast %cst_53 : f32 to vector<2x256xf32>
    %120 = arith.mulf %119, %118 : vector<2x256xf32>
    %121 = math.tanh %120 : vector<2x256xf32>
    %cst_54 = arith.constant 5.000000e-01 : f32
    %122 = vector.broadcast %cst_54 : f32 to vector<2x256xf32>
    %123 = arith.mulf %122, %121 : vector<2x256xf32>
    %cst_55 = arith.constant 5.000000e-01 : f32
    %124 = vector.broadcast %cst_55 : f32 to vector<2x256xf32>
    %125 = arith.addf %123, %124 : vector<2x256xf32>
    %126 = vector.extract_strided_slice %118 {offsets = [0, 128], sizes = [2, 64], strides = [1, 1]} : vector<2x256xf32> to vector<2x64xf32>
    %127 = math.tanh %126 : vector<2x64xf32>
    %128 = vector.extract_strided_slice %125 {offsets = [0, 0], sizes = [2, 64], strides = [1, 1]} : vector<2x256xf32> to vector<2x64xf32>
    %129 = vector.extract_strided_slice %125 {offsets = [0, 64], sizes = [2, 64], strides = [1, 1]} : vector<2x256xf32> to vector<2x64xf32>
    %130 = vector.extract_strided_slice %125 {offsets = [0, 192], sizes = [2, 64], strides = [1, 1]} : vector<2x256xf32> to vector<2x64xf32>
    %131 = arith.mulf %129, %108 : vector<2x64xf32>
    %132 = arith.mulf %128, %127 : vector<2x64xf32>
    %133 = arith.addf %131, %132 : vector<2x64xf32>
    %134 = math.tanh %133 : vector<2x64xf32>
    %135 = arith.mulf %130, %134 : vector<2x64xf32>
    %136 = vector.extract_strided_slice %135 {offsets = [0, 32], sizes = [2, 32], strides = [1, 1]} : vector<2x64xf32> to vector<2x32xf32>
    %c3_56 = arith.constant 3 : index
    %c0_57 = arith.constant 0 : index
    %c0_58 = arith.constant 0 : index
    %137 = vector.load %arg23[%c3_56, %c0_57, %c0_58] : memref<8x2x32xf32, #tpu.memory_space<vmem>>, vector<1x2x32xf32>
    %138 = vector.shape_cast %137 : vector<1x2x32xf32> to vector<2x32xf32>
    %139 = vector.shape_cast %136 : vector<2x32xf32> to vector<1x2x32xf32>
    tpu.vector_store %arg23[%c3_56, %c0_57, %c0_58], %139 {strides = array<i32>} : memref<8x2x32xf32, #tpu.memory_space<vmem>>, vector<1x2x32xf32>,
    %c5 = arith.constant 5 : index
    %c0_59 = arith.constant 0 : index
    %c0_60 = arith.constant 0 : index
    %140 = vector.load %arg22[%c5, %c0_59, %c0_60] : memref<8x2x256xf32, #tpu.memory_space<vmem>>, vector<1x2x256xf32>
    %141 = vector.shape_cast %140 : vector<1x2x256xf32> to vector<2x256xf32>
    %cst_61 = arith.constant dense<0.000000e+00> : vector<2x256xf32>
    %142 = tpu.matmul %135, %9, %cst_61 {dimension_numbers = #tpu.dot_dimension_numbers<[1], [0], [0], [1], [0, 0, 1, 1], [], []>} : vector<2x64xf32>, vector<64x256xf32>, vector<2x256xf32> -> vector<2x256xf32>
    %143 = arith.addf %142, %141 : vector<2x256xf32>
    %cst_62 = arith.constant 5.000000e-01 : f32
    %144 = vector.broadcast %cst_62 : f32 to vector<2x256xf32>
    %145 = arith.mulf %144, %143 : vector<2x256xf32>
    %146 = math.tanh %145 : vector<2x256xf32>
    %cst_63 = arith.constant 5.000000e-01 : f32
    %147 = vector.broadcast %cst_63 : f32 to vector<2x256xf32>
    %148 = arith.mulf %147, %146 : vector<2x256xf32>
    %cst_64 = arith.constant 5.000000e-01 : f32
    %149 = vector.broadcast %cst_64 : f32 to vector<2x256xf32>
    %150 = arith.addf %148, %149 : vector<2x256xf32>
    %151 = vector.extract_strided_slice %143 {offsets = [0, 128], sizes = [2, 64], strides = [1, 1]} : vector<2x256xf32> to vector<2x64xf32>
    %152 = math.tanh %151 : vector<2x64xf32>
    %153 = vector.extract_strided_slice %150 {offsets = [0, 0], sizes = [2, 64], strides = [1, 1]} : vector<2x256xf32> to vector<2x64xf32>
    %154 = vector.extract_strided_slice %150 {offsets = [0, 64], sizes = [2, 64], strides = [1, 1]} : vector<2x256xf32> to vector<2x64xf32>
    %155 = vector.extract_strided_slice %150 {offsets = [0, 192], sizes = [2, 64], strides = [1, 1]} : vector<2x256xf32> to vector<2x64xf32>
    %156 = arith.mulf %154, %133 : vector<2x64xf32>
    %157 = arith.mulf %153, %152 : vector<2x64xf32>
    %158 = arith.addf %156, %157 : vector<2x64xf32>
    %159 = math.tanh %158 : vector<2x64xf32>
    %160 = arith.mulf %155, %159 : vector<2x64xf32>
    %161 = vector.extract_strided_slice %160 {offsets = [0, 32], sizes = [2, 32], strides = [1, 1]} : vector<2x64xf32> to vector<2x32xf32>
    %c4_65 = arith.constant 4 : index
    %c0_66 = arith.constant 0 : index
    %c0_67 = arith.constant 0 : index
    %162 = vector.load %arg23[%c4_65, %c0_66, %c0_67] : memref<8x2x32xf32, #tpu.memory_space<vmem>>, vector<1x2x32xf32>
    %163 = vector.shape_cast %162 : vector<1x2x32xf32> to vector<2x32xf32>
    %164 = vector.shape_cast %161 : vector<2x32xf32> to vector<1x2x32xf32>
    tpu.vector_store %arg23[%c4_65, %c0_66, %c0_67], %164 {strides = array<i32>} : memref<8x2x32xf32, #tpu.memory_space<vmem>>, vector<1x2x32xf32>,
    %c6 = arith.constant 6 : index
    %c0_68 = arith.constant 0 : index
    %c0_69 = arith.constant 0 : index
    %165 = vector.load %arg22[%c6, %c0_68, %c0_69] : memref<8x2x256xf32, #tpu.memory_space<vmem>>, vector<1x2x256xf32>
    %166 = vector.shape_cast %165 : vector<1x2x256xf32> to vector<2x256xf32>
    %cst_70 = arith.constant dense<0.000000e+00> : vector<2x256xf32>
    %167 = tpu.matmul %160, %9, %cst_70 {dimension_numbers = #tpu.dot_dimension_numbers<[1], [0], [0], [1], [0, 0, 1, 1], [], []>} : vector<2x64xf32>, vector<64x256xf32>, vector<2x256xf32> -> vector<2x256xf32>
    %168 = arith.addf %167, %166 : vector<2x256xf32>
    %cst_71 = arith.constant 5.000000e-01 : f32
    %169 = vector.broadcast %cst_71 : f32 to vector<2x256xf32>
    %170 = arith.mulf %169, %168 : vector<2x256xf32>
    %171 = math.tanh %170 : vector<2x256xf32>
    %cst_72 = arith.constant 5.000000e-01 : f32
    %172 = vector.broadcast %cst_72 : f32 to vector<2x256xf32>
    %173 = arith.mulf %172, %171 : vector<2x256xf32>
    %cst_73 = arith.constant 5.000000e-01 : f32
    %174 = vector.broadcast %cst_73 : f32 to vector<2x256xf32>
    %175 = arith.addf %173, %174 : vector<2x256xf32>
    %176 = vector.extract_strided_slice %168 {offsets = [0, 128], sizes = [2, 64], strides = [1, 1]} : vector<2x256xf32> to vector<2x64xf32>
    %177 = math.tanh %176 : vector<2x64xf32>
    %178 = vector.extract_strided_slice %175 {offsets = [0, 0], sizes = [2, 64], strides = [1, 1]} : vector<2x256xf32> to vector<2x64xf32>
    %179 = vector.extract_strided_slice %175 {offsets = [0, 64], sizes = [2, 64], strides = [1, 1]} : vector<2x256xf32> to vector<2x64xf32>
    %180 = vector.extract_strided_slice %175 {offsets = [0, 192], sizes = [2, 64], strides = [1, 1]} : vector<2x256xf32> to vector<2x64xf32>
    %181 = arith.mulf %179, %158 : vector<2x64xf32>
    %182 = arith.mulf %178, %177 : vector<2x64xf32>
    %183 = arith.addf %181, %182 : vector<2x64xf32>
    %184 = math.tanh %183 : vector<2x64xf32>
    %185 = arith.mulf %180, %184 : vector<2x64xf32>
    %186 = vector.extract_strided_slice %185 {offsets = [0, 32], sizes = [2, 32], strides = [1, 1]} : vector<2x64xf32> to vector<2x32xf32>
    %c5_74 = arith.constant 5 : index
    %c0_75 = arith.constant 0 : index
    %c0_76 = arith.constant 0 : index
    %187 = vector.load %arg23[%c5_74, %c0_75, %c0_76] : memref<8x2x32xf32, #tpu.memory_space<vmem>>, vector<1x2x32xf32>
    %188 = vector.shape_cast %187 : vector<1x2x32xf32> to vector<2x32xf32>
    %189 = vector.shape_cast %186 : vector<2x32xf32> to vector<1x2x32xf32>
    tpu.vector_store %arg23[%c5_74, %c0_75, %c0_76], %189 {strides = array<i32>} : memref<8x2x32xf32, #tpu.memory_space<vmem>>, vector<1x2x32xf32>,
    %c7 = arith.constant 7 : index
    %c0_77 = arith.constant 0 : index
    %c0_78 = arith.constant 0 : index
    %190 = vector.load %arg22[%c7, %c0_77, %c0_78] : memref<8x2x256xf32, #tpu.memory_space<vmem>>, vector<1x2x256xf32>
    %191 = vector.shape_cast %190 : vector<1x2x256xf32> to vector<2x256xf32>
    %cst_79 = arith.constant dense<0.000000e+00> : vector<2x256xf32>
    %192 = tpu.matmul %185, %9, %cst_79 {dimension_numbers = #tpu.dot_dimension_numbers<[1], [0], [0], [1], [0, 0, 1, 1], [], []>} : vector<2x64xf32>, vector<64x256xf32>, vector<2x256xf32> -> vector<2x256xf32>
    %193 = arith.addf %192, %191 : vector<2x256xf32>
    %cst_80 = arith.constant 5.000000e-01 : f32
    %194 = vector.broadcast %cst_80 : f32 to vector<2x256xf32>
    %195 = arith.mulf %194, %193 : vector<2x256xf32>
    %196 = math.tanh %195 : vector<2x256xf32>
    %cst_81 = arith.constant 5.000000e-01 : f32
    %197 = vector.broadcast %cst_81 : f32 to vector<2x256xf32>
    %198 = arith.mulf %197, %196 : vector<2x256xf32>
    %cst_82 = arith.constant 5.000000e-01 : f32
    %199 = vector.broadcast %cst_82 : f32 to vector<2x256xf32>
    %200 = arith.addf %198, %199 : vector<2x256xf32>
    %201 = vector.extract_strided_slice %193 {offsets = [0, 128], sizes = [2, 64], strides = [1, 1]} : vector<2x256xf32> to vector<2x64xf32>
    %202 = math.tanh %201 : vector<2x64xf32>
    %203 = vector.extract_strided_slice %200 {offsets = [0, 0], sizes = [2, 64], strides = [1, 1]} : vector<2x256xf32> to vector<2x64xf32>
    %204 = vector.extract_strided_slice %200 {offsets = [0, 64], sizes = [2, 64], strides = [1, 1]} : vector<2x256xf32> to vector<2x64xf32>
    %205 = vector.extract_strided_slice %200 {offsets = [0, 192], sizes = [2, 64], strides = [1, 1]} : vector<2x256xf32> to vector<2x64xf32>
    %206 = arith.mulf %204, %183 : vector<2x64xf32>
    %207 = arith.mulf %203, %202 : vector<2x64xf32>
    %208 = arith.addf %206, %207 : vector<2x64xf32>
    %209 = math.tanh %208 : vector<2x64xf32>
    %210 = arith.mulf %205, %209 : vector<2x64xf32>
    %211 = vector.extract_strided_slice %210 {offsets = [0, 32], sizes = [2, 32], strides = [1, 1]} : vector<2x64xf32> to vector<2x32xf32>
    %c6_83 = arith.constant 6 : index
    %c0_84 = arith.constant 0 : index
    %c0_85 = arith.constant 0 : index
    %212 = vector.load %arg23[%c6_83, %c0_84, %c0_85] : memref<8x2x32xf32, #tpu.memory_space<vmem>>, vector<1x2x32xf32>
    %213 = vector.shape_cast %212 : vector<1x2x32xf32> to vector<2x32xf32>
    %214 = vector.shape_cast %211 : vector<2x32xf32> to vector<1x2x32xf32>
    tpu.vector_store %arg23[%c6_83, %c0_84, %c0_85], %214 {strides = array<i32>} : memref<8x2x32xf32, #tpu.memory_space<vmem>>, vector<1x2x32xf32>,
    %cst_86 = arith.constant dense<0.000000e+00> : vector<2x256xf32>
    %215 = tpu.matmul %210, %9, %cst_86 {dimension_numbers = #tpu.dot_dimension_numbers<[1], [0], [0], [1], [0, 0, 1, 1], [], []>} : vector<2x64xf32>, vector<64x256xf32>, vector<2x256xf32> -> vector<2x256xf32>
    %216 = vector.broadcast %10 : vector<1x256xf32> to vector<2x256xf32>
    %217 = arith.addf %215, %216 : vector<2x256xf32>
    %cst_87 = arith.constant 5.000000e-01 : f32
    %218 = vector.broadcast %cst_87 : f32 to vector<2x256xf32>
    %219 = arith.mulf %218, %217 : vector<2x256xf32>
    %220 = math.tanh %219 : vector<2x256xf32>
    %cst_88 = arith.constant 5.000000e-01 : f32
    %221 = vector.broadcast %cst_88 : f32 to vector<2x256xf32>
    %222 = arith.mulf %221, %220 : vector<2x256xf32>
    %cst_89 = arith.constant 5.000000e-01 : f32
    %223 = vector.broadcast %cst_89 : f32 to vector<2x256xf32>
    %224 = arith.addf %222, %223 : vector<2x256xf32>
    %225 = vector.extract_strided_slice %217 {offsets = [0, 128], sizes = [2, 64], strides = [1, 1]} : vector<2x256xf32> to vector<2x64xf32>
    %226 = math.tanh %225 : vector<2x64xf32>
    %227 = vector.extract_strided_slice %224 {offsets = [0, 0], sizes = [2, 64], strides = [1, 1]} : vector<2x256xf32> to vector<2x64xf32>
    %228 = vector.extract_strided_slice %224 {offsets = [0, 64], sizes = [2, 64], strides = [1, 1]} : vector<2x256xf32> to vector<2x64xf32>
    %229 = vector.extract_strided_slice %224 {offsets = [0, 192], sizes = [2, 64], strides = [1, 1]} : vector<2x256xf32> to vector<2x64xf32>
    %230 = arith.mulf %228, %208 : vector<2x64xf32>
    %231 = arith.mulf %227, %226 : vector<2x64xf32>
    %232 = arith.addf %230, %231 : vector<2x64xf32>
    %233 = math.tanh %232 : vector<2x64xf32>
    %234 = arith.mulf %229, %233 : vector<2x64xf32>
    %235 = vector.extract_strided_slice %234 {offsets = [0, 32], sizes = [2, 32], strides = [1, 1]} : vector<2x64xf32> to vector<2x32xf32>
    %c7_90 = arith.constant 7 : index
    %c0_91 = arith.constant 0 : index
    %c0_92 = arith.constant 0 : index
    %236 = vector.load %arg23[%c7_90, %c0_91, %c0_92] : memref<8x2x32xf32, #tpu.memory_space<vmem>>, vector<1x2x32xf32>
    %237 = vector.shape_cast %236 : vector<1x2x32xf32> to vector<2x32xf32>
    %238 = vector.shape_cast %235 : vector<2x32xf32> to vector<1x2x32xf32>
    tpu.vector_store %arg23[%c7_90, %c0_91, %c0_92], %238 {strides = array<i32>} : memref<8x2x32xf32, #tpu.memory_space<vmem>>, vector<1x2x32xf32>,
    %239 = vector.extract_strided_slice %234 {offsets = [0, 32], sizes = [2, 32], strides = [1, 1]} : vector<2x64xf32> to vector<2x32xf32>
    %c0_93 = arith.constant 0 : index
    %c0_94 = arith.constant 0 : index
    %c0_95 = arith.constant 0 : index
    %240 = vector.load %arg23[%c0_93, %c0_94, %c0_95] : memref<8x2x32xf32, #tpu.memory_space<vmem>>, vector<8x2x32xf32>
    %241 = vector.shape_cast %240 : vector<8x2x32xf32> to vector<16x32xf32>
    %c0_96 = arith.constant 0 : index
    %c0_97 = arith.constant 0 : index
    %242 = vector.load %arg5[%c0_96, %c0_97] : memref<32x32xf32, #tpu.memory_space<vmem>>, vector<32x32xf32>
    %cst_98 = arith.constant dense<0.000000e+00> : vector<16x32xf32>
    %243 = tpu.matmul %241, %242, %cst_98 {dimension_numbers = #tpu.dot_dimension_numbers<[1], [0], [0], [1], [0, 0, 1, 1], [], []>} : vector<16x32xf32>, vector<32x32xf32>, vector<16x32xf32> -> vector<16x32xf32>
    %c0_99 = arith.constant 0 : index
    %c0_100 = arith.constant 0 : index
    %244 = vector.load %arg8[%c0_99, %c0_100] : memref<1x32xf32, #tpu.memory_space<vmem>>, vector<1x32xf32>
    %245 = vector.broadcast %244 : vector<1x32xf32> to vector<16x32xf32>
    %246 = arith.addf %243, %245 : vector<16x32xf32>
    %247 = vector.shape_cast %246 : vector<16x32xf32> to vector<8x2x32xf32>
    %c0_101 = arith.constant 0 : index
    %c0_102 = arith.constant 0 : index
    %248 = vector.load %arg6[%c0_101, %c0_102] : memref<32x32xf32, #tpu.memory_space<vmem>>, vector<32x32xf32>
    %cst_103 = arith.constant dense<0.000000e+00> : vector<16x32xf32>
    %249 = tpu.matmul %241, %248, %cst_103 {dimension_numbers = #tpu.dot_dimension_numbers<[1], [0], [0], [1], [0, 0, 1, 1], [], []>} : vector<16x32xf32>, vector<32x32xf32>, vector<16x32xf32> -> vector<16x32xf32>
    %c0_104 = arith.constant 0 : index
    %c0_105 = arith.constant 0 : index
    %250 = vector.load %arg9[%c0_104, %c0_105] : memref<1x32xf32, #tpu.memory_space<vmem>>, vector<1x32xf32>
    %251 = vector.broadcast %250 : vector<1x32xf32> to vector<16x32xf32>
    %252 = arith.addf %249, %251 : vector<16x32xf32>
    %253 = vector.shape_cast %252 : vector<16x32xf32> to vector<8x2x32xf32>
    %c0_106 = arith.constant 0 : index
    %c0_107 = arith.constant 0 : index
    %254 = vector.load %arg4[%c0_106, %c0_107] : memref<32x32xf32, #tpu.memory_space<vmem>>, vector<32x32xf32>
    %cst_108 = arith.constant dense<0.000000e+00> : vector<2x32xf32>
    %255 = tpu.matmul %239, %254, %cst_108 {dimension_numbers = #tpu.dot_dimension_numbers<[1], [0], [0], [1], [0, 0, 1, 1], [], []>} : vector<2x32xf32>, vector<32x32xf32>, vector<2x32xf32> -> vector<2x32xf32>
    %c0_109 = arith.constant 0 : index
    %c0_110 = arith.constant 0 : index
    %256 = vector.load %arg7[%c0_109, %c0_110] : memref<1x32xf32, #tpu.memory_space<vmem>>, vector<1x32xf32>
    %257 = vector.broadcast %256 : vector<1x32xf32> to vector<2x32xf32>
    %258 = arith.addf %255, %257 : vector<2x32xf32>
    %cst_111 = arith.constant 0.353553385 : f32
    %259 = vector.broadcast %cst_111 : f32 to vector<2x32xf32>
    %260 = arith.mulf %258, %259 : vector<2x32xf32>
    %261 = vector.shape_cast %260 : vector<2x32xf32> to vector<1x2x32xf32>
    %262 = vector.broadcast %261 : vector<1x2x32xf32> to vector<8x2x32xf32>
    %263 = arith.mulf %262, %247 : vector<8x2x32xf32>
    %264 = vector.shape_cast %263 : vector<8x2x32xf32> to vector<16x32xf32>
    %c0_112 = arith.constant 0 : index
    %c0_113 = arith.constant 0 : index
    %265 = vector.load %arg20[%c0_112, %c0_113] : memref<32x32xf32, #tpu.memory_space<vmem>>, vector<32x32xf32>
    %cst_114 = arith.constant dense<0.000000e+00> : vector<16x32xf32>
    %266 = tpu.matmul %264, %265, %cst_114 {dimension_numbers = #tpu.dot_dimension_numbers<[1], [0], [0], [1], [0, 0, 1, 1], [], []>} : vector<16x32xf32>, vector<32x32xf32>, vector<16x32xf32> -> vector<16x32xf32>
    %267 = vector.shape_cast %266 : vector<16x32xf32> to vector<8x2x32xf32>
    %cst_115 = arith.constant dense<0xFF800000> : vector<2x32xf32>
    %268 = vector.multi_reduction <maximumf>, %267, %cst_115 [0] : vector<8x2x32xf32> to vector<2x32xf32>
    %269 = vector.shape_cast %268 : vector<2x32xf32> to vector<1x2x32xf32>
    %270 = vector.broadcast %269 : vector<1x2x32xf32> to vector<8x2x32xf32>
    %271 = arith.subf %267, %270 : vector<8x2x32xf32>
    %272 = math.exp %271 : vector<8x2x32xf32>
    %cst_116 = arith.constant dense<0.000000e+00> : vector<2x32xf32>
    %273 = vector.multi_reduction <add>, %272, %cst_116 [0] : vector<8x2x32xf32> to vector<2x32xf32>
    %274 = vector.shape_cast %273 : vector<2x32xf32> to vector<1x2x32xf32>
    %275 = tpu.reciprocal %274 {approx = true} : vector<1x2x32xf32> -> vector<1x2x32xf32>
    %276 = vector.broadcast %275 : vector<1x2x32xf32> to vector<8x2x32xf32>
    %277 = arith.mulf %272, %276 : vector<8x2x32xf32>
    %278 = arith.mulf %277, %253 : vector<8x2x32xf32>
    %cst_117 = arith.constant dense<0.000000e+00> : vector<2x32xf32>
    %279 = vector.multi_reduction <add>, %278, %cst_117 [0] : vector<8x2x32xf32> to vector<2x32xf32>
    %c0_118 = arith.constant 0 : index
    %c0_119 = arith.constant 0 : index
    %280 = vector.load %arg10[%c0_118, %c0_119] : memref<32x32xf32, #tpu.memory_space<vmem>>, vector<32x32xf32>
    %cst_120 = arith.constant dense<0.000000e+00> : vector<2x32xf32>
    %281 = tpu.matmul %279, %280, %cst_120 {dimension_numbers = #tpu.dot_dimension_numbers<[1], [0], [0], [1], [0, 0, 1, 1], [], []>} : vector<2x32xf32>, vector<32x32xf32>, vector<2x32xf32> -> vector<2x32xf32>
    %c0_121 = arith.constant 0 : index
    %c0_122 = arith.constant 0 : index
    %282 = vector.load %arg11[%c0_121, %c0_122] : memref<1x32xf32, #tpu.memory_space<vmem>>, vector<1x32xf32>
    %283 = vector.broadcast %282 : vector<1x32xf32> to vector<2x32xf32>
    %284 = arith.addf %281, %283 : vector<2x32xf32>
    %285 = arith.addf %284, %239 : vector<2x32xf32>
    %cst_123 = arith.constant dense<0.000000e+00> : vector<2xf32>
    %286 = vector.multi_reduction <add>, %285, %cst_123 [1] : vector<2x32xf32> to vector<2xf32>
    %287 = vector.shape_cast %286 : vector<2xf32> to vector<2x1xf32>
    %cst_124 = arith.constant 3.200000e+01 : f32
    %288 = vector.broadcast %cst_124 : f32 to vector<2x1xf32>
    %289 = arith.divf %287, %288 : vector<2x1xf32>
    %290 = vector.broadcast %289 : vector<2x1xf32> to vector<2x32xf32>
    %291 = arith.subf %285, %290 : vector<2x32xf32>
    %292 = arith.mulf %291, %291 : vector<2x32xf32>
    %cst_125 = arith.constant dense<0.000000e+00> : vector<2xf32>
    %293 = vector.multi_reduction <add>, %292, %cst_125 [1] : vector<2x32xf32> to vector<2xf32>
    %294 = vector.shape_cast %293 : vector<2xf32> to vector<2x1xf32>
    %cst_126 = arith.constant 3.200000e+01 : f32
    %295 = vector.broadcast %cst_126 : f32 to vector<2x1xf32>
    %296 = arith.divf %294, %295 : vector<2x1xf32>
    %297 = vector.broadcast %289 : vector<2x1xf32> to vector<2x32xf32>
    %298 = arith.subf %285, %297 : vector<2x32xf32>
    %cst_127 = arith.constant 9.99999974E-6 : f32
    %299 = vector.broadcast %cst_127 : f32 to vector<2x1xf32>
    %300 = arith.addf %296, %299 : vector<2x1xf32>
    %301 = math.rsqrt %300 : vector<2x1xf32>
    %302 = vector.broadcast %301 : vector<2x1xf32> to vector<2x32xf32>
    %303 = arith.mulf %298, %302 : vector<2x32xf32>
    %c0_128 = arith.constant 0 : index
    %c0_129 = arith.constant 0 : index
    %304 = vector.load %arg12[%c0_128, %c0_129] : memref<1x32xf32, #tpu.memory_space<vmem>>, vector<1x32xf32>
    %305 = vector.broadcast %304 : vector<1x32xf32> to vector<2x32xf32>
    %306 = arith.mulf %303, %305 : vector<2x32xf32>
    %c0_130 = arith.constant 0 : index
    %c0_131 = arith.constant 0 : index
    %307 = vector.load %arg13[%c0_130, %c0_131] : memref<1x32xf32, #tpu.memory_space<vmem>>, vector<1x32xf32>
    %308 = vector.broadcast %307 : vector<1x32xf32> to vector<2x32xf32>
    %309 = arith.addf %306, %308 : vector<2x32xf32>
    %c0_132 = arith.constant 0 : index
    %c0_133 = arith.constant 0 : index
    %310 = vector.load %arg14[%c0_132, %c0_133] : memref<32x16xf32, #tpu.memory_space<vmem>>, vector<32x16xf32>
    %cst_134 = arith.constant dense<0.000000e+00> : vector<2x16xf32>
    %311 = tpu.matmul %309, %310, %cst_134 {dimension_numbers = #tpu.dot_dimension_numbers<[1], [0], [0], [1], [0, 0, 1, 1], [], []>} : vector<2x32xf32>, vector<32x16xf32>, vector<2x16xf32> -> vector<2x16xf32>
    %c0_135 = arith.constant 0 : index
    %c0_136 = arith.constant 0 : index
    %312 = vector.load %arg15[%c0_135, %c0_136] : memref<1x16xf32, #tpu.memory_space<vmem>>, vector<1x16xf32>
    %313 = vector.broadcast %312 : vector<1x16xf32> to vector<2x16xf32>
    %314 = arith.addf %311, %313 : vector<2x16xf32>
    %cst_137 = arith.constant 0.000000e+00 : f32
    %315 = vector.broadcast %cst_137 : f32 to vector<2x16xf32>
    %316 = arith.maximumf %314, %315 : vector<2x16xf32>
    %c0_138 = arith.constant 0 : index
    %c0_139 = arith.constant 0 : index
    %317 = vector.load %arg16[%c0_138, %c0_139] : memref<16x8xf32, #tpu.memory_space<vmem>>, vector<16x8xf32>
    %cst_140 = arith.constant dense<0.000000e+00> : vector<2x8xf32>
    %318 = tpu.matmul %316, %317, %cst_140 {dimension_numbers = #tpu.dot_dimension_numbers<[1], [0], [0], [1], [0, 0, 1, 1], [], []>} : vector<2x16xf32>, vector<16x8xf32>, vector<2x8xf32> -> vector<2x8xf32>
    %c0_141 = arith.constant 0 : index
    %c0_142 = arith.constant 0 : index
    %319 = vector.load %arg17[%c0_141, %c0_142] : memref<1x8xf32, #tpu.memory_space<vmem>>, vector<1x8xf32>
    %320 = vector.broadcast %319 : vector<1x8xf32> to vector<2x8xf32>
    %321 = arith.addf %318, %320 : vector<2x8xf32>
    %cst_143 = arith.constant 0.000000e+00 : f32
    %322 = vector.broadcast %cst_143 : f32 to vector<2x8xf32>
    %323 = arith.maximumf %321, %322 : vector<2x8xf32>
    %c0_144 = arith.constant 0 : index
    %c0_145 = arith.constant 0 : index
    %324 = vector.load %arg18[%c0_144, %c0_145] : memref<8x1xf32, #tpu.memory_space<vmem>>, vector<8x1xf32>
    %cst_146 = arith.constant dense<0.000000e+00> : vector<2x1xf32>
    %325 = tpu.matmul %323, %324, %cst_146 {dimension_numbers = #tpu.dot_dimension_numbers<[1], [0], [0], [1], [0, 0, 1, 1], [], []>} : vector<2x8xf32>, vector<8x1xf32>, vector<2x1xf32> -> vector<2x1xf32>
    %c0_147 = arith.constant 0 : index
    %c0_148 = arith.constant 0 : index
    %326 = vector.load %arg19[%c0_147, %c0_148] : memref<1x1xf32, #tpu.memory_space<vmem>>, vector<1x1xf32>
    %327 = vector.broadcast %326 : vector<1x1xf32> to vector<2x1xf32>
    %328 = arith.addf %325, %327 : vector<2x1xf32>
    %c0_149 = arith.constant 0 : index
    %c0_150 = arith.constant 0 : index
    %329 = vector.load %arg21[%c0_149, %c0_150] : memref<2x1xf32, #tpu.memory_space<vmem>>, vector<2x1xf32>
    tpu.vector_store %arg21[%c0_149, %c0_150], %328 {strides = array<i32>} : memref<2x1xf32, #tpu.memory_space<vmem>>, vector<2x1xf32>,
    return
  }
}

</mosaic_0001>

<llo_original>
// kernel: tpu_custom_call.1
$region0: #{tpu_custom_call.1}
  #allocation0 [shape = 'u32[]', space=smem, size = 0x4, offset = 0x4, fixed_abs, tag = 'smem constant byte address 0x4 - core index']
  #allocation1 [shape = 'u32[144,128]{1,0:T(1,128)}', space=vmem, size = 0x12000, scoped, tag = 'internal scratch']
  #allocation2 [shape = 'f32[8,2,256]{2,1,0:T(2,128)}', space=vmem, size = 0x4000, scoped, tag = 'scratch operand']
  #allocation3 [shape = 'f32[8,2,32]{2,1,0:T(2,128)}', space=vmem, size = 0x2000, scoped, tag = 'scratch operand']
  #allocation4 [shape = 'f32[1,1]{1,0:T(1,128)S(1)}', space=vmem, size = 0x200, scoped, tag = 'scoped memory for tpu_custom_call.1']
  %s0 = inlined_call_operand.hbm [shape: f32[8,2,16], index: 0, kind: input, shape index: {}]
  %s1 = inlined_call_operand.vmem [shape: f32[16,256], index: 1, kind: input, shape index: {}]
  %s2 = inlined_call_operand.hbm [shape: f32[1,256], index: 2, kind: input, shape index: {}]
  %s3 = inlined_call_operand.hbm [shape: f32[64,256], index: 3, kind: input, shape index: {}]
  %s4 = inlined_call_operand.vmem [shape: f32[32,32], index: 4, kind: input, shape index: {}]
  %s5 = inlined_call_operand.hbm [shape: f32[32,32], index: 5, kind: input, shape index: {}]
  %s6 = inlined_call_operand.hbm [shape: f32[32,32], index: 6, kind: input, shape index: {}]
  %s7 = inlined_call_operand.hbm [shape: f32[1,32], index: 7, kind: input, shape index: {}]
  %s8 = inlined_call_operand.hbm [shape: f32[1,32], index: 8, kind: input, shape index: {}]
  %s9 = inlined_call_operand.hbm [shape: f32[1,32], index: 9, kind: input, shape index: {}]
  %s10 = inlined_call_operand.vmem [shape: f32[32,32], index: 10, kind: input, shape index: {}]
  %s11 = inlined_call_operand.hbm [shape: f32[1,32], index: 11, kind: input, shape index: {}]
  %s12 = inlined_call_operand.hbm [shape: f32[1,32], index: 12, kind: input, shape index: {}]
  %s13 = inlined_call_operand.vmem [shape: f32[1,32], index: 13, kind: input, shape index: {}]
  %s14 = inlined_call_operand.vmem [shape: f32[32,16], index: 14, kind: input, shape index: {}]
  %s15 = inlined_call_operand.vmem [shape: f32[1,16], index: 15, kind: input, shape index: {}]
  %s16 = inlined_call_operand.vmem [shape: f32[16,8], index: 16, kind: input, shape index: {}]
  %s17 = inlined_call_operand.vmem [shape: f32[1,8], index: 17, kind: input, shape index: {}]
  %s18 = inlined_call_operand.vmem [shape: f32[8,1], index: 18, kind: input, shape index: {}]
  %s19 = inlined_call_operand.<no memory space> [shape: f32[1,1], index: 19, kind: input, shape index: {}]
  %s20 = inlined_call_operand.hbm [shape: f32[32,32], index: 20, kind: input, shape index: {}]
  %s21 = inlined_call_operand.vmem [shape: f32[2,1], index: 21, kind: output, shape index: {}]
  %s22 = sld [smem:[#allocation0]]
  $region138: #{tpu_custom_call.1} parent=0
    _
  %s24 = ssub.s32 1, %s22
  %s25 = scalar_select 0, %s24, %s22
  %v26 = vstv %s19
  %27 = vst [vmem:[#allocation4] sm:$0x1] %v26
  $region1: #{tpu_custom_call.1} parent=0
    #allocation5 [shape = 'u8[8192]{0}', space=vmem, size = 0x2000, scoped, tag = 'input window, operand 0, single buffered']
    #allocation6 [shape = 's32[1]{0}', space=sflag, size = 0x4, scoped, tag = 'scoped memory for tpu_custom_call.1']
    #allocation7 [shape = 'u8[1024]{0}', space=vmem, size = 0x400, scoped, tag = 'input window, operand 2, single buffered']
    #allocation8 [shape = 's32[1]{0}', space=sflag, size = 0x4, scoped, tag = 'scoped memory for tpu_custom_call.1']
    #allocation9 [shape = 'u8[65536]{0}', space=vmem, size = 0x10000, scoped, tag = 'input window, operand 3, single buffered']
    #allocation10 [shape = 'u8[16384]{0}', space=vmem, size = 0x4000, scoped, tag = 'input window, operand 5, single buffered']
    #allocation11 [shape = 's32[1]{0}', space=sflag, size = 0x4, scoped, tag = 'scoped memory for tpu_custom_call.1']
    #allocation12 [shape = 'u8[16384]{0}', space=vmem, size = 0x4000, scoped, tag = 'input window, operand 6, single buffered']
    #allocation13 [shape = 'u8[512]{0}', space=vmem, size = 0x400, scoped, tag = 'input window, operand 7, single buffered']
    #allocation14 [shape = 's32[1]{0}', space=sflag, size = 0x4, scoped, tag = 'scoped memory for tpu_custom_call.1']
    #allocation15 [shape = 'u8[512]{0}', space=vmem, size = 0x400, scoped, tag = 'input window, operand 8, single buffered']
    #allocation16 [shape = 'u8[512]{0}', space=vmem, size = 0x400, scoped, tag = 'input window, operand 9, single buffered']
    #allocation17 [shape = 's32[1]{0}', space=sflag, size = 0x4, scoped, tag = 'scoped memory for tpu_custom_call.1']
    #allocation18 [shape = 'u8[512]{0}', space=vmem, size = 0x400, scoped, tag = 'input window, operand 11, single buffered']
    #allocation19 [shape = 'u8[512]{0}', space=vmem, size = 0x400, scoped, tag = 'input window, operand 12, single buffered']
    #allocation20 [shape = 's32[1]{0}', space=sflag, size = 0x4, scoped, tag = 'scoped memory for tpu_custom_call.1']
    #allocation21 [shape = 'u8[16384]{0}', space=vmem, size = 0x4000, scoped, tag = 'input window, operand 20, single buffered']
    %28 = vsyncpa [#allocation6], 0
    %29 = vsyncpa [#allocation8], 0
    %30 = vsyncpa [#allocation11], 0
    %31 = vsyncpa [#allocation14], 0
    %32 = vsyncpa [#allocation17], 0
    %33 = vsyncpa [#allocation20], 0
    // Predicated region
    $region2: #{tpu_custom_call.1} parent=1 // pred_check
      _
    $region3: #{tpu_custom_call.1} parent=1 // pred_check_branch
      %35 = sbr.rel (0) target = $region5
    $region4: #{tpu_custom_call.1} parent=1 // pred_region
      %s37 = ssub.s32 256, 256
      %38 = vsyncadd [#allocation6], %s37
      %s39 = sshll.u32 [#allocation5], 4
      %s40 = int_to_ptr.vmem [resolvable:$true] %s39
      %45 = dma.hbm_to_vmem [thread:$0]  %s0, 256, %s40, [#allocation6], 32, 32, 2
    $region5: #{tpu_custom_call.1} parent=1 // pred_fallthru
      _
    // Predicated region
    $region6: #{tpu_custom_call.1} parent=1 // pred_check
      _
    $region7: #{tpu_custom_call.1} parent=1 // pred_check_branch
      %47 = sbr.rel (0) target = $region9
    $region8: #{tpu_custom_call.1} parent=1 // pred_region
      _
    $region9: #{tpu_custom_call.1} parent=1 // pred_fallthru
      _
    // Predicated region
    $region10: #{tpu_custom_call.1} parent=1 // pred_check
      _
    $region11: #{tpu_custom_call.1} parent=1 // pred_check_branch
      %49 = sbr.rel (0) target = $region13
    $region12: #{tpu_custom_call.1} parent=1 // pred_region
      %s51 = ssub.s32 32, 32
      %52 = vsyncadd [#allocation8], %s51
      %s54 = sshll.u32 [#allocation7], 4
      %s55 = int_to_ptr.vmem [resolvable:$true] %s54
      %57 = dma.hbm_to_vmem [thread:$0]  %s2, 32, %s55, [#allocation8]
    $region13: #{tpu_custom_call.1} parent=1 // pred_fallthru
      _
    // Predicated region
    $region14: #{tpu_custom_call.1} parent=1 // pred_check
      _
    $region15: #{tpu_custom_call.1} parent=1 // pred_check_branch
      %59 = sbr.rel (0) target = $region17
    $region16: #{tpu_custom_call.1} parent=1 // pred_region
      %s61 = ssub.s32 2048, 2048
      %62 = vsyncadd [#allocation8], %s61
      %s63 = sshll.u32 [#allocation9], 4
      %s64 = int_to_ptr.vmem [resolvable:$true] %s63
      %69 = dma.hbm_to_vmem [thread:$0]  %s3, 2048, %s64, [#allocation8], 256, 256, 16
    $region17: #{tpu_custom_call.1} parent=1 // pred_fallthru
      _
    // Predicated region
    $region18: #{tpu_custom_call.1} parent=1 // pred_check
      _
    $region19: #{tpu_custom_call.1} parent=1 // pred_check_branch
      %71 = sbr.rel (0) target = $region21
    $region20: #{tpu_custom_call.1} parent=1 // pred_region
      _
    $region21: #{tpu_custom_call.1} parent=1 // pred_fallthru
      _
    // Predicated region
    $region22: #{tpu_custom_call.1} parent=1 // pred_check
      _
    $region23: #{tpu_custom_call.1} parent=1 // pred_check_branch
      %73 = sbr.rel (0) target = $region25
    $region24: #{tpu_custom_call.1} parent=1 // pred_region
      %s75 = ssub.s32 512, 512
      %76 = vsyncadd [#allocation11], %s75
      %s77 = sshll.u32 [#allocation10], 4
      %s78 = int_to_ptr.vmem [resolvable:$true] %s77
      %83 = dma.hbm_to_vmem [thread:$0]  %s5, 512, %s78, [#allocation11], 128, 128, 8
    $region25: #{tpu_custom_call.1} parent=1 // pred_fallthru
      _
    // Predicated region
    $region26: #{tpu_custom_call.1} parent=1 // pred_check
      _
    $region27: #{tpu_custom_call.1} parent=1 // pred_check_branch
      %85 = sbr.rel (0) target = $region29
    $region28: #{tpu_custom_call.1} parent=1 // pred_region
      %s87 = ssub.s32 512, 512
      %88 = vsyncadd [#allocation11], %s87
      %s89 = sshll.u32 [#allocation12], 4
      %s90 = int_to_ptr.vmem [resolvable:$true] %s89
      %95 = dma.hbm_to_vmem [thread:$0]  %s6, 512, %s90, [#allocation11], 128, 128, 8
    $region29: #{tpu_custom_call.1} parent=1 // pred_fallthru
      _
    // Predicated region
    $region30: #{tpu_custom_call.1} parent=1 // pred_check
      _
    $region31: #{tpu_custom_call.1} parent=1 // pred_check_branch
      %97 = sbr.rel (0) target = $region33
    $region32: #{tpu_custom_call.1} parent=1 // pred_region
      %s99 = ssub.s32 16, 16
      %100 = vsyncadd [#allocation14], %s99
      %s102 = sshll.u32 [#allocation13], 4
      %s103 = int_to_ptr.vmem [resolvable:$true] %s102
      %105 = dma.hbm_to_vmem [thread:$0]  %s7, 16, %s103, [#allocation14]
    $region33: #{tpu_custom_call.1} parent=1 // pred_fallthru
      _
    // Predicated region
    $region34: #{tpu_custom_call.1} parent=1 // pred_check
      _
    $region35: #{tpu_custom_call.1} parent=1 // pred_check_branch
      %107 = sbr.rel (0) target = $region37
    $region36: #{tpu_custom_call.1} parent=1 // pred_region
      %s109 = ssub.s32 16, 16
      %110 = vsyncadd [#allocation14], %s109
      %s112 = sshll.u32 [#allocation15], 4
      %s113 = int_to_ptr.vmem [resolvable:$true] %s112
      %115 = dma.hbm_to_vmem [thread:$0]  %s8, 16, %s113, [#allocation14]
    $region37: #{tpu_custom_call.1} parent=1 // pred_fallthru
      _
    // Predicated region
    $region38: #{tpu_custom_call.1} parent=1 // pred_check
      _
    $region39: #{tpu_custom_call.1} parent=1 // pred_check_branch
      %117 = sbr.rel (0) target = $region41
    $region40: #{tpu_custom_call.1} parent=1 // pred_region
      %s119 = ssub.s32 16, 16
      %120 = vsyncadd [#allocation17], %s119
      %s122 = sshll.u32 [#allocation16], 4
      %s123 = int_to_ptr.vmem [resolvable:$true] %s122
      %125 = dma.hbm_to_vmem [thread:$0]  %s9, 16, %s123, [#allocation17]
    $region41: #{tpu_custom_call.1} parent=1 // pred_fallthru
      _
    // Predicated region
    $region42: #{tpu_custom_call.1} parent=1 // pred_check
      _
    $region43: #{tpu_custom_call.1} parent=1 // pred_check_branch
      %127 = sbr.rel (0) target = $region45
    $region44: #{tpu_custom_call.1} parent=1 // pred_region
      _
    $region45: #{tpu_custom_call.1} parent=1 // pred_fallthru
      _
    // Predicated region
    $region46: #{tpu_custom_call.1} parent=1 // pred_check
      _
    $region47: #{tpu_custom_call.1} parent=1 // pred_check_branch
      %129 = sbr.rel (0) target = $region49
    $region48: #{tpu_custom_call.1} parent=1 // pred_region
      %s131 = ssub.s32 16, 16
      %132 = vsyncadd [#allocation17], %s131
      %s134 = sshll.u32 [#allocation18], 4
      %s135 = int_to_ptr.vmem [resolvable:$true] %s134
      %137 = dma.hbm_to_vmem [thread:$0]  %s11, 16, %s135, [#allocation17]
    $region49: #{tpu_custom_call.1} parent=1 // pred_fallthru
      _
    // Predicated region
    $region50: #{tpu_custom_call.1} parent=1 // pred_check
      _
    $region51: #{tpu_custom_call.1} parent=1 // pred_check_branch
      %139 = sbr.rel (0) target = $region53
    $region52: #{tpu_custom_call.1} parent=1 // pred_region
      %s141 = ssub.s32 16, 16
      %142 = vsyncadd [#allocation20], %s141
      %s144 = sshll.u32 [#allocation19], 4
      %s145 = int_to_ptr.vmem [resolvable:$true] %s144
      %147 = dma.hbm_to_vmem [thread:$0]  %s12, 16, %s145, [#allocation20]
    $region53: #{tpu_custom_call.1} parent=1 // pred_fallthru
      _
    // Predicated region
    $region54: #{tpu_custom_call.1} parent=1 // pred_check
      _
    $region55: #{tpu_custom_call.1} parent=1 // pred_check_branch
      %149 = sbr.rel (0) target = $region57
    $region56: #{tpu_custom_call.1} parent=1 // pred_region
      _
    $region57: #{tpu_custom_call.1} parent=1 // pred_fallthru
      _
    // Predicated region
    $region58: #{tpu_custom_call.1} parent=1 // pred_check
      _
    $region59: #{tpu_custom_call.1} parent=1 // pred_check_branch
      %151 = sbr.rel (0) target = $region61
    $region60: #{tpu_custom_call.1} parent=1 // pred_region
      _
    $region61: #{tpu_custom_call.1} parent=1 // pred_fallthru
      _
    // Predicated region
    $region62: #{tpu_custom_call.1} parent=1 // pred_check
      _
    $region63: #{tpu_custom_call.1} parent=1 // pred_check_branch
      %153 = sbr.rel (0) target = $region65
    $region64: #{tpu_custom_call.1} parent=1 // pred_region
      _
    $region65: #{tpu_custom_call.1} parent=1 // pred_fallthru
      _
    // Predicated region
    $region66: #{tpu_custom_call.1} parent=1 // pred_check
      _
    $region67: #{tpu_custom_call.1} parent=1 // pred_check_branch
      %155 = sbr.rel (0) target = $region69
    $region68: #{tpu_custom_call.1} parent=1 // pred_region
      _
    $region69: #{tpu_custom_call.1} parent=1 // pred_fallthru
      _
    // Predicated region
    $region70: #{tpu_custom_call.1} parent=1 // pred_check
      _
    $region71: #{tpu_custom_call.1} parent=1 // pred_check_branch
      %157 = sbr.rel (0) target = $region73
    $region72: #{tpu_custom_call.1} parent=1 // pred_region
      _
    $region73: #{tpu_custom_call.1} parent=1 // pred_fallthru
      _
    // Predicated region
    $region74: #{tpu_custom_call.1} parent=1 // pred_check
      _
    $region75: #{tpu_custom_call.1} parent=1 // pred_check_branch
      %159 = sbr.rel (0) target = $region77
    $region76: #{tpu_custom_call.1} parent=1 // pred_region
      _
    $region77: #{tpu_custom_call.1} parent=1 // pred_fallthru
      _
    // Predicated region
    $region78: #{tpu_custom_call.1} parent=1 // pred_check
      _
    $region79: #{tpu_custom_call.1} parent=1 // pred_check_branch
      %161 = sbr.rel (0) target = $region81
    $region80: #{tpu_custom_call.1} parent=1 // pred_region
      _
    $region81: #{tpu_custom_call.1} parent=1 // pred_fallthru
      _
    // Predicated region
    $region82: #{tpu_custom_call.1} parent=1 // pred_check
      _
    $region83: #{tpu_custom_call.1} parent=1 // pred_check_branch
      %163 = sbr.rel (0) target = $region85
    $region84: #{tpu_custom_call.1} parent=1 // pred_region
      %s165 = ssub.s32 512, 512
      %166 = vsyncadd [#allocation20], %s165
      %s167 = sshll.u32 [#allocation21], 4
      %s168 = int_to_ptr.vmem [resolvable:$true] %s167
      %173 = dma.hbm_to_vmem [thread:$0]  %s20, 512, %s168, [#allocation20], 128, 128, 8
    $region85: #{tpu_custom_call.1} parent=1 // pred_fallthru
      _
    // Predicated region
    $region86: #{tpu_custom_call.1} parent=1 // pred_check
      _
    $region87: #{tpu_custom_call.1} parent=1 // pred_check_branch
      %175 = sbr.rel (0) target = $region89
    $region88: #{tpu_custom_call.1} parent=1 // pred_region
      %176 = dma.done [#allocation6], 256
    $region89: #{tpu_custom_call.1} parent=1 // pred_fallthru
      _
    // Predicated region
    $region90: #{tpu_custom_call.1} parent=1 // pred_check
      _
    $region91: #{tpu_custom_call.1} parent=1 // pred_check_branch
      %178 = sbr.rel (0) target = $region93
    $region92: #{tpu_custom_call.1} parent=1 // pred_region
      %179 = dma.done [#allocation8], 32
    $region93: #{tpu_custom_call.1} parent=1 // pred_fallthru
      _
    // Predicated region
    $region94: #{tpu_custom_call.1} parent=1 // pred_check
      _
    $region95: #{tpu_custom_call.1} parent=1 // pred_check_branch
      %181 = sbr.rel (0) target = $region97
    $region96: #{tpu_custom_call.1} parent=1 // pred_region
      %182 = dma.done [#allocation8], 2048
    $region97: #{tpu_custom_call.1} parent=1 // pred_fallthru
      _
    // Predicated region
    $region98: #{tpu_custom_call.1} parent=1 // pred_check
      _
    $region99: #{tpu_custom_call.1} parent=1 // pred_check_branch
      %184 = sbr.rel (0) target = $region101
    $region100: #{tpu_custom_call.1} parent=1 // pred_region
      %185 = dma.done [#allocation11], 512
    $region101: #{tpu_custom_call.1} parent=1 // pred_fallthru
      _
    // Predicated region
    $region102: #{tpu_custom_call.1} parent=1 // pred_check
      _
    $region103: #{tpu_custom_call.1} parent=1 // pred_check_branch
      %187 = sbr.rel (0) target = $region105
    $region104: #{tpu_custom_call.1} parent=1 // pred_region
      %188 = dma.done [#allocation11], 512
    $region105: #{tpu_custom_call.1} parent=1 // pred_fallthru
      _
    // Predicated region
    $region106: #{tpu_custom_call.1} parent=1 // pred_check
      _
    $region107: #{tpu_custom_call.1} parent=1 // pred_check_branch
      %190 = sbr.rel (0) target = $region109
    $region108: #{tpu_custom_call.1} parent=1 // pred_region
      %191 = dma.done [#allocation14], 16
    $region109: #{tpu_custom_call.1} parent=1 // pred_fallthru
      _
    // Predicated region
    $region110: #{tpu_custom_call.1} parent=1 // pred_check
      _
    $region111: #{tpu_custom_call.1} parent=1 // pred_check_branch
      %193 = sbr.rel (0) target = $region113
    $region112: #{tpu_custom_call.1} parent=1 // pred_region
      %194 = dma.done [#allocation14], 16
    $region113: #{tpu_custom_call.1} parent=1 // pred_fallthru
      _
    // Predicated region
    $region114: #{tpu_custom_call.1} parent=1 // pred_check
      _
    $region115: #{tpu_custom_call.1} parent=1 // pred_check_branch
      %196 = sbr.rel (0) target = $region117
    $region116: #{tpu_custom_call.1} parent=1 // pred_region
      %197 = dma.done [#allocation17], 16
    $region117: #{tpu_custom_call.1} parent=1 // pred_fallthru
      _
    // Predicated region
    $region118: #{tpu_custom_call.1} parent=1 // pred_check
      _
    $region119: #{tpu_custom_call.1} parent=1 // pred_check_branch
      %199 = sbr.rel (0) target = $region121
    $region120: #{tpu_custom_call.1} parent=1 // pred_region
      %200 = dma.done [#allocation17], 16
    $region121: #{tpu_custom_call.1} parent=1 // pred_fallthru
      _
    // Predicated region
    $region122: #{tpu_custom_call.1} parent=1 // pred_check
      _
    $region123: #{tpu_custom_call.1} parent=1 // pred_check_branch
      %202 = sbr.rel (0) target = $region125
    $region124: #{tpu_custom_call.1} parent=1 // pred_region
      %203 = dma.done [#allocation20], 16
    $region125: #{tpu_custom_call.1} parent=1 // pred_fallthru
      _
    // Predicated region
    $region126: #{tpu_custom_call.1} parent=1 // pred_check
      _
    $region127: #{tpu_custom_call.1} parent=1 // pred_check_branch
      %205 = sbr.rel (0) target = $region129
    $region128: #{tpu_custom_call.1} parent=1 // pred_region
      %206 = dma.done [#allocation20], 512
    $region129: #{tpu_custom_call.1} parent=1 // pred_fallthru
      _
    %v207 = vld [vmem:[#allocation5] sm:$0x3]
    %v208 = vld [vmem:[#allocation5 + $0x2] sm:$0x3]
    %v209 = vld [vmem:[#allocation5 + $0x4] sm:$0x3]
    %v210 = vld [vmem:[#allocation5 + $0x6] sm:$0x3]
    %v211 = vld [vmem:[#allocation5 + $0x8] sm:$0x3]
    %v212 = vld [vmem:[#allocation5 + $0xa] sm:$0x3]
    %v213 = vld [vmem:[#allocation5 + $0xc] sm:$0x3]
    %v214 = vld [vmem:[#allocation5 + $0xe] sm:$0x3]
    %v215 = vld [vmem:[%s1] sm:$0xff]
    %v216 = vld [vmem:[%s1 + $0x8] sm:$0xff]
    %v217 = vld [vmem:[%s1 + $0x10] sm:$0xff]
    %v218 = vld [vmem:[%s1 + $0x18] sm:$0xff]
    %v219 = vld [vmem:[#allocation7] sm:$0x3]
    %v221 = vlaneseq
    %v222 = vshrl.u32 %v221, 7
    %v223 = vsub.s32 0, %v222
    %v224 = vrot.slane %v219, %v223
    %v225 = vlaneseq
    %v226 = vshrl.u32 %v225, 7
    %v227 = vsub.s32 1, %v226
    %v228 = vrot.slane %v219, %v227
    %v239 = vcombine.low %v207, %v208
    %v240 = vcombine.low %v209, %v210
    %v242 = vunpack.c.l.s4 1983009808
    %v243 = vunpack.c.0.s8 %v242
    %v244 = vlaneseq
    %v245 = vshrl.u32 %v244, 7
    %v246 = vsub.s32 %v243, %v245
    %v247 = vrot.slane %v239, %v246
    %v249 = vunpack.c.l.s4 1983009808
    %v250 = vunpack.c.0.s8 %v249
    %v251 = vlaneseq
    %v252 = vshrl.u32 %v251, 7
    %v253 = vsub.s32 %v250, %v252
    %v254 = vrot.slane %v240, %v253
    %v255 = vcombine.low %v247, %v254
    %v256 = vcombine.low %v211, %v212
    %v257 = vcombine.low %v213, %v214
    %v259 = vunpack.c.l.s4 1983009808
    %v260 = vunpack.c.0.s8 %v259
    %v261 = vlaneseq
    %v262 = vshrl.u32 %v261, 7
    %v263 = vsub.s32 %v260, %v262
    %v264 = vrot.slane %v256, %v263
    %v266 = vunpack.c.l.s4 1983009808
    %v267 = vunpack.c.0.s8 %v266
    %v268 = vlaneseq
    %v269 = vshrl.u32 %v268, 7
    %v270 = vsub.s32 %v267, %v269
    %v271 = vrot.slane %v257, %v270
    %v272 = vcombine.low %v264, %v271
    %vm273 = vcmask 130048
    %v274 = vsel %vm273, %v255, 0
    %v276 = vsel %vm273, %v272, 0
    %278 = vmatprep.subr.mxu0 0.0
    %279 = vmatpush1.msra.mxu0 0.0
    %280 = vmatprep.subr.mxu0 0.0
    %281 = vmatpush1.msra.mxu0 0.0
    %282 = vmatprep.subr.mxu0 0.0
    %283 = vmatpush1.msra.mxu0 0.0
    %284 = vmatprep.subr.mxu0 0.0
    %285 = vmatpush1.msra.mxu0 0.0
    %286 = vmatprep.subr.mxu0 0.0
    %287 = vmatpush1.msra.mxu0 0.0
    %288 = vmatprep.subr.mxu0 0.0
    %289 = vmatpush1.msra.mxu0 0.0
    %290 = vmatprep.subr.mxu0 0.0
    %291 = vmatpush1.msra.mxu0 0.0
    %292 = vmatprep.subr.mxu0 0.0
    %293 = vmatpush1.msra.mxu0 0.0
    %294 = vmatprep.subr.mxu0 0.0
    %295 = vmatpush1.msra.mxu0 0.0
    %296 = vmatprep.subr.mxu0 0.0
    %297 = vmatpush1.msra.mxu0 0.0
    %298 = vmatprep.subr.mxu0 0.0
    %299 = vmatpush1.msra.mxu0 0.0
    %300 = vmatprep.subr.mxu0 0.0
    %301 = vmatpush1.msra.mxu0 0.0
    %302 = vmatprep.subr.mxu0 0.0
    %303 = vmatpush1.msra.mxu0 0.0
    %304 = vmatprep.subr.mxu0 0.0
    %305 = vmatpush1.msra.mxu0 0.0
    %306 = vmatprep.subr.mxu0 %v218
    %307 = vmatpush1.msra.mxu0 %v217
    %308 = vmatprep.subr.mxu0 %v216
    %309 = vmatpush1.msra.mxu0 %v215
    %310 = vmatprep.subr.mxu0 0.0
    %311 = vmatpush2.msra.mxu0 0.0
    %312 = vmatprep.subr.mxu0 0.0
    %313 = vmatpush2.msra.mxu0 0.0
    %314 = vmatprep.subr.mxu0 0.0
    %315 = vmatpush2.msra.mxu0 0.0
    %316 = vmatprep.subr.mxu0 0.0
    %317 = vmatpush2.msra.mxu0 0.0
    %318 = vmatprep.subr.mxu0 0.0
    %319 = vmatpush2.msra.mxu0 0.0
    %320 = vmatprep.subr.mxu0 0.0
    %321 = vmatpush2.msra.mxu0 0.0
    %322 = vmatprep.subr.mxu0 0.0
    %323 = vmatpush2.msra.mxu0 0.0
    %324 = vmatprep.subr.mxu0 0.0
    %325 = vmatpush2.msra.mxu0 0.0
    %326 = vmatprep.subr.mxu0 0.0
    %327 = vmatpush2.msra.mxu0 0.0
    %328 = vmatprep.subr.mxu0 0.0
    %329 = vmatpush2.msra.mxu0 0.0
    %330 = vmatprep.subr.mxu0 0.0
    %331 = vmatpush2.msra.mxu0 0.0
    %332 = vmatprep.subr.mxu0 0.0
    %333 = vmatpush2.msra.mxu0 0.0
    %334 = vmatprep.subr.mxu0 0.0
    %335 = vmatpush2.msra.mxu0 0.0
    %336 = vmatprep.subr.mxu0 0.0
    %337 = vmatpush2.msra.mxu0 0.0
    %338 = vmatprep.subr.mxu0 0.0
    %339 = vmatpush2.msra.mxu0 0.0
    %340 = vmatprep.subr.mxu0 0.0
    %341 = vmatpush2.msra.mxu0 0.0
    %342 = vmatprep.mubr.f32.mxu0 0.0
    %343 = vmatmul.mubr.f32.gmra.mxu0 %v274
    %v344 = vpop.f32.mrf.mxu0
    %v345 = vadd.f32 %v224, %v344
    %v346 = vpop.f32.mrf.mxu0
    %v347 = vadd.f32 %v228, %v346
    %348 = vmatprep.mubr.f32.mxu0 0.0
    %349 = vmatmul.mubr.f32.gmra.mxu0 %v276
    %v350 = vpop.f32.mrf.mxu0
    %v351 = vadd.f32 %v224, %v350
    %v352 = vpop.f32.mrf.mxu0
    %v353 = vadd.f32 %v228, %v352
    %354 = vdwg.mxu0
    %v359 = vcombine.low %v345, %v347
    %v360 = vcombine.high %v345, %v347
    %v362 = vunpack.c.l.s4 1983009808
    %v363 = vunpack.c.0.s8 %v362
    %v364 = vlaneseq
    %v365 = vshrl.u32 %v364, 7
    %v366 = vsub.s32 %v363, %v365
    %v367 = vrot.slane %v359, %v366
    %v369 = vunpack.c.l.s4 1983009808
    %v370 = vunpack.c.0.s8 %v369
    %v371 = vlaneseq
    %v372 = vshrl.u32 %v371, 7
    %v373 = vsub.s32 %v370, %v372
    %v374 = vrot.slane %v360, %v373
    %v375 = vcombine.high %v367, %v367
    %v376 = vcombine.high %v374, %v374
    %v377 = vcombine.low %v351, %v353
    %v378 = vcombine.high %v351, %v353
    %v380 = vunpack.c.l.s4 1983009808
    %v381 = vunpack.c.0.s8 %v380
    %v382 = vlaneseq
    %v383 = vshrl.u32 %v382, 7
    %v384 = vsub.s32 %v381, %v383
    %v385 = vrot.slane %v377, %v384
    %v387 = vunpack.c.l.s4 1983009808
    %v388 = vunpack.c.0.s8 %v387
    %v389 = vlaneseq
    %v390 = vshrl.u32 %v389, 7
    %v391 = vsub.s32 %v388, %v390
    %v392 = vrot.slane %v378, %v391
    %v393 = vcombine.high %v385, %v385
    %v394 = vcombine.high %v392, %v392
    %403 = vst [vmem:[#allocation2] sm:$0xf] %v367
    %404 = vst [vmem:[#allocation2 + $0x4] sm:$0xf] %v375
    %405 = vst [vmem:[#allocation2 + $0x8] sm:$0xf] %v374
    %406 = vst [vmem:[#allocation2 + $0xc] sm:$0xf] %v376
    %407 = vst [vmem:[#allocation2 + $0x10] sm:$0xf] %v385
    %408 = vst [vmem:[#allocation2 + $0x14] sm:$0xf] %v393
    %409 = vst [vmem:[#allocation2 + $0x18] sm:$0xf] %v392
    %410 = vst [vmem:[#allocation2 + $0x1c] sm:$0xf] %v394
    %v411 = vld [vmem:[#allocation9] sm:$0xff]
    %v412 = vld [vmem:[#allocation9 + $0x8] sm:$0xff]
    %v413 = vld [vmem:[#allocation9 + $0x10] sm:$0xff]
    %v414 = vld [vmem:[#allocation9 + $0x18] sm:$0xff]
    %v415 = vld [vmem:[#allocation9 + $0x20] sm:$0xff]
    %v416 = vld [vmem:[#allocation9 + $0x28] sm:$0xff]
    %v417 = vld [vmem:[#allocation9 + $0x30] sm:$0xff]
    %v418 = vld [vmem:[#allocation9 + $0x38] sm:$0xff]
    %v419 = vld [vmem:[#allocation9 + $0x40] sm:$0xff]
    %v420 = vld [vmem:[#allocation9 + $0x48] sm:$0xff]
    %v421 = vld [vmem:[#allocation9 + $0x50] sm:$0xff]
    %v422 = vld [vmem:[#allocation9 + $0x58] sm:$0xff]
    %v423 = vld [vmem:[#allocation9 + $0x60] sm:$0xff]
    %v424 = vld [vmem:[#allocation9 + $0x68] sm:$0xff]
    %v425 = vld [vmem:[#allocation9 + $0x70] sm:$0xff]
    %v426 = vld [vmem:[#allocation9 + $0x78] sm:$0xff]
    %v427 = vld [vmem:[#allocation7] sm:$0x3]
    %v428 = vlaneseq
    %v429 = vand.u32 %v428, 127
    %v430 = vld [vmem:[#allocation2] sm:$0xf]
    %v431 = vmul.f32 %v430, 0.5
    %v432 = vtanh.pop %v431
    %v433 = vmul.f32 %v432, 0.5
    %v434 = vadd.f32 %v433, 0.5
    %v436 = vrot.slane %v430, 2
    %v438 = vtanh.pop %v436
    %v439 = vmul.f32 %v434, 0.0
    %v440 = vmul.f32 %v434, %v438
    %442 = vrot.lane.b32.xlu0 %v440, 64
    %v443 = vpop.permute.xlu0 %442
    %v445 = vadd.f32 %v439, %v443
    %v446 = vtanh.pop %v445
    %448 = vrot.lane.b32.xlu0 %v434, 64
    %v449 = vpop.permute.xlu0 %448
    %v450 = vrot.slane %v449, 2
    %453 = vrot.lane.b32.xlu0 %v446, 64
    %v454 = vpop.permute.xlu0 %453
    %v456 = vmul.f32 %v450, %v454
    %vm457 = vcmp.lt.s32.totalorder %v429, 32
    %v458 = vsel %vm457, %v456, 0.0
    %v461 = vunpack.c.l.s4 1983009808
    %v462 = vunpack.c.0.s8 %v461
    %v463 = vlaneseq
    %v464 = vshrl.u32 %v463, 7
    %v465 = vsub.s32 %v462, %v464
    %v466 = vrot.slane %v445, %v465
    %467 = vrot.lane.b32.xlu0 %v466, 64
    %v468 = vpop.permute.xlu0 %467
    %v470 = vsel %vm457, %v468, 0.0
    %s471 = scalar_lea.vmem [#allocation2], 4
    %v472 = vld [vmem:[%s471] sm:$0xf]
    %v475 = vunpack.c.l.s4 1983009808
    %v476 = vunpack.c.0.s8 %v475
    %v477 = vlaneseq
    %v478 = vshrl.u32 %v477, 7
    %v479 = vsub.s32 %v476, %v478
    %v480 = vrot.slane %v472, %v479
    %v481 = vcombine.high %v480, %v480
    %vm484 = vcmask 523264
    %v486 = vsel %vm484, %v458, 0
    %488 = vmatprep.subr.mxu0 0.0
    %489 = vmatpush1.msra.mxu0 0.0
    %490 = vmatprep.subr.mxu0 0.0
    %491 = vmatpush1.msra.mxu0 0.0
    %492 = vmatprep.subr.mxu0 0.0
    %493 = vmatpush1.msra.mxu0 0.0
    %494 = vmatprep.subr.mxu0 0.0
    %495 = vmatpush1.msra.mxu0 0.0
    %496 = vmatprep.subr.mxu0 0.0
    %497 = vmatpush1.msra.mxu0 0.0
    %498 = vmatprep.subr.mxu0 0.0
    %499 = vmatpush1.msra.mxu0 0.0
    %500 = vmatprep.subr.mxu0 0.0
    %501 = vmatpush1.msra.mxu0 0.0
    %502 = vmatprep.subr.mxu0 0.0
    %503 = vmatpush1.msra.mxu0 0.0
    %504 = vmatprep.subr.mxu0 %v426
    %505 = vmatpush1.msra.mxu0 %v425
    %506 = vmatprep.subr.mxu0 %v424
    %507 = vmatpush1.msra.mxu0 %v423
    %508 = vmatprep.subr.mxu0 %v422
    %509 = vmatpush1.msra.mxu0 %v421
    %510 = vmatprep.subr.mxu0 %v420
    %511 = vmatpush1.msra.mxu0 %v419
    %512 = vmatprep.subr.mxu0 %v418
    %513 = vmatpush1.msra.mxu0 %v417
    %514 = vmatprep.subr.mxu0 %v416
    %515 = vmatpush1.msra.mxu0 %v415
    %516 = vmatprep.subr.mxu0 %v414
    %517 = vmatpush1.msra.mxu0 %v413
    %518 = vmatprep.subr.mxu0 %v412
    %519 = vmatpush1.msra.mxu0 %v411
    %520 = vmatprep.subr.mxu0 0.0
    %521 = vmatpush2.msra.mxu0 0.0
    %522 = vmatprep.subr.mxu0 0.0
    %523 = vmatpush2.msra.mxu0 0.0
    %524 = vmatprep.subr.mxu0 0.0
    %525 = vmatpush2.msra.mxu0 0.0
    %526 = vmatprep.subr.mxu0 0.0
    %527 = vmatpush2.msra.mxu0 0.0
    %528 = vmatprep.subr.mxu0 0.0
    %529 = vmatpush2.msra.mxu0 0.0
    %530 = vmatprep.subr.mxu0 0.0
    %531 = vmatpush2.msra.mxu0 0.0
    %532 = vmatprep.subr.mxu0 0.0
    %533 = vmatpush2.msra.mxu0 0.0
    %534 = vmatprep.subr.mxu0 0.0
    %535 = vmatpush2.msra.mxu0 0.0
    %536 = vmatprep.subr.mxu0 0.0
    %537 = vmatpush2.msra.mxu0 0.0
    %538 = vmatprep.subr.mxu0 0.0
    %539 = vmatpush2.msra.mxu0 0.0
    %540 = vmatprep.subr.mxu0 0.0
    %541 = vmatpush2.msra.mxu0 0.0
    %542 = vmatprep.subr.mxu0 0.0
    %543 = vmatpush2.msra.mxu0 0.0
    %544 = vmatprep.subr.mxu0 0.0
    %545 = vmatpush2.msra.mxu0 0.0
    %546 = vmatprep.subr.mxu0 0.0
    %547 = vmatpush2.msra.mxu0 0.0
    %548 = vmatprep.subr.mxu0 0.0
    %549 = vmatpush2.msra.mxu0 0.0
    %550 = vmatprep.subr.mxu0 0.0
    %551 = vmatpush2.msra.mxu0 0.0
    %552 = vmatprep.mubr.f32.mxu0 0.0
    %553 = vmatmul.mubr.f32.gmra.mxu0 %v486
    %v554 = vpop.f32.mrf.mxu0
    %v555 = vadd.f32 %v480, %v554
    %v556 = vpop.f32.mrf.mxu0
    %v557 = vadd.f32 %v481, %v556
    %558 = vdwg.mxu0
    %v559 = vmul.f32 %v555, 0.5
    %v560 = vmul.f32 %v557, 0.5
    %v561 = vtanh.pop %v559
    %v562 = vtanh.pop %v560
    %v563 = vmul.f32 %v561, 0.5
    %v564 = vmul.f32 %v562, 0.5
    %v565 = vadd.f32 %v563, 0.5
    %v566 = vadd.f32 %v564, 0.5
    %v567 = vtanh.pop %v557
    %569 = vrot.lane.b32.xlu0 %v470, 64
    %v570 = vpop.permute.xlu0 %569
    %v572 = vmul.f32 %v565, %v570
    %v573 = vmul.f32 %v565, %v567
    %575 = vrot.lane.b32.xlu0 %v573, 64
    %v576 = vpop.permute.xlu0 %575
    %v578 = vadd.f32 %v572, %v576
    %v579 = vtanh.pop %v578
    %v580 = vmul.f32 %v566, %v579
    %582 = vrot.lane.b32.xlu0 %v580, 32
    %v583 = vpop.permute.xlu0 %582
    %vm585 = vcmask 254976
    %586 = vst.msk [vmem:[#allocation3] sm:$0x3] %vm585, %v583
    %s587 = scalar_lea.vmem [#allocation2], 8
    %v588 = vld [vmem:[%s587] sm:$0xf]
    %589 = vrot.lane.b32.xlu0 %v580, 64
    %v590 = vpop.permute.xlu0 %589
    %v593 = vunpack.c.l.s4 1983009808
    %v594 = vunpack.c.0.s8 %v593
    %v595 = vlaneseq
    %v596 = vshrl.u32 %v595, 7
    %v597 = vsub.s32 %v594, %v596
    %v598 = vrot.slane %v588, %v597
    %v599 = vcombine.high %v598, %v598
    %v602 = vsel %vm484, %v590, 0
    %604 = vmatprep.subr.mxu0 0.0
    %605 = vmatpush1.msra.mxu0 0.0
    %606 = vmatprep.subr.mxu0 0.0
    %607 = vmatpush1.msra.mxu0 0.0
    %608 = vmatprep.subr.mxu0 0.0
    %609 = vmatpush1.msra.mxu0 0.0
    %610 = vmatprep.subr.mxu0 0.0
    %611 = vmatpush1.msra.mxu0 0.0
    %612 = vmatprep.subr.mxu0 0.0
    %613 = vmatpush1.msra.mxu0 0.0
    %614 = vmatprep.subr.mxu0 0.0
    %615 = vmatpush1.msra.mxu0 0.0
    %616 = vmatprep.subr.mxu0 0.0
    %617 = vmatpush1.msra.mxu0 0.0
    %618 = vmatprep.subr.mxu0 0.0
    %619 = vmatpush1.msra.mxu0 0.0
    %620 = vmatprep.subr.mxu0 %v426
    %621 = vmatpush1.msra.mxu0 %v425
    %622 = vmatprep.subr.mxu0 %v424
    %623 = vmatpush1.msra.mxu0 %v423
    %624 = vmatprep.subr.mxu0 %v422
    %625 = vmatpush1.msra.mxu0 %v421
    %626 = vmatprep.subr.mxu0 %v420
    %627 = vmatpush1.msra.mxu0 %v419
    %628 = vmatprep.subr.mxu0 %v418
    %629 = vmatpush1.msra.mxu0 %v417
    %630 = vmatprep.subr.mxu0 %v416
    %631 = vmatpush1.msra.mxu0 %v415
    %632 = vmatprep.subr.mxu0 %v414
    %633 = vmatpush1.msra.mxu0 %v413
    %634 = vmatprep.subr.mxu0 %v412
    %635 = vmatpush1.msra.mxu0 %v411
    %636 = vmatprep.subr.mxu0 0.0
    %637 = vmatpush2.msra.mxu0 0.0
    %638 = vmatprep.subr.mxu0 0.0
    %639 = vmatpush2.msra.mxu0 0.0
    %640 = vmatprep.subr.mxu0 0.0
    %641 = vmatpush2.msra.mxu0 0.0
    %642 = vmatprep.subr.mxu0 0.0
    %643 = vmatpush2.msra.mxu0 0.0
    %644 = vmatprep.subr.mxu0 0.0
    %645 = vmatpush2.msra.mxu0 0.0
    %646 = vmatprep.subr.mxu0 0.0
    %647 = vmatpush2.msra.mxu0 0.0
    %648 = vmatprep.subr.mxu0 0.0
    %649 = vmatpush2.msra.mxu0 0.0
    %650 = vmatprep.subr.mxu0 0.0
    %651 = vmatpush2.msra.mxu0 0.0
    %652 = vmatprep.subr.mxu0 0.0
    %653 = vmatpush2.msra.mxu0 0.0
    %654 = vmatprep.subr.mxu0 0.0
    %655 = vmatpush2.msra.mxu0 0.0
    %656 = vmatprep.subr.mxu0 0.0
    %657 = vmatpush2.msra.mxu0 0.0
    %658 = vmatprep.subr.mxu0 0.0
    %659 = vmatpush2.msra.mxu0 0.0
    %660 = vmatprep.subr.mxu0 0.0
    %661 = vmatpush2.msra.mxu0 0.0
    %662 = vmatprep.subr.mxu0 0.0
    %663 = vmatpush2.msra.mxu0 0.0
    %664 = vmatprep.subr.mxu0 0.0
    %665 = vmatpush2.msra.mxu0 0.0
    %666 = vmatprep.subr.mxu0 0.0
    %667 = vmatpush2.msra.mxu0 0.0
    %668 = vmatprep.mubr.f32.mxu0 0.0
    %669 = vmatmul.mubr.f32.gmra.mxu0 %v602
    %v670 = vpop.f32.mrf.mxu0
    %v671 = vadd.f32 %v598, %v670
    %v672 = vpop.f32.mrf.mxu0
    %v673 = vadd.f32 %v599, %v672
    %674 = vdwg.mxu0
    %v675 = vmul.f32 %v671, 0.5
    %v676 = vmul.f32 %v673, 0.5
    %v677 = vtanh.pop %v675
    %v678 = vtanh.pop %v676
    %v679 = vmul.f32 %v677, 0.5
    %v680 = vmul.f32 %v678, 0.5
    %v681 = vadd.f32 %v679, 0.5
    %v682 = vadd.f32 %v680, 0.5
    %v683 = vtanh.pop %v673
    %v684 = vmul.f32 %v681, %v578
    %v685 = vmul.f32 %v681, %v683
    %687 = vrot.lane.b32.xlu0 %v685, 64
    %v688 = vpop.permute.xlu0 %687
    %v690 = vadd.f32 %v684, %v688
    %v691 = vtanh.pop %v690
    %v692 = vmul.f32 %v682, %v691
    %694 = vrot.lane.b32.xlu0 %v692, 32
    %v695 = vpop.permute.xlu0 %694
    %s697 = scalar_lea.vmem [#allocation3], 2
    %698 = vst.msk [vmem:[%s697] sm:$0x3] %vm585, %v695
    %s699 = scalar_lea.vmem [#allocation2], 12
    %v700 = vld [vmem:[%s699] sm:$0xf]
    %701 = vrot.lane.b32.xlu0 %v692, 64
    %v702 = vpop.permute.xlu0 %701
    %v705 = vunpack.c.l.s4 1983009808
    %v706 = vunpack.c.0.s8 %v705
    %v707 = vlaneseq
    %v708 = vshrl.u32 %v707, 7
    %v709 = vsub.s32 %v706, %v708
    %v710 = vrot.slane %v700, %v709
    %v711 = vcombine.high %v710, %v710
    %v714 = vsel %vm484, %v702, 0
    %716 = vmatprep.subr.mxu0 0.0
    %717 = vmatpush1.msra.mxu0 0.0
    %718 = vmatprep.subr.mxu0 0.0
    %719 = vmatpush1.msra.mxu0 0.0
    %720 = vmatprep.subr.mxu0 0.0
    %721 = vmatpush1.msra.mxu0 0.0
    %722 = vmatprep.subr.mxu0 0.0
    %723 = vmatpush1.msra.mxu0 0.0
    %724 = vmatprep.subr.mxu0 0.0
    %725 = vmatpush1.msra.mxu0 0.0
    %726 = vmatprep.subr.mxu0 0.0
    %727 = vmatpush1.msra.mxu0 0.0
    %728 = vmatprep.subr.mxu0 0.0
    %729 = vmatpush1.msra.mxu0 0.0
    %730 = vmatprep.subr.mxu0 0.0
    %731 = vmatpush1.msra.mxu0 0.0
    %732 = vmatprep.subr.mxu0 %v426
    %733 = vmatpush1.msra.mxu0 %v425
    %734 = vmatprep.subr.mxu0 %v424
    %735 = vmatpush1.msra.mxu0 %v423
    %736 = vmatprep.subr.mxu0 %v422
    %737 = vmatpush1.msra.mxu0 %v421
    %738 = vmatprep.subr.mxu0 %v420
    %739 = vmatpush1.msra.mxu0 %v419
    %740 = vmatprep.subr.mxu0 %v418
    %741 = vmatpush1.msra.mxu0 %v417
    %742 = vmatprep.subr.mxu0 %v416
    %743 = vmatpush1.msra.mxu0 %v415
    %744 = vmatprep.subr.mxu0 %v414
    %745 = vmatpush1.msra.mxu0 %v413
    %746 = vmatprep.subr.mxu0 %v412
    %747 = vmatpush1.msra.mxu0 %v411
    %748 = vmatprep.subr.mxu0 0.0
    %749 = vmatpush2.msra.mxu0 0.0
    %750 = vmatprep.subr.mxu0 0.0
    %751 = vmatpush2.msra.mxu0 0.0
    %752 = vmatprep.subr.mxu0 0.0
    %753 = vmatpush2.msra.mxu0 0.0
    %754 = vmatprep.subr.mxu0 0.0
    %755 = vmatpush2.msra.mxu0 0.0
    %756 = vmatprep.subr.mxu0 0.0
    %757 = vmatpush2.msra.mxu0 0.0
    %758 = vmatprep.subr.mxu0 0.0
    %759 = vmatpush2.msra.mxu0 0.0
    %760 = vmatprep.subr.mxu0 0.0
    %761 = vmatpush2.msra.mxu0 0.0
    %762 = vmatprep.subr.mxu0 0.0
    %763 = vmatpush2.msra.mxu0 0.0
    %764 = vmatprep.subr.mxu0 0.0
    %765 = vmatpush2.msra.mxu0 0.0
    %766 = vmatprep.subr.mxu0 0.0
    %767 = vmatpush2.msra.mxu0 0.0
    %768 = vmatprep.subr.mxu0 0.0
    %769 = vmatpush2.msra.mxu0 0.0
    %770 = vmatprep.subr.mxu0 0.0
    %771 = vmatpush2.msra.mxu0 0.0
    %772 = vmatprep.subr.mxu0 0.0
    %773 = vmatpush2.msra.mxu0 0.0
    %774 = vmatprep.subr.mxu0 0.0
    %775 = vmatpush2.msra.mxu0 0.0
    %776 = vmatprep.subr.mxu0 0.0
    %777 = vmatpush2.msra.mxu0 0.0
    %778 = vmatprep.subr.mxu0 0.0
    %779 = vmatpush2.msra.mxu0 0.0
    %780 = vmatprep.mubr.f32.mxu0 0.0
    %781 = vmatmul.mubr.f32.gmra.mxu0 %v714
    %v782 = vpop.f32.mrf.mxu0
    %v783 = vadd.f32 %v710, %v782
    %v784 = vpop.f32.mrf.mxu0
    %v785 = vadd.f32 %v711, %v784
    %786 = vdwg.mxu0
    %v787 = vmul.f32 %v783, 0.5
    %v788 = vmul.f32 %v785, 0.5
    %v789 = vtanh.pop %v787
    %v790 = vtanh.pop %v788
    %v791 = vmul.f32 %v789, 0.5
    %v792 = vmul.f32 %v790, 0.5
    %v793 = vadd.f32 %v791, 0.5
    %v794 = vadd.f32 %v792, 0.5
    %v795 = vtanh.pop %v785
    %v796 = vmul.f32 %v793, %v690
    %v797 = vmul.f32 %v793, %v795
    %799 = vrot.lane.b32.xlu0 %v797, 64
    %v800 = vpop.permute.xlu0 %799
    %v802 = vadd.f32 %v796, %v800
    %v803 = vtanh.pop %v802
    %v804 = vmul.f32 %v794, %v803
    %806 = vrot.lane.b32.xlu0 %v804, 32
    %v807 = vpop.permute.xlu0 %806
    %s809 = scalar_lea.vmem [#allocation3], 4
    %810 = vst.msk [vmem:[%s809] sm:$0x3] %vm585, %v807
    %s811 = scalar_lea.vmem [#allocation2], 16
    %v812 = vld [vmem:[%s811] sm:$0xf]
    %813 = vrot.lane.b32.xlu0 %v804, 64
    %v814 = vpop.permute.xlu0 %813
    %v817 = vunpack.c.l.s4 1983009808
    %v818 = vunpack.c.0.s8 %v817
    %v819 = vlaneseq
    %v820 = vshrl.u32 %v819, 7
    %v821 = vsub.s32 %v818, %v820
    %v822 = vrot.slane %v812, %v821
    %v823 = vcombine.high %v822, %v822
    %v826 = vsel %vm484, %v814, 0
    %828 = vmatprep.subr.mxu0 0.0
    %829 = vmatpush1.msra.mxu0 0.0
    %830 = vmatprep.subr.mxu0 0.0
    %831 = vmatpush1.msra.mxu0 0.0
    %832 = vmatprep.subr.mxu0 0.0
    %833 = vmatpush1.msra.mxu0 0.0
    %834 = vmatprep.subr.mxu0 0.0
    %835 = vmatpush1.msra.mxu0 0.0
    %836 = vmatprep.subr.mxu0 0.0
    %837 = vmatpush1.msra.mxu0 0.0
    %838 = vmatprep.subr.mxu0 0.0
    %839 = vmatpush1.msra.mxu0 0.0
    %840 = vmatprep.subr.mxu0 0.0
    %841 = vmatpush1.msra.mxu0 0.0
    %842 = vmatprep.subr.mxu0 0.0
    %843 = vmatpush1.msra.mxu0 0.0
    %844 = vmatprep.subr.mxu0 %v426
    %845 = vmatpush1.msra.mxu0 %v425
    %846 = vmatprep.subr.mxu0 %v424
    %847 = vmatpush1.msra.mxu0 %v423
    %848 = vmatprep.subr.mxu0 %v422
    %849 = vmatpush1.msra.mxu0 %v421
    %850 = vmatprep.subr.mxu0 %v420
    %851 = vmatpush1.msra.mxu0 %v419
    %852 = vmatprep.subr.mxu0 %v418
    %853 = vmatpush1.msra.mxu0 %v417
    %854 = vmatprep.subr.mxu0 %v416
    %855 = vmatpush1.msra.mxu0 %v415
    %856 = vmatprep.subr.mxu0 %v414
    %857 = vmatpush1.msra.mxu0 %v413
    %858 = vmatprep.subr.mxu0 %v412
    %859 = vmatpush1.msra.mxu0 %v411
    %860 = vmatprep.subr.mxu0 0.0
    %861 = vmatpush2.msra.mxu0 0.0
    %862 = vmatprep.subr.mxu0 0.0
    %863 = vmatpush2.msra.mxu0 0.0
    %864 = vmatprep.subr.mxu0 0.0
    %865 = vmatpush2.msra.mxu0 0.0
    %866 = vmatprep.subr.mxu0 0.0
    %867 = vmatpush2.msra.mxu0 0.0
    %868 = vmatprep.subr.mxu0 0.0
    %869 = vmatpush2.msra.mxu0 0.0
    %870 = vmatprep.subr.mxu0 0.0
    %871 = vmatpush2.msra.mxu0 0.0
    %872 = vmatprep.subr.mxu0 0.0
    %873 = vmatpush2.msra.mxu0 0.0
    %874 = vmatprep.subr.mxu0 0.0
    %875 = vmatpush2.msra.mxu0 0.0
    %876 = vmatprep.subr.mxu0 0.0
    %877 = vmatpush2.msra.mxu0 0.0
    %878 = vmatprep.subr.mxu0 0.0
    %879 = vmatpush2.msra.mxu0 0.0
    %880 = vmatprep.subr.mxu0 0.0
    %881 = vmatpush2.msra.mxu0 0.0
    %882 = vmatprep.subr.mxu0 0.0
    %883 = vmatpush2.msra.mxu0 0.0
    %884 = vmatprep.subr.mxu0 0.0
    %885 = vmatpush2.msra.mxu0 0.0
    %886 = vmatprep.subr.mxu0 0.0
    %887 = vmatpush2.msra.mxu0 0.0
    %888 = vmatprep.subr.mxu0 0.0
    %889 = vmatpush2.msra.mxu0 0.0
    %890 = vmatprep.subr.mxu0 0.0
    %891 = vmatpush2.msra.mxu0 0.0
    %892 = vmatprep.mubr.f32.mxu0 0.0
    %893 = vmatmul.mubr.f32.gmra.mxu0 %v826
    %v894 = vpop.f32.mrf.mxu0
    %v895 = vadd.f32 %v822, %v894
    %v896 = vpop.f32.mrf.mxu0
    %v897 = vadd.f32 %v823, %v896
    %898 = vdwg.mxu0
    %v899 = vmul.f32 %v895, 0.5
    %v900 = vmul.f32 %v897, 0.5
    %v901 = vtanh.pop %v899
    %v902 = vtanh.pop %v900
    %v903 = vmul.f32 %v901, 0.5
    %v904 = vmul.f32 %v902, 0.5
    %v905 = vadd.f32 %v903, 0.5
    %v906 = vadd.f32 %v904, 0.5
    %v907 = vtanh.pop %v897
    %v908 = vmul.f32 %v905, %v802
    %v909 = vmul.f32 %v905, %v907
    %911 = vrot.lane.b32.xlu0 %v909, 64
    %v912 = vpop.permute.xlu0 %911
    %v914 = vadd.f32 %v908, %v912
    %v915 = vtanh.pop %v914
    %v916 = vmul.f32 %v906, %v915
    %918 = vrot.lane.b32.xlu0 %v916, 32
    %v919 = vpop.permute.xlu0 %918
    %s921 = scalar_lea.vmem [#allocation3], 6
    %922 = vst.msk [vmem:[%s921] sm:$0x3] %vm585, %v919
    %s923 = scalar_lea.vmem [#allocation2], 20
    %v924 = vld [vmem:[%s923] sm:$0xf]
    %925 = vrot.lane.b32.xlu0 %v916, 64
    %v926 = vpop.permute.xlu0 %925
    %v929 = vunpack.c.l.s4 1983009808
    %v930 = vunpack.c.0.s8 %v929
    %v931 = vlaneseq
    %v932 = vshrl.u32 %v931, 7
    %v933 = vsub.s32 %v930, %v932
    %v934 = vrot.slane %v924, %v933
    %v935 = vcombine.high %v934, %v934
    %v938 = vsel %vm484, %v926, 0
    %940 = vmatprep.subr.mxu0 0.0
    %941 = vmatpush1.msra.mxu0 0.0
    %942 = vmatprep.subr.mxu0 0.0
    %943 = vmatpush1.msra.mxu0 0.0
    %944 = vmatprep.subr.mxu0 0.0
    %945 = vmatpush1.msra.mxu0 0.0
    %946 = vmatprep.subr.mxu0 0.0
    %947 = vmatpush1.msra.mxu0 0.0
    %948 = vmatprep.subr.mxu0 0.0
    %949 = vmatpush1.msra.mxu0 0.0
    %950 = vmatprep.subr.mxu0 0.0
    %951 = vmatpush1.msra.mxu0 0.0
    %952 = vmatprep.subr.mxu0 0.0
    %953 = vmatpush1.msra.mxu0 0.0
    %954 = vmatprep.subr.mxu0 0.0
    %955 = vmatpush1.msra.mxu0 0.0
    %956 = vmatprep.subr.mxu0 %v426
    %957 = vmatpush1.msra.mxu0 %v425
    %958 = vmatprep.subr.mxu0 %v424
    %959 = vmatpush1.msra.mxu0 %v423
    %960 = vmatprep.subr.mxu0 %v422
    %961 = vmatpush1.msra.mxu0 %v421
    %962 = vmatprep.subr.mxu0 %v420
    %963 = vmatpush1.msra.mxu0 %v419
    %964 = vmatprep.subr.mxu0 %v418
    %965 = vmatpush1.msra.mxu0 %v417
    %966 = vmatprep.subr.mxu0 %v416
    %967 = vmatpush1.msra.mxu0 %v415
    %968 = vmatprep.subr.mxu0 %v414
    %969 = vmatpush1.msra.mxu0 %v413
    %970 = vmatprep.subr.mxu0 %v412
    %971 = vmatpush1.msra.mxu0 %v411
    %972 = vmatprep.subr.mxu0 0.0
    %973 = vmatpush2.msra.mxu0 0.0
    %974 = vmatprep.subr.mxu0 0.0
    %975 = vmatpush2.msra.mxu0 0.0
    %976 = vmatprep.subr.mxu0 0.0
    %977 = vmatpush2.msra.mxu0 0.0
    %978 = vmatprep.subr.mxu0 0.0
    %979 = vmatpush2.msra.mxu0 0.0
    %980 = vmatprep.subr.mxu0 0.0
    %981 = vmatpush2.msra.mxu0 0.0
    %982 = vmatprep.subr.mxu0 0.0
    %983 = vmatpush2.msra.mxu0 0.0
    %984 = vmatprep.subr.mxu0 0.0
    %985 = vmatpush2.msra.mxu0 0.0
    %986 = vmatprep.subr.mxu0 0.0
    %987 = vmatpush2.msra.mxu0 0.0
    %988 = vmatprep.subr.mxu0 0.0
    %989 = vmatpush2.msra.mxu0 0.0
    %990 = vmatprep.subr.mxu0 0.0
    %991 = vmatpush2.msra.mxu0 0.0
    %992 = vmatprep.subr.mxu0 0.0
    %993 = vmatpush2.msra.mxu0 0.0
    %994 = vmatprep.subr.mxu0 0.0
    %995 = vmatpush2.msra.mxu0 0.0
    %996 = vmatprep.subr.mxu0 0.0
    %997 = vmatpush2.msra.mxu0 0.0
    %998 = vmatprep.subr.mxu0 0.0
    %999 = vmatpush2.msra.mxu0 0.0
    %1000 = vmatprep.subr.mxu0 0.0
    %1001 = vmatpush2.msra.mxu0 0.0
    %1002 = vmatprep.subr.mxu0 0.0
    %1003 = vmatpush2.msra.mxu0 0.0
    %1004 = vmatprep.mubr.f32.mxu0 0.0
    %1005 = vmatmul.mubr.f32.gmra.mxu0 %v938
    %v1006 = vpop.f32.mrf.mxu0
    %v1007 = vadd.f32 %v934, %v1006
    %v1008 = vpop.f32.mrf.mxu0
    %v1009 = vadd.f32 %v935, %v1008
    %1010 = vdwg.mxu0
    %v1011 = vmul.f32 %v1007, 0.5
    %v1012 = vmul.f32 %v1009, 0.5
    %v1013 = vtanh.pop %v1011
    %v1014 = vtanh.pop %v1012
    %v1015 = vmul.f32 %v1013, 0.5
    %v1016 = vmul.f32 %v1014, 0.5
    %v1017 = vadd.f32 %v1015, 0.5
    %v1018 = vadd.f32 %v1016, 0.5
    %v1019 = vtanh.pop %v1009
    %v1020 = vmul.f32 %v1017, %v914
    %v1021 = vmul.f32 %v1017, %v1019
    %1023 = vrot.lane.b32.xlu0 %v1021, 64
    %v1024 = vpop.permute.xlu0 %1023
    %v1026 = vadd.f32 %v1020, %v1024
    %v1027 = vtanh.pop %v1026
    %v1028 = vmul.f32 %v1018, %v1027
    %1030 = vrot.lane.b32.xlu0 %v1028, 32
    %v1031 = vpop.permute.xlu0 %1030
    %s1033 = scalar_lea.vmem [#allocation3], 8
    %1034 = vst.msk [vmem:[%s1033] sm:$0x3] %vm585, %v1031
    %s1035 = scalar_lea.vmem [#allocation2], 24
    %v1036 = vld [vmem:[%s1035] sm:$0xf]
    %1037 = vrot.lane.b32.xlu0 %v1028, 64
    %v1038 = vpop.permute.xlu0 %1037
    %v1041 = vunpack.c.l.s4 1983009808
    %v1042 = vunpack.c.0.s8 %v1041
    %v1043 = vlaneseq
    %v1044 = vshrl.u32 %v1043, 7
    %v1045 = vsub.s32 %v1042, %v1044
    %v1046 = vrot.slane %v1036, %v1045
    %v1047 = vcombine.high %v1046, %v1046
    %v1050 = vsel %vm484, %v1038, 0
    %1052 = vmatprep.subr.mxu0 0.0
    %1053 = vmatpush1.msra.mxu0 0.0
    %1054 = vmatprep.subr.mxu0 0.0
    %1055 = vmatpush1.msra.mxu0 0.0
    %1056 = vmatprep.subr.mxu0 0.0
    %1057 = vmatpush1.msra.mxu0 0.0
    %1058 = vmatprep.subr.mxu0 0.0
    %1059 = vmatpush1.msra.mxu0 0.0
    %1060 = vmatprep.subr.mxu0 0.0
    %1061 = vmatpush1.msra.mxu0 0.0
    %1062 = vmatprep.subr.mxu0 0.0
    %1063 = vmatpush1.msra.mxu0 0.0
    %1064 = vmatprep.subr.mxu0 0.0
    %1065 = vmatpush1.msra.mxu0 0.0
    %1066 = vmatprep.subr.mxu0 0.0
    %1067 = vmatpush1.msra.mxu0 0.0
    %1068 = vmatprep.subr.mxu0 %v426
    %1069 = vmatpush1.msra.mxu0 %v425
    %1070 = vmatprep.subr.mxu0 %v424
    %1071 = vmatpush1.msra.mxu0 %v423
    %1072 = vmatprep.subr.mxu0 %v422
    %1073 = vmatpush1.msra.mxu0 %v421
    %1074 = vmatprep.subr.mxu0 %v420
    %1075 = vmatpush1.msra.mxu0 %v419
    %1076 = vmatprep.subr.mxu0 %v418
    %1077 = vmatpush1.msra.mxu0 %v417
    %1078 = vmatprep.subr.mxu0 %v416
    %1079 = vmatpush1.msra.mxu0 %v415
    %1080 = vmatprep.subr.mxu0 %v414
    %1081 = vmatpush1.msra.mxu0 %v413
    %1082 = vmatprep.subr.mxu0 %v412
    %1083 = vmatpush1.msra.mxu0 %v411
    %1084 = vmatprep.subr.mxu0 0.0
    %1085 = vmatpush2.msra.mxu0 0.0
    %1086 = vmatprep.subr.mxu0 0.0
    %1087 = vmatpush2.msra.mxu0 0.0
    %1088 = vmatprep.subr.mxu0 0.0
    %1089 = vmatpush2.msra.mxu0 0.0
    %1090 = vmatprep.subr.mxu0 0.0
    %1091 = vmatpush2.msra.mxu0 0.0
    %1092 = vmatprep.subr.mxu0 0.0
    %1093 = vmatpush2.msra.mxu0 0.0
    %1094 = vmatprep.subr.mxu0 0.0
    %1095 = vmatpush2.msra.mxu0 0.0
    %1096 = vmatprep.subr.mxu0 0.0
    %1097 = vmatpush2.msra.mxu0 0.0
    %1098 = vmatprep.subr.mxu0 0.0
    %1099 = vmatpush2.msra.mxu0 0.0
    %1100 = vmatprep.subr.mxu0 0.0
    %1101 = vmatpush2.msra.mxu0 0.0
    %1102 = vmatprep.subr.mxu0 0.0
    %1103 = vmatpush2.msra.mxu0 0.0
    %1104 = vmatprep.subr.mxu0 0.0
    %1105 = vmatpush2.msra.mxu0 0.0
    %1106 = vmatprep.subr.mxu0 0.0
    %1107 = vmatpush2.msra.mxu0 0.0
    %1108 = vmatprep.subr.mxu0 0.0
    %1109 = vmatpush2.msra.mxu0 0.0
    %1110 = vmatprep.subr.mxu0 0.0
    %1111 = vmatpush2.msra.mxu0 0.0
    %1112 = vmatprep.subr.mxu0 0.0
    %1113 = vmatpush2.msra.mxu0 0.0
    %1114 = vmatprep.subr.mxu0 0.0
    %1115 = vmatpush2.msra.mxu0 0.0
    %1116 = vmatprep.mubr.f32.mxu0 0.0
    %1117 = vmatmul.mubr.f32.gmra.mxu0 %v1050
    %v1118 = vpop.f32.mrf.mxu0
    %v1119 = vadd.f32 %v1046, %v1118
    %v1120 = vpop.f32.mrf.mxu0
    %v1121 = vadd.f32 %v1047, %v1120
    %1122 = vdwg.mxu0
    %v1123 = vmul.f32 %v1119, 0.5
    %v1124 = vmul.f32 %v1121, 0.5
    %v1125 = vtanh.pop %v1123
    %v1126 = vtanh.pop %v1124
    %v1127 = vmul.f32 %v1125, 0.5
    %v1128 = vmul.f32 %v1126, 0.5
    %v1129 = vadd.f32 %v1127, 0.5
    %v1130 = vadd.f32 %v1128, 0.5
    %v1131 = vtanh.pop %v1121
    %v1132 = vmul.f32 %v1129, %v1026
    %v1133 = vmul.f32 %v1129, %v1131
    %1135 = vrot.lane.b32.xlu0 %v1133, 64
    %v1136 = vpop.permute.xlu0 %1135
    %v1138 = vadd.f32 %v1132, %v1136
    %v1139 = vtanh.pop %v1138
    %v1140 = vmul.f32 %v1130, %v1139
    %1142 = vrot.lane.b32.xlu0 %v1140, 32
    %v1143 = vpop.permute.xlu0 %1142
    %s1145 = scalar_lea.vmem [#allocation3], 10
    %1146 = vst.msk [vmem:[%s1145] sm:$0x3] %vm585, %v1143
    %s1147 = scalar_lea.vmem [#allocation2], 28
    %v1148 = vld [vmem:[%s1147] sm:$0xf]
    %1149 = vrot.lane.b32.xlu0 %v1140, 64
    %v1150 = vpop.permute.xlu0 %1149
    %v1153 = vunpack.c.l.s4 1983009808
    %v1154 = vunpack.c.0.s8 %v1153
    %v1155 = vlaneseq
    %v1156 = vshrl.u32 %v1155, 7
    %v1157 = vsub.s32 %v1154, %v1156
    %v1158 = vrot.slane %v1148, %v1157
    %v1159 = vcombine.high %v1158, %v1158
    %v1162 = vsel %vm484, %v1150, 0
    %1164 = vmatprep.subr.mxu0 0.0
    %1165 = vmatpush1.msra.mxu0 0.0
    %1166 = vmatprep.subr.mxu0 0.0
    %1167 = vmatpush1.msra.mxu0 0.0
    %1168 = vmatprep.subr.mxu0 0.0
    %1169 = vmatpush1.msra.mxu0 0.0
    %1170 = vmatprep.subr.mxu0 0.0
    %1171 = vmatpush1.msra.mxu0 0.0
    %1172 = vmatprep.subr.mxu0 0.0
    %1173 = vmatpush1.msra.mxu0 0.0
    %1174 = vmatprep.subr.mxu0 0.0
    %1175 = vmatpush1.msra.mxu0 0.0
    %1176 = vmatprep.subr.mxu0 0.0
    %1177 = vmatpush1.msra.mxu0 0.0
    %1178 = vmatprep.subr.mxu0 0.0
    %1179 = vmatpush1.msra.mxu0 0.0
    %1180 = vmatprep.subr.mxu0 %v426
    %1181 = vmatpush1.msra.mxu0 %v425
    %1182 = vmatprep.subr.mxu0 %v424
    %1183 = vmatpush1.msra.mxu0 %v423
    %1184 = vmatprep.subr.mxu0 %v422
    %1185 = vmatpush1.msra.mxu0 %v421
    %1186 = vmatprep.subr.mxu0 %v420
    %1187 = vmatpush1.msra.mxu0 %v419
    %1188 = vmatprep.subr.mxu0 %v418
    %1189 = vmatpush1.msra.mxu0 %v417
    %1190 = vmatprep.subr.mxu0 %v416
    %1191 = vmatpush1.msra.mxu0 %v415
    %1192 = vmatprep.subr.mxu0 %v414
    %1193 = vmatpush1.msra.mxu0 %v413
    %1194 = vmatprep.subr.mxu0 %v412
    %1195 = vmatpush1.msra.mxu0 %v411
    %1196 = vmatprep.subr.mxu0 0.0
    %1197 = vmatpush2.msra.mxu0 0.0
    %1198 = vmatprep.subr.mxu0 0.0
    %1199 = vmatpush2.msra.mxu0 0.0
    %1200 = vmatprep.subr.mxu0 0.0
    %1201 = vmatpush2.msra.mxu0 0.0
    %1202 = vmatprep.subr.mxu0 0.0
    %1203 = vmatpush2.msra.mxu0 0.0
    %1204 = vmatprep.subr.mxu0 0.0
    %1205 = vmatpush2.msra.mxu0 0.0
    %1206 = vmatprep.subr.mxu0 0.0
    %1207 = vmatpush2.msra.mxu0 0.0
    %1208 = vmatprep.subr.mxu0 0.0
    %1209 = vmatpush2.msra.mxu0 0.0
    %1210 = vmatprep.subr.mxu0 0.0
    %1211 = vmatpush2.msra.mxu0 0.0
    %1212 = vmatprep.subr.mxu0 0.0
    %1213 = vmatpush2.msra.mxu0 0.0
    %1214 = vmatprep.subr.mxu0 0.0
    %1215 = vmatpush2.msra.mxu0 0.0
    %1216 = vmatprep.subr.mxu0 0.0
    %1217 = vmatpush2.msra.mxu0 0.0
    %1218 = vmatprep.subr.mxu0 0.0
    %1219 = vmatpush2.msra.mxu0 0.0
    %1220 = vmatprep.subr.mxu0 0.0
    %1221 = vmatpush2.msra.mxu0 0.0
    %1222 = vmatprep.subr.mxu0 0.0
    %1223 = vmatpush2.msra.mxu0 0.0
    %1224 = vmatprep.subr.mxu0 0.0
    %1225 = vmatpush2.msra.mxu0 0.0
    %1226 = vmatprep.subr.mxu0 0.0
    %1227 = vmatpush2.msra.mxu0 0.0
    %1228 = vmatprep.mubr.f32.mxu0 0.0
    %1229 = vmatmul.mubr.f32.gmra.mxu0 %v1162
    %v1230 = vpop.f32.mrf.mxu0
    %v1231 = vadd.f32 %v1158, %v1230
    %v1232 = vpop.f32.mrf.mxu0
    %v1233 = vadd.f32 %v1159, %v1232
    %1234 = vdwg.mxu0
    %v1235 = vmul.f32 %v1231, 0.5
    %v1236 = vmul.f32 %v1233, 0.5
    %v1237 = vtanh.pop %v1235
    %v1238 = vtanh.pop %v1236
    %v1239 = vmul.f32 %v1237, 0.5
    %v1240 = vmul.f32 %v1238, 0.5
    %v1241 = vadd.f32 %v1239, 0.5
    %v1242 = vadd.f32 %v1240, 0.5
    %v1243 = vtanh.pop %v1233
    %v1244 = vmul.f32 %v1241, %v1138
    %v1245 = vmul.f32 %v1241, %v1243
    %1247 = vrot.lane.b32.xlu0 %v1245, 64
    %v1248 = vpop.permute.xlu0 %1247
    %v1250 = vadd.f32 %v1244, %v1248
    %v1251 = vtanh.pop %v1250
    %v1252 = vmul.f32 %v1242, %v1251
    %1254 = vrot.lane.b32.xlu0 %v1252, 32
    %v1255 = vpop.permute.xlu0 %1254
    %s1257 = scalar_lea.vmem [#allocation3], 12
    %1258 = vst.msk [vmem:[%s1257] sm:$0x3] %vm585, %v1255
    %v1260 = vlaneseq
    %v1261 = vshrl.u32 %v1260, 7
    %v1262 = vsub.s32 0, %v1261
    %v1263 = vrot.slane %v427, %v1262
    %v1264 = vlaneseq
    %v1265 = vshrl.u32 %v1264, 7
    %v1266 = vsub.s32 1, %v1265
    %v1267 = vrot.slane %v427, %v1266
    %1270 = vrot.lane.b32.xlu0 %v1252, 64
    %v1271 = vpop.permute.xlu0 %1270
    %v1272 = vsel %vm484, %v1271, 0
    %1274 = vmatprep.subr.mxu0 0.0
    %1275 = vmatpush1.msra.mxu0 0.0
    %1276 = vmatprep.subr.mxu0 0.0
    %1277 = vmatpush1.msra.mxu0 0.0
    %1278 = vmatprep.subr.mxu0 0.0
    %1279 = vmatpush1.msra.mxu0 0.0
    %1280 = vmatprep.subr.mxu0 0.0
    %1281 = vmatpush1.msra.mxu0 0.0
    %1282 = vmatprep.subr.mxu0 0.0
    %1283 = vmatpush1.msra.mxu0 0.0
    %1284 = vmatprep.subr.mxu0 0.0
    %1285 = vmatpush1.msra.mxu0 0.0
    %1286 = vmatprep.subr.mxu0 0.0
    %1287 = vmatpush1.msra.mxu0 0.0
    %1288 = vmatprep.subr.mxu0 0.0
    %1289 = vmatpush1.msra.mxu0 0.0
    %1290 = vmatprep.subr.mxu0 %v426
    %1291 = vmatpush1.msra.mxu0 %v425
    %1292 = vmatprep.subr.mxu0 %v424
    %1293 = vmatpush1.msra.mxu0 %v423
    %1294 = vmatprep.subr.mxu0 %v422
    %1295 = vmatpush1.msra.mxu0 %v421
    %1296 = vmatprep.subr.mxu0 %v420
    %1297 = vmatpush1.msra.mxu0 %v419
    %1298 = vmatprep.subr.mxu0 %v418
    %1299 = vmatpush1.msra.mxu0 %v417
    %1300 = vmatprep.subr.mxu0 %v416
    %1301 = vmatpush1.msra.mxu0 %v415
    %1302 = vmatprep.subr.mxu0 %v414
    %1303 = vmatpush1.msra.mxu0 %v413
    %1304 = vmatprep.subr.mxu0 %v412
    %1305 = vmatpush1.msra.mxu0 %v411
    %1306 = vmatprep.subr.mxu0 0.0
    %1307 = vmatpush2.msra.mxu0 0.0
    %1308 = vmatprep.subr.mxu0 0.0
    %1309 = vmatpush2.msra.mxu0 0.0
    %1310 = vmatprep.subr.mxu0 0.0
    %1311 = vmatpush2.msra.mxu0 0.0
    %1312 = vmatprep.subr.mxu0 0.0
    %1313 = vmatpush2.msra.mxu0 0.0
    %1314 = vmatprep.subr.mxu0 0.0
    %1315 = vmatpush2.msra.mxu0 0.0
    %1316 = vmatprep.subr.mxu0 0.0
    %1317 = vmatpush2.msra.mxu0 0.0
    %1318 = vmatprep.subr.mxu0 0.0
    %1319 = vmatpush2.msra.mxu0 0.0
    %1320 = vmatprep.subr.mxu0 0.0
    %1321 = vmatpush2.msra.mxu0 0.0
    %1322 = vmatprep.subr.mxu0 0.0
    %1323 = vmatpush2.msra.mxu0 0.0
    %1324 = vmatprep.subr.mxu0 0.0
    %1325 = vmatpush2.msra.mxu0 0.0
    %1326 = vmatprep.subr.mxu0 0.0
    %1327 = vmatpush2.msra.mxu0 0.0
    %1328 = vmatprep.subr.mxu0 0.0
    %1329 = vmatpush2.msra.mxu0 0.0
    %1330 = vmatprep.subr.mxu0 0.0
    %1331 = vmatpush2.msra.mxu0 0.0
    %1332 = vmatprep.subr.mxu0 0.0
    %1333 = vmatpush2.msra.mxu0 0.0
    %1334 = vmatprep.subr.mxu0 0.0
    %1335 = vmatpush2.msra.mxu0 0.0
    %1336 = vmatprep.subr.mxu0 0.0
    %1337 = vmatpush2.msra.mxu0 0.0
    %1338 = vmatprep.mubr.f32.mxu0 0.0
    %1339 = vmatmul.mubr.f32.gmra.mxu0 %v1272
    %v1340 = vpop.f32.mrf.mxu0
    %v1341 = vadd.f32 %v1263, %v1340
    %v1342 = vpop.f32.mrf.mxu0
    %v1343 = vadd.f32 %v1267, %v1342
    %1344 = vdwg.mxu0
    %v1345 = vmul.f32 %v1341, 0.5
    %v1346 = vmul.f32 %v1343, 0.5
    %v1347 = vtanh.pop %v1345
    %v1348 = vtanh.pop %v1346
    %v1349 = vmul.f32 %v1347, 0.5
    %v1350 = vmul.f32 %v1348, 0.5
    %v1351 = vadd.f32 %v1349, 0.5
    %v1352 = vadd.f32 %v1350, 0.5
    %v1353 = vtanh.pop %v1343
    %v1354 = vmul.f32 %v1351, %v1250
    %v1355 = vmul.f32 %v1351, %v1353
    %1357 = vrot.lane.b32.xlu0 %v1355, 64
    %v1358 = vpop.permute.xlu0 %1357
    %v1360 = vadd.f32 %v1354, %v1358
    %v1361 = vtanh.pop %v1360
    %v1362 = vmul.f32 %v1352, %v1361
    %1364 = vrot.lane.b32.xlu0 %v1362, 32
    %v1365 = vpop.permute.xlu0 %1364
    %s1367 = scalar_lea.vmem [#allocation3], 14
    %1368 = vst.msk [vmem:[%s1367] sm:$0x3] %vm585, %v1365
    %v1369 = vld [vmem:[#allocation3] sm:$0x3]
    %v1370 = vld [vmem:[#allocation3 + $0x2] sm:$0x3]
    %v1371 = vld [vmem:[#allocation3 + $0x4] sm:$0x3]
    %v1372 = vld [vmem:[#allocation3 + $0x6] sm:$0x3]
    %v1373 = vld [vmem:[#allocation3 + $0x8] sm:$0x3]
    %v1374 = vld [vmem:[#allocation3 + $0xa] sm:$0x3]
    %v1375 = vld [vmem:[#allocation3 + $0xc] sm:$0x3]
    %v1376 = vld [vmem:[#allocation3 + $0xe] sm:$0x3]
    %v1377 = vld [vmem:[#allocation10] sm:$0xff]
    %v1378 = vld [vmem:[#allocation10 + $0x8] sm:$0xff]
    %v1379 = vld [vmem:[#allocation10 + $0x10] sm:$0xff]
    %v1380 = vld [vmem:[#allocation10 + $0x18] sm:$0xff]
    %v1381 = vld [vmem:[#allocation15] sm:$0x1]
    %v1383 = vlaneseq
    %v1384 = vshrl.u32 %v1383, 7
    %v1385 = vsub.s32 0, %v1384
    %v1386 = vrot.slane %v1381, %v1385
    %v1396 = vcombine.low %v1369, %v1370
    %v1397 = vcombine.low %v1371, %v1372
    %v1399 = vunpack.c.l.s4 1983009808
    %v1400 = vunpack.c.0.s8 %v1399
    %v1401 = vlaneseq
    %v1402 = vshrl.u32 %v1401, 7
    %v1403 = vsub.s32 %v1400, %v1402
    %v1404 = vrot.slane %v1396, %v1403
    %v1406 = vunpack.c.l.s4 1983009808
    %v1407 = vunpack.c.0.s8 %v1406
    %v1408 = vlaneseq
    %v1409 = vshrl.u32 %v1408, 7
    %v1410 = vsub.s32 %v1407, %v1409
    %v1411 = vrot.slane %v1397, %v1410
    %v1412 = vcombine.low %v1404, %v1411
    %v1413 = vcombine.low %v1373, %v1374
    %v1414 = vcombine.low %v1375, %v1376
    %v1416 = vunpack.c.l.s4 1983009808
    %v1417 = vunpack.c.0.s8 %v1416
    %v1418 = vlaneseq
    %v1419 = vshrl.u32 %v1418, 7
    %v1420 = vsub.s32 %v1417, %v1419
    %v1421 = vrot.slane %v1413, %v1420
    %v1423 = vunpack.c.l.s4 1983009808
    %v1424 = vunpack.c.0.s8 %v1423
    %v1425 = vlaneseq
    %v1426 = vshrl.u32 %v1425, 7
    %v1427 = vsub.s32 %v1424, %v1426
    %v1428 = vrot.slane %v1414, %v1427
    %v1429 = vcombine.low %v1421, %v1428
    %vm1430 = vcmask 261120
    %v1431 = vsel %vm1430, %v1412, 0
    %v1433 = vsel %vm1430, %v1429, 0
    %1435 = vmatprep.subr.mxu0 0.0
    %1436 = vmatpush1.msra.mxu0 0.0
    %1437 = vmatprep.subr.mxu0 0.0
    %1438 = vmatpush1.msra.mxu0 0.0
    %1439 = vmatprep.subr.mxu0 0.0
    %1440 = vmatpush1.msra.mxu0 0.0
    %1441 = vmatprep.subr.mxu0 0.0
    %1442 = vmatpush1.msra.mxu0 0.0
    %1443 = vmatprep.subr.mxu0 0.0
    %1444 = vmatpush1.msra.mxu0 0.0
    %1445 = vmatprep.subr.mxu0 0.0
    %1446 = vmatpush1.msra.mxu0 0.0
    %1447 = vmatprep.subr.mxu0 0.0
    %1448 = vmatpush1.msra.mxu0 0.0
    %1449 = vmatprep.subr.mxu0 0.0
    %1450 = vmatpush1.msra.mxu0 0.0
    %1451 = vmatprep.subr.mxu0 0.0
    %1452 = vmatpush1.msra.mxu0 0.0
    %1453 = vmatprep.subr.mxu0 0.0
    %1454 = vmatpush1.msra.mxu0 0.0
    %1455 = vmatprep.subr.mxu0 0.0
    %1456 = vmatpush1.msra.mxu0 0.0
    %1457 = vmatprep.subr.mxu0 0.0
    %1458 = vmatpush1.msra.mxu0 0.0
    %1459 = vmatprep.subr.mxu0 0.0
    %1460 = vmatpush1.msra.mxu0 %v1380
    %1461 = vmatprep.subr.mxu0 0.0
    %1462 = vmatpush1.msra.mxu0 %v1379
    %1463 = vmatprep.subr.mxu0 0.0
    %1464 = vmatpush1.msra.mxu0 %v1378
    %1465 = vmatprep.subr.mxu0 0.0
    %1466 = vmatpush1.msra.mxu0 %v1377
    %1467 = vmatprep.subr.mxu0 0.0
    %1468 = vmatpush2.msra.mxu0 0.0
    %1469 = vmatprep.subr.mxu0 0.0
    %1470 = vmatpush2.msra.mxu0 0.0
    %1471 = vmatprep.subr.mxu0 0.0
    %1472 = vmatpush2.msra.mxu0 0.0
    %1473 = vmatprep.subr.mxu0 0.0
    %1474 = vmatpush2.msra.mxu0 0.0
    %1475 = vmatprep.subr.mxu0 0.0
    %1476 = vmatpush2.msra.mxu0 0.0
    %1477 = vmatprep.subr.mxu0 0.0
    %1478 = vmatpush2.msra.mxu0 0.0
    %1479 = vmatprep.subr.mxu0 0.0
    %1480 = vmatpush2.msra.mxu0 0.0
    %1481 = vmatprep.subr.mxu0 0.0
    %1482 = vmatpush2.msra.mxu0 0.0
    %1483 = vmatprep.subr.mxu0 0.0
    %1484 = vmatpush2.msra.mxu0 0.0
    %1485 = vmatprep.subr.mxu0 0.0
    %1486 = vmatpush2.msra.mxu0 0.0
    %1487 = vmatprep.subr.mxu0 0.0
    %1488 = vmatpush2.msra.mxu0 0.0
    %1489 = vmatprep.subr.mxu0 0.0
    %1490 = vmatpush2.msra.mxu0 0.0
    %1491 = vmatprep.subr.mxu0 0.0
    %1492 = vmatpush2.msra.mxu0 0.0
    %1493 = vmatprep.subr.mxu0 0.0
    %1494 = vmatpush2.msra.mxu0 0.0
    %1495 = vmatprep.subr.mxu0 0.0
    %1496 = vmatpush2.msra.mxu0 0.0
    %1497 = vmatprep.subr.mxu0 0.0
    %1498 = vmatpush2.msra.mxu0 0.0
    %1499 = vmatprep.mubr.f32.mxu0 0.0
    %1500 = vmatmul.mubr.f32.gmra.mxu0 %v1431
    %v1501 = vpop.f32.mrf.mxu0
    %v1502 = vadd.f32 %v1386, %v1501
    %v1503 = vpop.f32.mrf.mxu0
    %1504 = vmatprep.mubr.f32.mxu0 0.0
    %1505 = vmatmul.mubr.f32.gmra.mxu0 %v1433
    %v1506 = vpop.f32.mrf.mxu0
    %v1507 = vadd.f32 %v1386, %v1506
    %v1508 = vpop.f32.mrf.mxu0
    %1509 = vdwg.mxu0
    %v1512 = vcombine.high %v1502, %v1502
    %v1514 = vunpack.c.l.s4 1983009808
    %v1515 = vunpack.c.0.s8 %v1514
    %v1516 = vlaneseq
    %v1517 = vshrl.u32 %v1516, 7
    %v1518 = vsub.s32 %v1515, %v1517
    %v1519 = vrot.slane %v1502, %v1518
    %v1521 = vunpack.c.l.s4 1983009808
    %v1522 = vunpack.c.0.s8 %v1521
    %v1523 = vlaneseq
    %v1524 = vshrl.u32 %v1523, 7
    %v1525 = vsub.s32 %v1522, %v1524
    %v1526 = vrot.slane %v1512, %v1525
    %v1527 = vcombine.high %v1519, %v1519
    %v1528 = vcombine.high %v1526, %v1526
    %v1529 = vcombine.high %v1507, %v1507
    %v1531 = vunpack.c.l.s4 1983009808
    %v1532 = vunpack.c.0.s8 %v1531
    %v1533 = vlaneseq
    %v1534 = vshrl.u32 %v1533, 7
    %v1535 = vsub.s32 %v1532, %v1534
    %v1536 = vrot.slane %v1507, %v1535
    %v1538 = vunpack.c.l.s4 1983009808
    %v1539 = vunpack.c.0.s8 %v1538
    %v1540 = vlaneseq
    %v1541 = vshrl.u32 %v1540, 7
    %v1542 = vsub.s32 %v1539, %v1541
    %v1543 = vrot.slane %v1529, %v1542
    %v1544 = vcombine.high %v1536, %v1536
    %v1545 = vcombine.high %v1543, %v1543
    %v1554 = vld [vmem:[#allocation12] sm:$0xff]
    %v1555 = vld [vmem:[#allocation12 + $0x8] sm:$0xff]
    %v1556 = vld [vmem:[#allocation12 + $0x10] sm:$0xff]
    %v1557 = vld [vmem:[#allocation12 + $0x18] sm:$0xff]
    %v1558 = vld [vmem:[#allocation16] sm:$0x1]
    %v1560 = vlaneseq
    %v1561 = vshrl.u32 %v1560, 7
    %v1562 = vsub.s32 0, %v1561
    %v1563 = vrot.slane %v1558, %v1562
    %1565 = vmatprep.subr.mxu0 0.0
    %1566 = vmatpush1.msra.mxu0 0.0
    %1567 = vmatprep.subr.mxu0 0.0
    %1568 = vmatpush1.msra.mxu0 0.0
    %1569 = vmatprep.subr.mxu0 0.0
    %1570 = vmatpush1.msra.mxu0 0.0
    %1571 = vmatprep.subr.mxu0 0.0
    %1572 = vmatpush1.msra.mxu0 0.0
    %1573 = vmatprep.subr.mxu0 0.0
    %1574 = vmatpush1.msra.mxu0 0.0
    %1575 = vmatprep.subr.mxu0 0.0
    %1576 = vmatpush1.msra.mxu0 0.0
    %1577 = vmatprep.subr.mxu0 0.0
    %1578 = vmatpush1.msra.mxu0 0.0
    %1579 = vmatprep.subr.mxu0 0.0
    %1580 = vmatpush1.msra.mxu0 0.0
    %1581 = vmatprep.subr.mxu0 0.0
    %1582 = vmatpush1.msra.mxu0 0.0
    %1583 = vmatprep.subr.mxu0 0.0
    %1584 = vmatpush1.msra.mxu0 0.0
    %1585 = vmatprep.subr.mxu0 0.0
    %1586 = vmatpush1.msra.mxu0 0.0
    %1587 = vmatprep.subr.mxu0 0.0
    %1588 = vmatpush1.msra.mxu0 0.0
    %1589 = vmatprep.subr.mxu0 0.0
    %1590 = vmatpush1.msra.mxu0 %v1557
    %1591 = vmatprep.subr.mxu0 0.0
    %1592 = vmatpush1.msra.mxu0 %v1556
    %1593 = vmatprep.subr.mxu0 0.0
    %1594 = vmatpush1.msra.mxu0 %v1555
    %1595 = vmatprep.subr.mxu0 0.0
    %1596 = vmatpush1.msra.mxu0 %v1554
    %1597 = vmatprep.subr.mxu0 0.0
    %1598 = vmatpush2.msra.mxu0 0.0
    %1599 = vmatprep.subr.mxu0 0.0
    %1600 = vmatpush2.msra.mxu0 0.0
    %1601 = vmatprep.subr.mxu0 0.0
    %1602 = vmatpush2.msra.mxu0 0.0
    %1603 = vmatprep.subr.mxu0 0.0
    %1604 = vmatpush2.msra.mxu0 0.0
    %1605 = vmatprep.subr.mxu0 0.0
    %1606 = vmatpush2.msra.mxu0 0.0
    %1607 = vmatprep.subr.mxu0 0.0
    %1608 = vmatpush2.msra.mxu0 0.0
    %1609 = vmatprep.subr.mxu0 0.0
    %1610 = vmatpush2.msra.mxu0 0.0
    %1611 = vmatprep.subr.mxu0 0.0
    %1612 = vmatpush2.msra.mxu0 0.0
    %1613 = vmatprep.subr.mxu0 0.0
    %1614 = vmatpush2.msra.mxu0 0.0
    %1615 = vmatprep.subr.mxu0 0.0
    %1616 = vmatpush2.msra.mxu0 0.0
    %1617 = vmatprep.subr.mxu0 0.0
    %1618 = vmatpush2.msra.mxu0 0.0
    %1619 = vmatprep.subr.mxu0 0.0
    %1620 = vmatpush2.msra.mxu0 0.0
    %1621 = vmatprep.subr.mxu0 0.0
    %1622 = vmatpush2.msra.mxu0 0.0
    %1623 = vmatprep.subr.mxu0 0.0
    %1624 = vmatpush2.msra.mxu0 0.0
    %1625 = vmatprep.subr.mxu0 0.0
    %1626 = vmatpush2.msra.mxu0 0.0
    %1627 = vmatprep.subr.mxu0 0.0
    %1628 = vmatpush2.msra.mxu0 0.0
    %1629 = vmatprep.mubr.f32.mxu0 0.0
    %1630 = vmatmul.mubr.f32.gmra.mxu0 %v1431
    %v1631 = vpop.f32.mrf.mxu0
    %v1632 = vadd.f32 %v1563, %v1631
    %v1633 = vpop.f32.mrf.mxu0
    %1634 = vmatprep.mubr.f32.mxu0 0.0
    %1635 = vmatmul.mubr.f32.gmra.mxu0 %v1433
    %v1636 = vpop.f32.mrf.mxu0
    %v1637 = vadd.f32 %v1563, %v1636
    %v1638 = vpop.f32.mrf.mxu0
    %1639 = vdwg.mxu0
    %v1642 = vcombine.high %v1632, %v1632
    %v1644 = vunpack.c.l.s4 1983009808
    %v1645 = vunpack.c.0.s8 %v1644
    %v1646 = vlaneseq
    %v1647 = vshrl.u32 %v1646, 7
    %v1648 = vsub.s32 %v1645, %v1647
    %v1649 = vrot.slane %v1632, %v1648
    %v1651 = vunpack.c.l.s4 1983009808
    %v1652 = vunpack.c.0.s8 %v1651
    %v1653 = vlaneseq
    %v1654 = vshrl.u32 %v1653, 7
    %v1655 = vsub.s32 %v1652, %v1654
    %v1656 = vrot.slane %v1642, %v1655
    %v1657 = vcombine.high %v1649, %v1649
    %v1658 = vcombine.high %v1656, %v1656
    %v1659 = vcombine.high %v1637, %v1637
    %v1661 = vunpack.c.l.s4 1983009808
    %v1662 = vunpack.c.0.s8 %v1661
    %v1663 = vlaneseq
    %v1664 = vshrl.u32 %v1663, 7
    %v1665 = vsub.s32 %v1662, %v1664
    %v1666 = vrot.slane %v1637, %v1665
    %v1668 = vunpack.c.l.s4 1983009808
    %v1669 = vunpack.c.0.s8 %v1668
    %v1670 = vlaneseq
    %v1671 = vshrl.u32 %v1670, 7
    %v1672 = vsub.s32 %v1669, %v1671
    %v1673 = vrot.slane %v1659, %v1672
    %v1674 = vcombine.high %v1666, %v1666
    %v1675 = vcombine.high %v1673, %v1673
    %v1684 = vld [vmem:[%s4] sm:$0xff]
    %v1685 = vld [vmem:[%s4 + $0x8] sm:$0xff]
    %v1686 = vld [vmem:[%s4 + $0x10] sm:$0xff]
    %v1687 = vld [vmem:[%s4 + $0x18] sm:$0xff]
    %v1688 = vld [vmem:[#allocation13] sm:$0x1]
    %v1690 = vlaneseq
    %v1691 = vshrl.u32 %v1690, 7
    %v1692 = vsub.s32 0, %v1691
    %v1693 = vrot.slane %v1688, %v1692
    %v1695 = vsel %vm1430, %v1365, 0
    %1697 = vmatprep.subr.mxu0 0.0
    %1698 = vmatpush1.msra.mxu0 0.0
    %1699 = vmatprep.subr.mxu0 0.0
    %1700 = vmatpush1.msra.mxu0 0.0
    %1701 = vmatprep.subr.mxu0 0.0
    %1702 = vmatpush1.msra.mxu0 0.0
    %1703 = vmatprep.subr.mxu0 0.0
    %1704 = vmatpush1.msra.mxu0 0.0
    %1705 = vmatprep.subr.mxu0 0.0
    %1706 = vmatpush1.msra.mxu0 0.0
    %1707 = vmatprep.subr.mxu0 0.0
    %1708 = vmatpush1.msra.mxu0 0.0
    %1709 = vmatprep.subr.mxu0 0.0
    %1710 = vmatpush1.msra.mxu0 0.0
    %1711 = vmatprep.subr.mxu0 0.0
    %1712 = vmatpush1.msra.mxu0 0.0
    %1713 = vmatprep.subr.mxu0 0.0
    %1714 = vmatpush1.msra.mxu0 0.0
    %1715 = vmatprep.subr.mxu0 0.0
    %1716 = vmatpush1.msra.mxu0 0.0
    %1717 = vmatprep.subr.mxu0 0.0
    %1718 = vmatpush1.msra.mxu0 0.0
    %1719 = vmatprep.subr.mxu0 0.0
    %1720 = vmatpush1.msra.mxu0 0.0
    %1721 = vmatprep.subr.mxu0 0.0
    %1722 = vmatpush1.msra.mxu0 %v1687
    %1723 = vmatprep.subr.mxu0 0.0
    %1724 = vmatpush1.msra.mxu0 %v1686
    %1725 = vmatprep.subr.mxu0 0.0
    %1726 = vmatpush1.msra.mxu0 %v1685
    %1727 = vmatprep.subr.mxu0 0.0
    %1728 = vmatpush1.msra.mxu0 %v1684
    %1729 = vmatprep.subr.mxu0 0.0
    %1730 = vmatpush2.msra.mxu0 0.0
    %1731 = vmatprep.subr.mxu0 0.0
    %1732 = vmatpush2.msra.mxu0 0.0
    %1733 = vmatprep.subr.mxu0 0.0
    %1734 = vmatpush2.msra.mxu0 0.0
    %1735 = vmatprep.subr.mxu0 0.0
    %1736 = vmatpush2.msra.mxu0 0.0
    %1737 = vmatprep.subr.mxu0 0.0
    %1738 = vmatpush2.msra.mxu0 0.0
    %1739 = vmatprep.subr.mxu0 0.0
    %1740 = vmatpush2.msra.mxu0 0.0
    %1741 = vmatprep.subr.mxu0 0.0
    %1742 = vmatpush2.msra.mxu0 0.0
    %1743 = vmatprep.subr.mxu0 0.0
    %1744 = vmatpush2.msra.mxu0 0.0
    %1745 = vmatprep.subr.mxu0 0.0
    %1746 = vmatpush2.msra.mxu0 0.0
    %1747 = vmatprep.subr.mxu0 0.0
    %1748 = vmatpush2.msra.mxu0 0.0
    %1749 = vmatprep.subr.mxu0 0.0
    %1750 = vmatpush2.msra.mxu0 0.0
    %1751 = vmatprep.subr.mxu0 0.0
    %1752 = vmatpush2.msra.mxu0 0.0
    %1753 = vmatprep.subr.mxu0 0.0
    %1754 = vmatpush2.msra.mxu0 0.0
    %1755 = vmatprep.subr.mxu0 0.0
    %1756 = vmatpush2.msra.mxu0 0.0
    %1757 = vmatprep.subr.mxu0 0.0
    %1758 = vmatpush2.msra.mxu0 0.0
    %1759 = vmatprep.subr.mxu0 0.0
    %1760 = vmatpush2.msra.mxu0 0.0
    %1761 = vmatprep.mubr.f32.mxu0 0.0
    %1762 = vmatmul.mubr.f32.gmra.mxu0 %v1695
    %v1763 = vpop.f32.mrf.mxu0
    %v1764 = vadd.f32 %v1693, %v1763
    %v1765 = vpop.f32.mrf.mxu0
    %1766 = vdwg.mxu0
    %v1767 = vmul.f32 %v1764, 0.35355338
    %v1768 = vmul.f32 %v1767, %v1519
    %v1769 = vmul.f32 %v1767, %v1527
    %v1770 = vmul.f32 %v1767, %v1526
    %v1771 = vmul.f32 %v1767, %v1528
    %v1772 = vmul.f32 %v1767, %v1536
    %v1773 = vmul.f32 %v1767, %v1544
    %v1774 = vmul.f32 %v1767, %v1543
    %v1775 = vmul.f32 %v1767, %v1545
    %v1776 = vld [vmem:[#allocation21] sm:$0xff]
    %v1777 = vld [vmem:[#allocation21 + $0x8] sm:$0xff]
    %v1778 = vld [vmem:[#allocation21 + $0x10] sm:$0xff]
    %v1779 = vld [vmem:[#allocation21 + $0x18] sm:$0xff]
    %v1788 = vcombine.low %v1768, %v1769
    %v1789 = vcombine.low %v1770, %v1771
    %v1791 = vunpack.c.l.s4 1983009808
    %v1792 = vunpack.c.0.s8 %v1791
    %v1793 = vlaneseq
    %v1794 = vshrl.u32 %v1793, 7
    %v1795 = vsub.s32 %v1792, %v1794
    %v1796 = vrot.slane %v1788, %v1795
    %v1798 = vunpack.c.l.s4 1983009808
    %v1799 = vunpack.c.0.s8 %v1798
    %v1800 = vlaneseq
    %v1801 = vshrl.u32 %v1800, 7
    %v1802 = vsub.s32 %v1799, %v1801
    %v1803 = vrot.slane %v1789, %v1802
    %v1804 = vcombine.low %v1796, %v1803
    %v1805 = vcombine.low %v1772, %v1773
    %v1806 = vcombine.low %v1774, %v1775
    %v1808 = vunpack.c.l.s4 1983009808
    %v1809 = vunpack.c.0.s8 %v1808
    %v1810 = vlaneseq
    %v1811 = vshrl.u32 %v1810, 7
    %v1812 = vsub.s32 %v1809, %v1811
    %v1813 = vrot.slane %v1805, %v1812
    %v1815 = vunpack.c.l.s4 1983009808
    %v1816 = vunpack.c.0.s8 %v1815
    %v1817 = vlaneseq
    %v1818 = vshrl.u32 %v1817, 7
    %v1819 = vsub.s32 %v1816, %v1818
    %v1820 = vrot.slane %v1806, %v1819
    %v1821 = vcombine.low %v1813, %v1820
    %v1822 = vsel %vm1430, %v1804, 0
    %v1824 = vsel %vm1430, %v1821, 0
    %1826 = vmatprep.subr.mxu0 0.0
    %1827 = vmatpush1.msra.mxu0 0.0
    %1828 = vmatprep.subr.mxu0 0.0
    %1829 = vmatpush1.msra.mxu0 0.0
    %1830 = vmatprep.subr.mxu0 0.0
    %1831 = vmatpush1.msra.mxu0 0.0
    %1832 = vmatprep.subr.mxu0 0.0
    %1833 = vmatpush1.msra.mxu0 0.0
    %1834 = vmatprep.subr.mxu0 0.0
    %1835 = vmatpush1.msra.mxu0 0.0
    %1836 = vmatprep.subr.mxu0 0.0
    %1837 = vmatpush1.msra.mxu0 0.0
    %1838 = vmatprep.subr.mxu0 0.0
    %1839 = vmatpush1.msra.mxu0 0.0
    %1840 = vmatprep.subr.mxu0 0.0
    %1841 = vmatpush1.msra.mxu0 0.0
    %1842 = vmatprep.subr.mxu0 0.0
    %1843 = vmatpush1.msra.mxu0 0.0
    %1844 = vmatprep.subr.mxu0 0.0
    %1845 = vmatpush1.msra.mxu0 0.0
    %1846 = vmatprep.subr.mxu0 0.0
    %1847 = vmatpush1.msra.mxu0 0.0
    %1848 = vmatprep.subr.mxu0 0.0
    %1849 = vmatpush1.msra.mxu0 0.0
    %1850 = vmatprep.subr.mxu0 0.0
    %1851 = vmatpush1.msra.mxu0 %v1779
    %1852 = vmatprep.subr.mxu0 0.0
    %1853 = vmatpush1.msra.mxu0 %v1778
    %1854 = vmatprep.subr.mxu0 0.0
    %1855 = vmatpush1.msra.mxu0 %v1777
    %1856 = vmatprep.subr.mxu0 0.0
    %1857 = vmatpush1.msra.mxu0 %v1776
    %1858 = vmatprep.subr.mxu0 0.0
    %1859 = vmatpush2.msra.mxu0 0.0
    %1860 = vmatprep.subr.mxu0 0.0
    %1861 = vmatpush2.msra.mxu0 0.0
    %1862 = vmatprep.subr.mxu0 0.0
    %1863 = vmatpush2.msra.mxu0 0.0
    %1864 = vmatprep.subr.mxu0 0.0
    %1865 = vmatpush2.msra.mxu0 0.0
    %1866 = vmatprep.subr.mxu0 0.0
    %1867 = vmatpush2.msra.mxu0 0.0
    %1868 = vmatprep.subr.mxu0 0.0
    %1869 = vmatpush2.msra.mxu0 0.0
    %1870 = vmatprep.subr.mxu0 0.0
    %1871 = vmatpush2.msra.mxu0 0.0
    %1872 = vmatprep.subr.mxu0 0.0
    %1873 = vmatpush2.msra.mxu0 0.0
    %1874 = vmatprep.subr.mxu0 0.0
    %1875 = vmatpush2.msra.mxu0 0.0
    %1876 = vmatprep.subr.mxu0 0.0
    %1877 = vmatpush2.msra.mxu0 0.0
    %1878 = vmatprep.subr.mxu0 0.0
    %1879 = vmatpush2.msra.mxu0 0.0
    %1880 = vmatprep.subr.mxu0 0.0
    %1881 = vmatpush2.msra.mxu0 0.0
    %1882 = vmatprep.subr.mxu0 0.0
    %1883 = vmatpush2.msra.mxu0 0.0
    %1884 = vmatprep.subr.mxu0 0.0
    %1885 = vmatpush2.msra.mxu0 0.0
    %1886 = vmatprep.subr.mxu0 0.0
    %1887 = vmatpush2.msra.mxu0 0.0
    %1888 = vmatprep.subr.mxu0 0.0
    %1889 = vmatpush2.msra.mxu0 0.0
    %1890 = vmatprep.mubr.f32.mxu0 0.0
    %1891 = vmatmul.mubr.f32.gmra.mxu0 %v1822
    %v1892 = vpop.f32.mrf.mxu0
    %v1893 = vadd.f32 0.0, %v1892
    %v1894 = vpop.f32.mrf.mxu0
    %1895 = vmatprep.mubr.f32.mxu0 0.0
    %1896 = vmatmul.mubr.f32.gmra.mxu0 %v1824
    %v1897 = vpop.f32.mrf.mxu0
    %v1898 = vadd.f32 0.0, %v1897
    %v1899 = vpop.f32.mrf.mxu0
    %1900 = vdwg.mxu0
    %v1903 = vcombine.high %v1893, %v1893
    %v1905 = vunpack.c.l.s4 1983009808
    %v1906 = vunpack.c.0.s8 %v1905
    %v1907 = vlaneseq
    %v1908 = vshrl.u32 %v1907, 7
    %v1909 = vsub.s32 %v1906, %v1908
    %v1910 = vrot.slane %v1893, %v1909
    %v1912 = vunpack.c.l.s4 1983009808
    %v1913 = vunpack.c.0.s8 %v1912
    %v1914 = vlaneseq
    %v1915 = vshrl.u32 %v1914, 7
    %v1916 = vsub.s32 %v1913, %v1915
    %v1917 = vrot.slane %v1903, %v1916
    %v1918 = vcombine.high %v1910, %v1910
    %v1919 = vcombine.high %v1917, %v1917
    %v1920 = vcombine.high %v1898, %v1898
    %v1922 = vunpack.c.l.s4 1983009808
    %v1923 = vunpack.c.0.s8 %v1922
    %v1924 = vlaneseq
    %v1925 = vshrl.u32 %v1924, 7
    %v1926 = vsub.s32 %v1923, %v1925
    %v1927 = vrot.slane %v1898, %v1926
    %v1929 = vunpack.c.l.s4 1983009808
    %v1930 = vunpack.c.0.s8 %v1929
    %v1931 = vlaneseq
    %v1932 = vshrl.u32 %v1931, 7
    %v1933 = vsub.s32 %v1930, %v1932
    %v1934 = vrot.slane %v1920, %v1933
    %v1935 = vcombine.high %v1927, %v1927
    %v1936 = vcombine.high %v1934, %v1934
    %v1945 = vsel %vm585, %v1910, -inf
    %v1946 = vsel %vm585, %v1918, -inf
    %v1947 = vsel %vm585, %v1917, -inf
    %v1948 = vsel %vm585, %v1919, -inf
    %v1949 = vsel %vm585, %v1927, -inf
    %v1950 = vmax.f32 %v1945, %v1949
    %v1951 = vsel %vm585, %v1935, -inf
    %v1952 = vmax.f32 %v1946, %v1951
    %v1953 = vsel %vm585, %v1934, -inf
    %v1954 = vmax.f32 %v1947, %v1953
    %v1955 = vsel %vm585, %v1936, -inf
    %v1956 = vmax.f32 %v1948, %v1955
    %v1957 = vmax.f32 %v1950, %v1952
    %v1958 = vmax.f32 %v1954, %v1956
    %v1959 = vmax.f32 %v1957, %v1958
    %v1960 = vsub.f32 %v1910, %v1959
    %v1961 = vsub.f32 %v1918, %v1959
    %v1962 = vsub.f32 %v1917, %v1959
    %v1963 = vsub.f32 %v1919, %v1959
    %v1964 = vsub.f32 %v1927, %v1959
    %v1965 = vsub.f32 %v1935, %v1959
    %v1966 = vsub.f32 %v1934, %v1959
    %v1967 = vsub.f32 %v1936, %v1959
    %v1968 = vmul.f32 %v1960, 1.442695
    %v1969 = vpow.pop %v1968
    %v1970 = vmul.f32 %v1961, 1.442695
    %v1971 = vpow.pop %v1970
    %v1972 = vmul.f32 %v1962, 1.442695
    %v1973 = vpow.pop %v1972
    %v1974 = vmul.f32 %v1963, 1.442695
    %v1975 = vpow.pop %v1974
    %v1976 = vmul.f32 %v1964, 1.442695
    %v1977 = vpow.pop %v1976
    %v1978 = vmul.f32 %v1965, 1.442695
    %v1979 = vpow.pop %v1978
    %v1980 = vmul.f32 %v1966, 1.442695
    %v1981 = vpow.pop %v1980
    %v1982 = vmul.f32 %v1967, 1.442695
    %v1983 = vpow.pop %v1982
    %v1984 = vsel %vm585, %v1969, 0.0
    %v1985 = vsel %vm585, %v1971, 0.0
    %v1986 = vadd.f32 %v1984, %v1985
    %v1987 = vsel %vm585, %v1973, 0.0
    %v1988 = vadd.f32 %v1986, %v1987
    %v1989 = vsel %vm585, %v1975, 0.0
    %v1990 = vadd.f32 %v1988, %v1989
    %v1991 = vsel %vm585, %v1977, 0.0
    %v1992 = vadd.f32 %v1990, %v1991
    %v1993 = vsel %vm585, %v1979, 0.0
    %v1994 = vadd.f32 %v1992, %v1993
    %v1995 = vsel %vm585, %v1981, 0.0
    %v1996 = vadd.f32 %v1994, %v1995
    %v1997 = vsel %vm585, %v1983, 0.0
    %v1998 = vadd.f32 %v1996, %v1997
    %v1999 = vrcp.pop %v1998
    %v2000 = vmul.f32 %v1969, %v1999
    %v2001 = vmul.f32 %v1971, %v1999
    %v2002 = vmul.f32 %v1973, %v1999
    %v2003 = vmul.f32 %v1975, %v1999
    %v2004 = vmul.f32 %v1977, %v1999
    %v2005 = vmul.f32 %v1979, %v1999
    %v2006 = vmul.f32 %v1981, %v1999
    %v2007 = vmul.f32 %v1983, %v1999
    %v2008 = vmul.f32 %v2000, %v1649
    %v2009 = vmul.f32 %v2001, %v1657
    %v2010 = vmul.f32 %v2002, %v1656
    %v2011 = vmul.f32 %v2003, %v1658
    %v2012 = vmul.f32 %v2004, %v1666
    %v2013 = vmul.f32 %v2005, %v1674
    %v2014 = vmul.f32 %v2006, %v1673
    %v2015 = vmul.f32 %v2007, %v1675
    %v2016 = vsel %vm585, %v2008, 0.0
    %v2017 = vsel %vm585, %v2009, 0.0
    %v2018 = vadd.f32 %v2016, %v2017
    %v2019 = vsel %vm585, %v2010, 0.0
    %v2020 = vadd.f32 %v2018, %v2019
    %v2021 = vsel %vm585, %v2011, 0.0
    %v2022 = vadd.f32 %v2020, %v2021
    %v2023 = vsel %vm585, %v2012, 0.0
    %v2024 = vadd.f32 %v2022, %v2023
    %v2025 = vsel %vm585, %v2013, 0.0
    %v2026 = vadd.f32 %v2024, %v2025
    %v2027 = vsel %vm585, %v2014, 0.0
    %v2028 = vadd.f32 %v2026, %v2027
    %v2029 = vsel %vm585, %v2015, 0.0
    %v2030 = vadd.f32 %v2028, %v2029
    %v2031 = vld [vmem:[%s10] sm:$0xff]
    %v2032 = vld [vmem:[%s10 + $0x8] sm:$0xff]
    %v2033 = vld [vmem:[%s10 + $0x10] sm:$0xff]
    %v2034 = vld [vmem:[%s10 + $0x18] sm:$0xff]
    %v2035 = vld [vmem:[#allocation18] sm:$0x1]
    %v2037 = vlaneseq
    %v2038 = vshrl.u32 %v2037, 7
    %v2039 = vsub.s32 0, %v2038
    %v2040 = vrot.slane %v2035, %v2039
    %v2043 = vsel %vm1430, %v2030, 0
    %2045 = vmatprep.subr.mxu0 0.0
    %2046 = vmatpush1.msra.mxu0 0.0
    %2047 = vmatprep.subr.mxu0 0.0
    %2048 = vmatpush1.msra.mxu0 0.0
    %2049 = vmatprep.subr.mxu0 0.0
    %2050 = vmatpush1.msra.mxu0 0.0
    %2051 = vmatprep.subr.mxu0 0.0
    %2052 = vmatpush1.msra.mxu0 0.0
    %2053 = vmatprep.subr.mxu0 0.0
    %2054 = vmatpush1.msra.mxu0 0.0
    %2055 = vmatprep.subr.mxu0 0.0
    %2056 = vmatpush1.msra.mxu0 0.0
    %2057 = vmatprep.subr.mxu0 0.0
    %2058 = vmatpush1.msra.mxu0 0.0
    %2059 = vmatprep.subr.mxu0 0.0
    %2060 = vmatpush1.msra.mxu0 0.0
    %2061 = vmatprep.subr.mxu0 0.0
    %2062 = vmatpush1.msra.mxu0 0.0
    %2063 = vmatprep.subr.mxu0 0.0
    %2064 = vmatpush1.msra.mxu0 0.0
    %2065 = vmatprep.subr.mxu0 0.0
    %2066 = vmatpush1.msra.mxu0 0.0
    %2067 = vmatprep.subr.mxu0 0.0
    %2068 = vmatpush1.msra.mxu0 0.0
    %2069 = vmatprep.subr.mxu0 0.0
    %2070 = vmatpush1.msra.mxu0 %v2034
    %2071 = vmatprep.subr.mxu0 0.0
    %2072 = vmatpush1.msra.mxu0 %v2033
    %2073 = vmatprep.subr.mxu0 0.0
    %2074 = vmatpush1.msra.mxu0 %v2032
    %2075 = vmatprep.subr.mxu0 0.0
    %2076 = vmatpush1.msra.mxu0 %v2031
    %2077 = vmatprep.subr.mxu0 0.0
    %2078 = vmatpush2.msra.mxu0 0.0
    %2079 = vmatprep.subr.mxu0 0.0
    %2080 = vmatpush2.msra.mxu0 0.0
    %2081 = vmatprep.subr.mxu0 0.0
    %2082 = vmatpush2.msra.mxu0 0.0
    %2083 = vmatprep.subr.mxu0 0.0
    %2084 = vmatpush2.msra.mxu0 0.0
    %2085 = vmatprep.subr.mxu0 0.0
    %2086 = vmatpush2.msra.mxu0 0.0
    %2087 = vmatprep.subr.mxu0 0.0
    %2088 = vmatpush2.msra.mxu0 0.0
    %2089 = vmatprep.subr.mxu0 0.0
    %2090 = vmatpush2.msra.mxu0 0.0
    %2091 = vmatprep.subr.mxu0 0.0
    %2092 = vmatpush2.msra.mxu0 0.0
    %2093 = vmatprep.subr.mxu0 0.0
    %2094 = vmatpush2.msra.mxu0 0.0
    %2095 = vmatprep.subr.mxu0 0.0
    %2096 = vmatpush2.msra.mxu0 0.0
    %2097 = vmatprep.subr.mxu0 0.0
    %2098 = vmatpush2.msra.mxu0 0.0
    %2099 = vmatprep.subr.mxu0 0.0
    %2100 = vmatpush2.msra.mxu0 0.0
    %2101 = vmatprep.subr.mxu0 0.0
    %2102 = vmatpush2.msra.mxu0 0.0
    %2103 = vmatprep.subr.mxu0 0.0
    %2104 = vmatpush2.msra.mxu0 0.0
    %2105 = vmatprep.subr.mxu0 0.0
    %2106 = vmatpush2.msra.mxu0 0.0
    %2107 = vmatprep.subr.mxu0 0.0
    %2108 = vmatpush2.msra.mxu0 0.0
    %2109 = vmatprep.mubr.f32.mxu0 0.0
    %2110 = vmatmul.mubr.f32.gmra.mxu0 %v2043
    %v2111 = vpop.f32.mrf.mxu0
    %v2112 = vadd.f32 %v2040, %v2111
    %v2113 = vpop.f32.mrf.mxu0
    %2114 = vdwg.mxu0
    %v2115 = vadd.f32 %v2112, %v1365
    %v2116 = vsel %vm585, %v2115, 0.0
    %2117 = vadd.xlane.f32.xlu0 %v2116
    %v2118 = vpop.xlane.xlu0 %2117
    %v2119 = vrcp.pop 32.0
    %v2120 = vmul.f32 %v2118, %v2119
    %v2121 = vsub.f32 %v2115, %v2120
    %v2122 = vmul.f32 %v2121, %v2121
    %v2123 = vsel %vm585, %v2122, 0.0
    %2124 = vadd.xlane.f32.xlu0 %v2123
    %v2125 = vpop.xlane.xlu0 %2124
    %v2126 = vmul.f32 %v2125, %v2119
    %v2127 = vadd.f32 %v2126, 1e-05
    %v2128 = vrsqrt.pop %v2127
    %v2129 = vmul.f32 %v2121, %v2128
    %v2130 = vld [vmem:[#allocation19] sm:$0x1]
    %v2132 = vlaneseq
    %v2133 = vshrl.u32 %v2132, 7
    %v2134 = vsub.s32 0, %v2133
    %v2135 = vrot.slane %v2130, %v2134
    %v2137 = vmul.f32 %v2129, %v2135
    %v2138 = vld [vmem:[%s13] sm:$0x1]
    %v2140 = vlaneseq
    %v2141 = vshrl.u32 %v2140, 7
    %v2142 = vsub.s32 0, %v2141
    %v2143 = vrot.slane %v2138, %v2142
    %v2145 = vadd.f32 %v2137, %v2143
    %v2146 = vld [vmem:[%s14] sm:$0xff]
    %v2147 = vld [vmem:[%s14 + $0x8] sm:$0xff]
    %v2148 = vld [vmem:[%s14 + $0x10] sm:$0xff]
    %v2149 = vld [vmem:[%s14 + $0x18] sm:$0xff]
    %v2150 = vld [vmem:[%s15] sm:$0x1]
    %v2152 = vlaneseq
    %v2153 = vshrl.u32 %v2152, 7
    %v2154 = vsub.s32 0, %v2153
    %v2155 = vrot.slane %v2150, %v2154
    %v2158 = vsel %vm1430, %v2145, 0
    %2160 = vmatprep.subr.mxu0 0.0
    %2161 = vmatpush1.msra.mxu0 0.0
    %2162 = vmatprep.subr.mxu0 0.0
    %2163 = vmatpush1.msra.mxu0 0.0
    %2164 = vmatprep.subr.mxu0 0.0
    %2165 = vmatpush1.msra.mxu0 0.0
    %2166 = vmatprep.subr.mxu0 0.0
    %2167 = vmatpush1.msra.mxu0 0.0
    %2168 = vmatprep.subr.mxu0 0.0
    %2169 = vmatpush1.msra.mxu0 0.0
    %2170 = vmatprep.subr.mxu0 0.0
    %2171 = vmatpush1.msra.mxu0 0.0
    %2172 = vmatprep.subr.mxu0 0.0
    %2173 = vmatpush1.msra.mxu0 0.0
    %2174 = vmatprep.subr.mxu0 0.0
    %2175 = vmatpush1.msra.mxu0 0.0
    %2176 = vmatprep.subr.mxu0 0.0
    %2177 = vmatpush1.msra.mxu0 0.0
    %2178 = vmatprep.subr.mxu0 0.0
    %2179 = vmatpush1.msra.mxu0 0.0
    %2180 = vmatprep.subr.mxu0 0.0
    %2181 = vmatpush1.msra.mxu0 0.0
    %2182 = vmatprep.subr.mxu0 0.0
    %2183 = vmatpush1.msra.mxu0 0.0
    %2184 = vmatprep.subr.mxu0 0.0
    %2185 = vmatpush1.msra.mxu0 %v2149
    %2186 = vmatprep.subr.mxu0 0.0
    %2187 = vmatpush1.msra.mxu0 %v2148
    %2188 = vmatprep.subr.mxu0 0.0
    %2189 = vmatpush1.msra.mxu0 %v2147
    %2190 = vmatprep.subr.mxu0 0.0
    %2191 = vmatpush1.msra.mxu0 %v2146
    %2192 = vmatprep.subr.mxu0 0.0
    %2193 = vmatpush2.msra.mxu0 0.0
    %2194 = vmatprep.subr.mxu0 0.0
    %2195 = vmatpush2.msra.mxu0 0.0
    %2196 = vmatprep.subr.mxu0 0.0
    %2197 = vmatpush2.msra.mxu0 0.0
    %2198 = vmatprep.subr.mxu0 0.0
    %2199 = vmatpush2.msra.mxu0 0.0
    %2200 = vmatprep.subr.mxu0 0.0
    %2201 = vmatpush2.msra.mxu0 0.0
    %2202 = vmatprep.subr.mxu0 0.0
    %2203 = vmatpush2.msra.mxu0 0.0
    %2204 = vmatprep.subr.mxu0 0.0
    %2205 = vmatpush2.msra.mxu0 0.0
    %2206 = vmatprep.subr.mxu0 0.0
    %2207 = vmatpush2.msra.mxu0 0.0
    %2208 = vmatprep.subr.mxu0 0.0
    %2209 = vmatpush2.msra.mxu0 0.0
    %2210 = vmatprep.subr.mxu0 0.0
    %2211 = vmatpush2.msra.mxu0 0.0
    %2212 = vmatprep.subr.mxu0 0.0
    %2213 = vmatpush2.msra.mxu0 0.0
    %2214 = vmatprep.subr.mxu0 0.0
    %2215 = vmatpush2.msra.mxu0 0.0
    %2216 = vmatprep.subr.mxu0 0.0
    %2217 = vmatpush2.msra.mxu0 0.0
    %2218 = vmatprep.subr.mxu0 0.0
    %2219 = vmatpush2.msra.mxu0 0.0
    %2220 = vmatprep.subr.mxu0 0.0
    %2221 = vmatpush2.msra.mxu0 0.0
    %2222 = vmatprep.subr.mxu0 0.0
    %2223 = vmatpush2.msra.mxu0 0.0
    %2224 = vmatprep.mubr.f32.mxu0 0.0
    %2225 = vmatmul.mubr.f32.gmra.mxu0 %v2158
    %v2226 = vpop.f32.mrf.mxu0
    %v2227 = vadd.f32 %v2155, %v2226
    %v2228 = vpop.f32.mrf.mxu0
    %2229 = vdwg.mxu0
    %v2230 = vmax.f32 %v2227, 0.0
    %v2231 = vld [vmem:[%s16] sm:$0xff]
    %v2232 = vld [vmem:[%s16 + $0x8] sm:$0xff]
    %v2233 = vld [vmem:[%s17] sm:$0x1]
    %v2235 = vlaneseq
    %v2236 = vshrl.u32 %v2235, 7
    %v2237 = vsub.s32 0, %v2236
    %v2238 = vrot.slane %v2233, %v2237
    %v2241 = vsel %vm273, %v2230, 0
    %2243 = vmatprep.subr.mxu0 0.0
    %2244 = vmatpush1.msra.mxu0 0.0
    %2245 = vmatprep.subr.mxu0 0.0
    %2246 = vmatpush1.msra.mxu0 0.0
    %2247 = vmatprep.subr.mxu0 0.0
    %2248 = vmatpush1.msra.mxu0 0.0
    %2249 = vmatprep.subr.mxu0 0.0
    %2250 = vmatpush1.msra.mxu0 0.0
    %2251 = vmatprep.subr.mxu0 0.0
    %2252 = vmatpush1.msra.mxu0 0.0
    %2253 = vmatprep.subr.mxu0 0.0
    %2254 = vmatpush1.msra.mxu0 0.0
    %2255 = vmatprep.subr.mxu0 0.0
    %2256 = vmatpush1.msra.mxu0 0.0
    %2257 = vmatprep.subr.mxu0 0.0
    %2258 = vmatpush1.msra.mxu0 0.0
    %2259 = vmatprep.subr.mxu0 0.0
    %2260 = vmatpush1.msra.mxu0 0.0
    %2261 = vmatprep.subr.mxu0 0.0
    %2262 = vmatpush1.msra.mxu0 0.0
    %2263 = vmatprep.subr.mxu0 0.0
    %2264 = vmatpush1.msra.mxu0 0.0
    %2265 = vmatprep.subr.mxu0 0.0
    %2266 = vmatpush1.msra.mxu0 0.0
    %2267 = vmatprep.subr.mxu0 0.0
    %2268 = vmatpush1.msra.mxu0 0.0
    %2269 = vmatprep.subr.mxu0 0.0
    %2270 = vmatpush1.msra.mxu0 0.0
    %2271 = vmatprep.subr.mxu0 0.0
    %2272 = vmatpush1.msra.mxu0 %v2232
    %2273 = vmatprep.subr.mxu0 0.0
    %2274 = vmatpush1.msra.mxu0 %v2231
    %2275 = vmatprep.subr.mxu0 0.0
    %2276 = vmatpush2.msra.mxu0 0.0
    %2277 = vmatprep.subr.mxu0 0.0
    %2278 = vmatpush2.msra.mxu0 0.0
    %2279 = vmatprep.subr.mxu0 0.0
    %2280 = vmatpush2.msra.mxu0 0.0
    %2281 = vmatprep.subr.mxu0 0.0
    %2282 = vmatpush2.msra.mxu0 0.0
    %2283 = vmatprep.subr.mxu0 0.0
    %2284 = vmatpush2.msra.mxu0 0.0
    %2285 = vmatprep.subr.mxu0 0.0
    %2286 = vmatpush2.msra.mxu0 0.0
    %2287 = vmatprep.subr.mxu0 0.0
    %2288 = vmatpush2.msra.mxu0 0.0
    %2289 = vmatprep.subr.mxu0 0.0
    %2290 = vmatpush2.msra.mxu0 0.0
    %2291 = vmatprep.subr.mxu0 0.0
    %2292 = vmatpush2.msra.mxu0 0.0
    %2293 = vmatprep.subr.mxu0 0.0
    %2294 = vmatpush2.msra.mxu0 0.0
    %2295 = vmatprep.subr.mxu0 0.0
    %2296 = vmatpush2.msra.mxu0 0.0
    %2297 = vmatprep.subr.mxu0 0.0
    %2298 = vmatpush2.msra.mxu0 0.0
    %2299 = vmatprep.subr.mxu0 0.0
    %2300 = vmatpush2.msra.mxu0 0.0
    %2301 = vmatprep.subr.mxu0 0.0
    %2302 = vmatpush2.msra.mxu0 0.0
    %2303 = vmatprep.subr.mxu0 0.0
    %2304 = vmatpush2.msra.mxu0 0.0
    %2305 = vmatprep.subr.mxu0 0.0
    %2306 = vmatpush2.msra.mxu0 0.0
    %2307 = vmatprep.mubr.f32.mxu0 0.0
    %2308 = vmatmul.mubr.f32.gmra.mxu0 %v2241
    %v2309 = vpop.f32.mrf.mxu0
    %v2310 = vadd.f32 %v2238, %v2309
    %v2311 = vpop.f32.mrf.mxu0
    %2312 = vdwg.mxu0
    %v2313 = vmax.f32 %v2310, 0.0
    %v2314 = vld [vmem:[%s18] sm:$0xff]
    %v2315 = vld [vmem:[#allocation4] sm:$0x1]
    %v2317 = vlaneseq
    %v2318 = vshrl.u32 %v2317, 7
    %v2319 = vsub.s32 0, %v2318
    %v2320 = vrot.slane %v2315, %v2319
    %vm2322 = vcmask 64512
    %v2324 = vsel %vm2322, %v2313, 0
    %2326 = vmatprep.subr.mxu0 0.0
    %2327 = vmatpush1.msra.mxu0 0.0
    %2328 = vmatprep.subr.mxu0 0.0
    %2329 = vmatpush1.msra.mxu0 0.0
    %2330 = vmatprep.subr.mxu0 0.0
    %2331 = vmatpush1.msra.mxu0 0.0
    %2332 = vmatprep.subr.mxu0 0.0
    %2333 = vmatpush1.msra.mxu0 0.0
    %2334 = vmatprep.subr.mxu0 0.0
    %2335 = vmatpush1.msra.mxu0 0.0
    %2336 = vmatprep.subr.mxu0 0.0
    %2337 = vmatpush1.msra.mxu0 0.0
    %2338 = vmatprep.subr.mxu0 0.0
    %2339 = vmatpush1.msra.mxu0 0.0
    %2340 = vmatprep.subr.mxu0 0.0
    %2341 = vmatpush1.msra.mxu0 0.0
    %2342 = vmatprep.subr.mxu0 0.0
    %2343 = vmatpush1.msra.mxu0 0.0
    %2344 = vmatprep.subr.mxu0 0.0
    %2345 = vmatpush1.msra.mxu0 0.0
    %2346 = vmatprep.subr.mxu0 0.0
    %2347 = vmatpush1.msra.mxu0 0.0
    %2348 = vmatprep.subr.mxu0 0.0
    %2349 = vmatpush1.msra.mxu0 0.0
    %2350 = vmatprep.subr.mxu0 0.0
    %2351 = vmatpush1.msra.mxu0 0.0
    %2352 = vmatprep.subr.mxu0 0.0
    %2353 = vmatpush1.msra.mxu0 0.0
    %2354 = vmatprep.subr.mxu0 0.0
    %2355 = vmatpush1.msra.mxu0 0.0
    %2356 = vmatprep.subr.mxu0 0.0
    %2357 = vmatpush1.msra.mxu0 %v2314
    %2358 = vmatprep.subr.mxu0 0.0
    %2359 = vmatpush2.msra.mxu0 0.0
    %2360 = vmatprep.subr.mxu0 0.0
    %2361 = vmatpush2.msra.mxu0 0.0
    %2362 = vmatprep.subr.mxu0 0.0
    %2363 = vmatpush2.msra.mxu0 0.0
    %2364 = vmatprep.subr.mxu0 0.0
    %2365 = vmatpush2.msra.mxu0 0.0
    %2366 = vmatprep.subr.mxu0 0.0
    %2367 = vmatpush2.msra.mxu0 0.0
    %2368 = vmatprep.subr.mxu0 0.0
    %2369 = vmatpush2.msra.mxu0 0.0
    %2370 = vmatprep.subr.mxu0 0.0
    %2371 = vmatpush2.msra.mxu0 0.0
    %2372 = vmatprep.subr.mxu0 0.0
    %2373 = vmatpush2.msra.mxu0 0.0
    %2374 = vmatprep.subr.mxu0 0.0
    %2375 = vmatpush2.msra.mxu0 0.0
    %2376 = vmatprep.subr.mxu0 0.0
    %2377 = vmatpush2.msra.mxu0 0.0
    %2378 = vmatprep.subr.mxu0 0.0
    %2379 = vmatpush2.msra.mxu0 0.0
    %2380 = vmatprep.subr.mxu0 0.0
    %2381 = vmatpush2.msra.mxu0 0.0
    %2382 = vmatprep.subr.mxu0 0.0
    %2383 = vmatpush2.msra.mxu0 0.0
    %2384 = vmatprep.subr.mxu0 0.0
    %2385 = vmatpush2.msra.mxu0 0.0
    %2386 = vmatprep.subr.mxu0 0.0
    %2387 = vmatpush2.msra.mxu0 0.0
    %2388 = vmatprep.subr.mxu0 0.0
    %2389 = vmatpush2.msra.mxu0 0.0
    %2390 = vmatprep.mubr.f32.mxu0 0.0
    %2391 = vmatmul.mubr.f32.gmra.mxu0 %v2324
    %v2392 = vpop.f32.mrf.mxu0
    %v2393 = vadd.f32 %v2320, %v2392
    %v2394 = vpop.f32.mrf.mxu0
    %2395 = vdwg.mxu0
    %vm2396 = vcmask 1024
    %2397 = vst.msk [vmem:[%s21] sm:$0x3] %vm2396, %v2393
    // Predicated region
    $region130: #{tpu_custom_call.1} parent=1 // pred_check
      _
    $region131: #{tpu_custom_call.1} parent=1 // pred_check_branch
      %2399 = sbr.rel (0) target = $region133
    $region132: #{tpu_custom_call.1} parent=1 // pred_region
      _
    $region133: #{tpu_custom_call.1} parent=1 // pred_fallthru
      _
    // Predicated region
    $region134: #{tpu_custom_call.1} parent=1 // pred_check
      _
    $region135: #{tpu_custom_call.1} parent=1 // pred_check_branch
      %2401 = sbr.rel (0) target = $region137
    $region136: #{tpu_custom_call.1} parent=1 // pred_region
      _
    $region137: #{tpu_custom_call.1} parent=1 // pred_fallthru
      _
    %2402 = vsyncpa [#allocation6], 1
    %2403 = vsyncpa [#allocation8], 1
    %2404 = vsyncpa [#allocation11], 1
    %2405 = vsyncpa [#allocation14], 1
    %2406 = vsyncpa [#allocation17], 1
    %2407 = vsyncpa [#allocation20], 1

</llo_original>
